<compile_context>
chip_gen: v6e
topology: v6e:2x2x1
jax: 0.10.0
libtpu: 0.0.40
codegen_flags: <defaults>
</compile_context>

<pallas_src>
import functools

import jax
import jax.numpy as jnp
import numpy as np
from jax.experimental import pallas as pl
from jax.experimental.pallas import tpu as pltpu

_LANE = 128   # batch on lanes
_SUB = 8      # sublane group: every live intermediate is one (8,128) vreg


def _vsum(terms):
    acc = terms[0]
    for t in terms[1:]:
        acc = acc + t
    return acc


def _tdvp_kernel(scale_ref, af_ref, bf_ref, x_ref, y_ref, al_ref, ar_ref,
                 *, n, D, din, dout, n_groups):
    """One batch tile of [rows = n_groups*8, 128] elements.

    Refs (f32, batch on the trailing [rows, 128] dims):
      x_ref : [n*din,   rows, 128]   raw input
      y_ref : [n*dout,  rows, 128]   L1-normalized output
      al_ref: [(n-1)*D, rows, 128]   normalized left environments
      ar_ref: [(n-1)*D, rows, 128]   normalized right environments
    """
    eps = 1e-6
    scale = scale_ref[0]

    def a_s(i, l, r, k):      # A[i, l, r, k] scalar from SMEM
        return af_ref[((i * D + l) * D + r) * din + k]

    def b_s(i, p, l, j, k):   # B[i, p, l, j, k] scalar from SMEM
        return bf_ref[(((i * D + p) * D + l) * dout + j) * din + k]

    # Group loop: each group is an independent [8,128] batch slab, so the live
    # set (~20 single-vreg values) never scales with the batch tile size.
    for g in range(n_groups):
        rows = pl.ds(g * _SUB, _SUB)

        def load_x(i):
            return [x_ref[i * din + k, rows, :] for k in range(din)]

        def local_mpo(i, xs):
            # M[l][r] = sum_k A[i,l,r,k] * x_norm[k]
            ss = _vsum([xk * xk for xk in xs])
            inv = jax.lax.rsqrt(ss)                 # EUP; no eps (matches torch)
            xn = [xk * inv for xk in xs]
            return [[_vsum([a_s(i, l, r, k) * xn[k] for k in range(din)])
                     for r in range(D)] for l in range(D)]

        def normalize(v):
            inv = 1.0 / (jnp.sqrt(_vsum([vj * vj for vj in v])) + eps)
            return [vj * inv for vj in v]           # 1 divide, D multiplies

        def emit_site(i, xs, AL, AR):
            # local Hamiltonian H[j][k]
            if i == 0:
                H = [[_vsum([b_s(0, 0, l, j, k) * AR[l] for l in range(D)])
                      for k in range(din)] for j in range(dout)]
            elif i == n - 1:
                H = [[_vsum([b_s(i, p, 0, j, k) * AL[p] for p in range(D)])
                      for k in range(din)] for j in range(dout)]
            else:
                P = [[AL[p] * AR[l] for l in range(D)] for p in range(D)]
                H = [[_vsum([b_s(i, p, l, j, k) * P[p][l]
                             for p in range(D) for l in range(D)])
                      for k in range(din)] for j in range(dout)]
            frob2 = _vsum([H[j][k] * H[j][k]
                           for j in range(dout) for k in range(din)])
            isv = scale / (jnp.sqrt(frob2) + eps)   # hoisted inv*scale, 1 divide
            out_rows = []
            for j in range(dout):
                oj = None
                for k in range(din):
                    h = H[j][k] * isv
                    h = jnp.where(jnp.isnan(h), 0.0, h)   # nan -> 0 (as torch)
                    t = h * xs[k]
                    oj = t if oj is None else oj + t
                oj = jnp.where(oj >= 0, oj, 1e-5 * oj)    # LeakyReLU(1e-5)
                out_rows.append(jnp.abs(oj))              # out_norm == 'L1'
            inv_s = 1.0 / _vsum(out_rows)
            for j in range(dout):
                y_ref[i * dout + j, rows, :] = out_rows[j] * inv_s

        # ---- left sweep: raw prefix products, per-prefix normalization -----
        Lraw = None
        for kk in range(n - 1):
            M = local_mpo(kk, load_x(kk))
            if kk == 0:
                Lraw = [M[0][r] for r in range(D)]
            else:
                Lraw = [_vsum([Lraw[j] * M[j][r] for j in range(D)])
                        for r in range(D)]
            ALn = normalize(Lraw)
            for r in range(D):
                al_ref[kk * D + r, rows, :] = ALn[r]

        # ---- right sweep: fuse suffix products + H + activation + L1 -------
        Rraw = None
        ARn = None
        for i in range(n - 1, -1, -1):
            xs = load_x(i)
            ALi = ([al_ref[(i - 1) * D + p, rows, :] for p in range(D)]
                   if i >= 1 else None)
            emit_site(i, xs, ALi, ARn)
            if i >= 1:
                M = local_mpo(i, xs)                 # recompute (cheaper than spill)
                if i == n - 1:
                    Rraw = [M[l][0] for l in range(D)]
                else:
                    Rraw = [_vsum([M[l][j] * Rraw[j] for j in range(D)])
                            for l in range(D)]
                ARn = normalize(Rraw)
                for l in range(D):
                    ar_ref[(i - 1) * D + l, rows, :] = ARn[l]


def _pick_batch_tile(bsz):
    """Batch tile in elements (multiple of 8*128). Prefer >=2 grid steps so the
    'parallel' grid axis shards across both v7x TensorCores; cap at 4096
    (~1 MiB of blocks per step, comfortably inside v7x's 64 MiB VMEM)."""
    for bt in (4096, 2048, 1024):
        if bsz >= 2 * bt:
            return bt
    return _SUB * _LANE  # 1024


def tdvp_forward(x, A, Bp, scale):
    """x: [batch, n, din] f32; A: [n, D, D, din]; Bp: [n, D, D, dout, din].

    Returns (y [batch, n, dout], Aleft [batch, n-1, D], Aright [batch, n-1, D]).
    (The PyTorch module returns Aleft/Aright as python lists of [batch, D]
    tensors; here they are stacked along axis 1 in the same order.)
    """
    bsz, n, din = x.shape
    D = A.shape[1]
    dout = Bp.shape[3]

    BT = _pick_batch_tile(bsz)
    b_pad = ((bsz + BT - 1) // BT) * BT
    R = b_pad // _LANE            # total batch sublane-rows
    RT = BT // _LANE              # rows per grid step
    n_groups = RT // _SUB
    grid = (b_pad // BT,)

    x32 = x.astype(jnp.float32)
    if b_pad != bsz:
        # pad with ones (padded lanes are discarded; ones avoid inf/nan work)
        x32 = jnp.concatenate(
            [x32, jnp.ones((b_pad - bsz, n, din), jnp.float32)], axis=0)

    # [batch, n, din] -> [n*din, R, 128]  (batch on sublanes x lanes)
    # TODO(synk): these wrapper transposes exist only to match the PyTorch
    # [batch, n, d] API; a fused pipeline should keep the [n*d, rows, 128]
    # layout across adjacent ops to avoid the extra HBM relayout passes.
    x_t = jnp.transpose(x32, (1, 2, 0)).reshape(n * din, R, _LANE)

    af = A.reshape(-1).astype(jnp.float32)
    bf = Bp.reshape(-1).astype(jnp.float32)
    scale_a = jnp.reshape(jnp.asarray(scale, jnp.float32), (1,))

    kern = functools.partial(_tdvp_kernel, n=n, D=D, din=din, dout=dout,
                             n_groups=n_groups)

    out_shapes = (
        jax.ShapeDtypeStruct((n * dout, R, _LANE), jnp.float32),
        jax.ShapeDtypeStruct(((n - 1) * D, R, _LANE), jnp.float32),
        jax.ShapeDtypeStruct(((n - 1) * D, R, _LANE), jnp.float32),
    )

    y_t, al_t, ar_t = pl.pallas_call(
        kern,
        out_shape=out_shapes,
        grid=grid,
        in_specs=[
            pl.BlockSpec(memory_space=pltpu.MemorySpace.SMEM),   # scale
            pl.BlockSpec(memory_space=pltpu.MemorySpace.SMEM),   # A (flat)
            pl.BlockSpec(memory_space=pltpu.MemorySpace.SMEM),   # B (flat)
            pl.BlockSpec((n * din, RT, _LANE), lambda i: (0, i, 0)),
        ],
        out_specs=(
            pl.BlockSpec((n * dout, RT, _LANE), lambda i: (0, i, 0)),
            pl.BlockSpec(((n - 1) * D, RT, _LANE), lambda i: (0, i, 0)),
            pl.BlockSpec(((n - 1) * D, RT, _LANE), lambda i: (0, i, 0)),
        ),
        compiler_params=pltpu.CompilerParams(
            dimension_semantics=("parallel",)),
    )(scale_a, af, bf, x_t)

    y = jnp.transpose(y_t.reshape(n, dout, b_pad), (2, 0, 1))[:bsz]
    aleft = jnp.transpose(al_t.reshape(n - 1, D, b_pad), (2, 0, 1))[:bsz]
    aright = jnp.transpose(ar_t.reshape(n - 1, D, b_pad), (2, 0, 1))[:bsz]
    return y, aleft, aright


def tdvp_reference(x, A, Bp, scale):
    """Pure-JAX reference mirroring TDVP_V2.forward (default config)."""
    eps = 1e-6
    bsz, n, din = x.shape
    D = A.shape[1]
    xn = x / jnp.linalg.norm(x, axis=-1, keepdims=True)
    Ms = jnp.einsum('bnk,nlrk->nblr', xn, A)                 # [n, b, D, D]

    Lraw = [Ms[0][:, 0, :]]
    for k in range(1, n - 1):
        Lraw.append(jnp.einsum('bj,bjr->br', Lraw[-1], Ms[k]))
    aleft = [l / (jnp.linalg.norm(l, axis=-1, keepdims=True) + eps) for l in Lraw]

    Rraw = [None] * (n - 1)
    Rraw[n - 2] = Ms[n - 1][:, :, 0]
    for k in range(n - 3, -1, -1):
        Rraw[k] = jnp.einsum('blj,bj->bl', Ms[k + 1], Rraw[k + 1])
    aright = [r / (jnp.linalg.norm(r, axis=-1, keepdims=True) + eps) for r in Rraw]

    outs = []
    for i in range(n):
        if i == 0:
            H = jnp.einsum('ljk,bl->bjk', Bp[0, 0], aright[0])
        elif i == n - 1:
            H = jnp.einsum('bp,pjk->bjk', aleft[n - 2], Bp[n - 1, :, 0])
        else:
            H = jnp.einsum('bp,pljk,bl->bjk', aleft[i - 1], Bp[i], aright[i])
        nrm = jnp.linalg.norm(H.reshape(bsz, -1), axis=-1)[:, None, None] + eps
        H = scale * (H / nrm)
        H = jnp.where(jnp.isnan(H), 0.0, H)
        o = jnp.einsum('bjk,bk->bj', H, x[:, i, :])
        o = jnp.where(o >= 0, o, 1e-5 * o)
        outs.append(o)
    y = jnp.stack(outs, axis=1)
    y = jnp.abs(y)
    y = y / jnp.sum(y, axis=-1, keepdims=True)
    return y, jnp.stack(aleft, axis=1), jnp.stack(aright, axis=1)


if __name__ == "__main__":
    key = jax.random.PRNGKey(0)
    kx, ka, kb = jax.random.split(key, 3)

    batch, n, din, dout, D = 8, 8, 2, 2, 2

    # deterministic inputs / parameters (standard-normal params, as in __init__)
    x = jax.random.uniform(kx, (batch, n, din), dtype=jnp.float32) + 0.1
    A = jax.random.normal(ka, (n, D, D, din), dtype=jnp.float32)
    Bp = jax.random.normal(kb, (n, D, D, dout, din), dtype=jnp.float32)
    scale = jnp.float32(1.0)

    y, aleft, aright = tdvp_forward(x, A, Bp, scale)
    jax.block_until_ready((y, aleft, aright))

    y_r, al_r, ar_r = tdvp_reference(x, A, Bp, scale)
    np.testing.assert_allclose(np.asarray(y), np.asarray(y_r), rtol=1e-4, atol=1e-5)
    np.testing.assert_allclose(np.asarray(aleft), np.asarray(al_r), rtol=1e-4, atol=1e-5)
    np.testing.assert_allclose(np.asarray(aright), np.asarray(ar_r), rtol=1e-4, atol=1e-5)

    print("KERNEL_OK")
</pallas_src>

<mosaic_0001>
module attributes {stable_mosaic.version = 11 : i64} {
  func.func @_tdvp_kernel(%arg0: i32, %arg1: memref<1xf32, #tpu.memory_space<smem>>, %arg2: memref<64xf32, #tpu.memory_space<smem>>, %arg3: memref<128xf32, #tpu.memory_space<smem>>, %arg4: memref<16x8x128xf32, #tpu.memory_space<vmem>>, %arg5: memref<16x8x128xf32, #tpu.memory_space<vmem>>, %arg6: memref<14x8x128xf32, #tpu.memory_space<vmem>>, %arg7: memref<14x8x128xf32, #tpu.memory_space<vmem>>) attributes {dimension_semantics = [#tpu.dimension_semantics<parallel>], iteration_bounds = array<i64: 1>, scalar_prefetch = 0 : i64, scratch_operands = 0 : i64, tpu.core_type = #tpu.core_type<tc>, window_params = [{transform_indices = @transform_0, window_bounds = array<i64: 1>}, {transform_indices = @transform_1, window_bounds = array<i64: 64>}, {transform_indices = @transform_2, window_bounds = array<i64: 128>}, {transform_indices = @transform_3, window_bounds = array<i64: 16, 8, 128>}, {transform_indices = @transform_4, window_bounds = array<i64: 16, 8, 128>}, {transform_indices = @transform_5, window_bounds = array<i64: 14, 8, 128>}, {transform_indices = @transform_6, window_bounds = array<i64: 14, 8, 128>}]} {
    %c0 = arith.constant 0 : index
    %0 = memref.load %arg1[%c0] : memref<1xf32, #tpu.memory_space<smem>>
    %c0_0 = arith.constant 0 : index
    %c0_1 = arith.constant 0 : index
    %c0_2 = arith.constant 0 : index
    %1 = vector.load %arg4[%c0_0, %c0_1, %c0_2] : memref<16x8x128xf32, #tpu.memory_space<vmem>>, vector<1x8x128xf32>
    %2 = vector.shape_cast %1 : vector<1x8x128xf32> to vector<8x128xf32>
    %c1 = arith.constant 1 : index
    %c0_3 = arith.constant 0 : index
    %c0_4 = arith.constant 0 : index
    %3 = vector.load %arg4[%c1, %c0_3, %c0_4] : memref<16x8x128xf32, #tpu.memory_space<vmem>>, vector<1x8x128xf32>
    %4 = vector.shape_cast %3 : vector<1x8x128xf32> to vector<8x128xf32>
    %5 = arith.mulf %2, %2 : vector<8x128xf32>
    %6 = arith.mulf %4, %4 : vector<8x128xf32>
    %7 = arith.addf %5, %6 : vector<8x128xf32>
    %8 = math.rsqrt %7 : vector<8x128xf32>
    %9 = arith.mulf %2, %8 : vector<8x128xf32>
    %10 = arith.mulf %4, %8 : vector<8x128xf32>
    %c0_5 = arith.constant 0 : index
    %11 = memref.load %arg2[%c0_5] : memref<64xf32, #tpu.memory_space<smem>>
    %12 = vector.broadcast %11 : f32 to vector<8x128xf32>
    %13 = arith.mulf %12, %9 : vector<8x128xf32>
    %c1_6 = arith.constant 1 : index
    %14 = memref.load %arg2[%c1_6] : memref<64xf32, #tpu.memory_space<smem>>
    %15 = vector.broadcast %14 : f32 to vector<8x128xf32>
    %16 = arith.mulf %15, %10 : vector<8x128xf32>
    %17 = arith.addf %13, %16 : vector<8x128xf32>
    %c2 = arith.constant 2 : index
    %18 = memref.load %arg2[%c2] : memref<64xf32, #tpu.memory_space<smem>>
    %19 = vector.broadcast %18 : f32 to vector<8x128xf32>
    %20 = arith.mulf %19, %9 : vector<8x128xf32>
    %c3 = arith.constant 3 : index
    %21 = memref.load %arg2[%c3] : memref<64xf32, #tpu.memory_space<smem>>
    %22 = vector.broadcast %21 : f32 to vector<8x128xf32>
    %23 = arith.mulf %22, %10 : vector<8x128xf32>
    %24 = arith.addf %20, %23 : vector<8x128xf32>
    %25 = arith.mulf %17, %17 : vector<8x128xf32>
    %26 = arith.mulf %24, %24 : vector<8x128xf32>
    %27 = arith.addf %25, %26 : vector<8x128xf32>
    %28 = math.sqrt %27 : vector<8x128xf32>
    %cst = arith.constant 9.99999997E-7 : f32
    %29 = vector.broadcast %cst : f32 to vector<8x128xf32>
    %30 = arith.addf %28, %29 : vector<8x128xf32>
    %cst_7 = arith.constant 1.000000e+00 : f32
    %31 = vector.broadcast %cst_7 : f32 to vector<8x128xf32>
    %32 = arith.divf %31, %30 : vector<8x128xf32>
    %33 = arith.mulf %17, %32 : vector<8x128xf32>
    %34 = arith.mulf %24, %32 : vector<8x128xf32>
    %c0_8 = arith.constant 0 : index
    %c0_9 = arith.constant 0 : index
    %c0_10 = arith.constant 0 : index
    %35 = vector.load %arg6[%c0_8, %c0_9, %c0_10] : memref<14x8x128xf32, #tpu.memory_space<vmem>>, vector<1x8x128xf32>
    %36 = vector.shape_cast %35 : vector<1x8x128xf32> to vector<8x128xf32>
    %37 = vector.shape_cast %33 : vector<8x128xf32> to vector<1x8x128xf32>
    tpu.vector_store %arg6[%c0_8, %c0_9, %c0_10], %37 {strides = array<i32>} : memref<14x8x128xf32, #tpu.memory_space<vmem>>, vector<1x8x128xf32>,
    %c1_11 = arith.constant 1 : index
    %c0_12 = arith.constant 0 : index
    %c0_13 = arith.constant 0 : index
    %38 = vector.load %arg6[%c1_11, %c0_12, %c0_13] : memref<14x8x128xf32, #tpu.memory_space<vmem>>, vector<1x8x128xf32>
    %39 = vector.shape_cast %38 : vector<1x8x128xf32> to vector<8x128xf32>
    %40 = vector.shape_cast %34 : vector<8x128xf32> to vector<1x8x128xf32>
    tpu.vector_store %arg6[%c1_11, %c0_12, %c0_13], %40 {strides = array<i32>} : memref<14x8x128xf32, #tpu.memory_space<vmem>>, vector<1x8x128xf32>,
    %c2_14 = arith.constant 2 : index
    %c0_15 = arith.constant 0 : index
    %c0_16 = arith.constant 0 : index
    %41 = vector.load %arg4[%c2_14, %c0_15, %c0_16] : memref<16x8x128xf32, #tpu.memory_space<vmem>>, vector<1x8x128xf32>
    %42 = vector.shape_cast %41 : vector<1x8x128xf32> to vector<8x128xf32>
    %c3_17 = arith.constant 3 : index
    %c0_18 = arith.constant 0 : index
    %c0_19 = arith.constant 0 : index
    %43 = vector.load %arg4[%c3_17, %c0_18, %c0_19] : memref<16x8x128xf32, #tpu.memory_space<vmem>>, vector<1x8x128xf32>
    %44 = vector.shape_cast %43 : vector<1x8x128xf32> to vector<8x128xf32>
    %45 = arith.mulf %42, %42 : vector<8x128xf32>
    %46 = arith.mulf %44, %44 : vector<8x128xf32>
    %47 = arith.addf %45, %46 : vector<8x128xf32>
    %48 = math.rsqrt %47 : vector<8x128xf32>
    %49 = arith.mulf %42, %48 : vector<8x128xf32>
    %50 = arith.mulf %44, %48 : vector<8x128xf32>
    %c8 = arith.constant 8 : index
    %51 = memref.load %arg2[%c8] : memref<64xf32, #tpu.memory_space<smem>>
    %52 = vector.broadcast %51 : f32 to vector<8x128xf32>
    %53 = arith.mulf %52, %49 : vector<8x128xf32>
    %c9 = arith.constant 9 : index
    %54 = memref.load %arg2[%c9] : memref<64xf32, #tpu.memory_space<smem>>
    %55 = vector.broadcast %54 : f32 to vector<8x128xf32>
    %56 = arith.mulf %55, %50 : vector<8x128xf32>
    %57 = arith.addf %53, %56 : vector<8x128xf32>
    %c10 = arith.constant 10 : index
    %58 = memref.load %arg2[%c10] : memref<64xf32, #tpu.memory_space<smem>>
    %59 = vector.broadcast %58 : f32 to vector<8x128xf32>
    %60 = arith.mulf %59, %49 : vector<8x128xf32>
    %c11 = arith.constant 11 : index
    %61 = memref.load %arg2[%c11] : memref<64xf32, #tpu.memory_space<smem>>
    %62 = vector.broadcast %61 : f32 to vector<8x128xf32>
    %63 = arith.mulf %62, %50 : vector<8x128xf32>
    %64 = arith.addf %60, %63 : vector<8x128xf32>
    %c12 = arith.constant 12 : index
    %65 = memref.load %arg2[%c12] : memref<64xf32, #tpu.memory_space<smem>>
    %66 = vector.broadcast %65 : f32 to vector<8x128xf32>
    %67 = arith.mulf %66, %49 : vector<8x128xf32>
    %c13 = arith.constant 13 : index
    %68 = memref.load %arg2[%c13] : memref<64xf32, #tpu.memory_space<smem>>
    %69 = vector.broadcast %68 : f32 to vector<8x128xf32>
    %70 = arith.mulf %69, %50 : vector<8x128xf32>
    %71 = arith.addf %67, %70 : vector<8x128xf32>
    %c14 = arith.constant 14 : index
    %72 = memref.load %arg2[%c14] : memref<64xf32, #tpu.memory_space<smem>>
    %73 = vector.broadcast %72 : f32 to vector<8x128xf32>
    %74 = arith.mulf %73, %49 : vector<8x128xf32>
    %c15 = arith.constant 15 : index
    %75 = memref.load %arg2[%c15] : memref<64xf32, #tpu.memory_space<smem>>
    %76 = vector.broadcast %75 : f32 to vector<8x128xf32>
    %77 = arith.mulf %76, %50 : vector<8x128xf32>
    %78 = arith.addf %74, %77 : vector<8x128xf32>
    %79 = arith.mulf %17, %57 : vector<8x128xf32>
    %80 = arith.mulf %24, %71 : vector<8x128xf32>
    %81 = arith.addf %79, %80 : vector<8x128xf32>
    %82 = arith.mulf %17, %64 : vector<8x128xf32>
    %83 = arith.mulf %24, %78 : vector<8x128xf32>
    %84 = arith.addf %82, %83 : vector<8x128xf32>
    %85 = arith.mulf %81, %81 : vector<8x128xf32>
    %86 = arith.mulf %84, %84 : vector<8x128xf32>
    %87 = arith.addf %85, %86 : vector<8x128xf32>
    %88 = math.sqrt %87 : vector<8x128xf32>
    %cst_20 = arith.constant 9.99999997E-7 : f32
    %89 = vector.broadcast %cst_20 : f32 to vector<8x128xf32>
    %90 = arith.addf %88, %89 : vector<8x128xf32>
    %cst_21 = arith.constant 1.000000e+00 : f32
    %91 = vector.broadcast %cst_21 : f32 to vector<8x128xf32>
    %92 = arith.divf %91, %90 : vector<8x128xf32>
    %93 = arith.mulf %81, %92 : vector<8x128xf32>
    %94 = arith.mulf %84, %92 : vector<8x128xf32>
    %c2_22 = arith.constant 2 : index
    %c0_23 = arith.constant 0 : index
    %c0_24 = arith.constant 0 : index
    %95 = vector.load %arg6[%c2_22, %c0_23, %c0_24] : memref<14x8x128xf32, #tpu.memory_space<vmem>>, vector<1x8x128xf32>
    %96 = vector.shape_cast %95 : vector<1x8x128xf32> to vector<8x128xf32>
    %97 = vector.shape_cast %93 : vector<8x128xf32> to vector<1x8x128xf32>
    tpu.vector_store %arg6[%c2_22, %c0_23, %c0_24], %97 {strides = array<i32>} : memref<14x8x128xf32, #tpu.memory_space<vmem>>, vector<1x8x128xf32>,
    %c3_25 = arith.constant 3 : index
    %c0_26 = arith.constant 0 : index
    %c0_27 = arith.constant 0 : index
    %98 = vector.load %arg6[%c3_25, %c0_26, %c0_27] : memref<14x8x128xf32, #tpu.memory_space<vmem>>, vector<1x8x128xf32>
    %99 = vector.shape_cast %98 : vector<1x8x128xf32> to vector<8x128xf32>
    %100 = vector.shape_cast %94 : vector<8x128xf32> to vector<1x8x128xf32>
    tpu.vector_store %arg6[%c3_25, %c0_26, %c0_27], %100 {strides = array<i32>} : memref<14x8x128xf32, #tpu.memory_space<vmem>>, vector<1x8x128xf32>,
    %c4 = arith.constant 4 : index
    %c0_28 = arith.constant 0 : index
    %c0_29 = arith.constant 0 : index
    %101 = vector.load %arg4[%c4, %c0_28, %c0_29] : memref<16x8x128xf32, #tpu.memory_space<vmem>>, vector<1x8x128xf32>
    %102 = vector.shape_cast %101 : vector<1x8x128xf32> to vector<8x128xf32>
    %c5 = arith.constant 5 : index
    %c0_30 = arith.constant 0 : index
    %c0_31 = arith.constant 0 : index
    %103 = vector.load %arg4[%c5, %c0_30, %c0_31] : memref<16x8x128xf32, #tpu.memory_space<vmem>>, vector<1x8x128xf32>
    %104 = vector.shape_cast %103 : vector<1x8x128xf32> to vector<8x128xf32>
    %105 = arith.mulf %102, %102 : vector<8x128xf32>
    %106 = arith.mulf %104, %104 : vector<8x128xf32>
    %107 = arith.addf %105, %106 : vector<8x128xf32>
    %108 = math.rsqrt %107 : vector<8x128xf32>
    %109 = arith.mulf %102, %108 : vector<8x128xf32>
    %110 = arith.mulf %104, %108 : vector<8x128xf32>
    %c16 = arith.constant 16 : index
    %111 = memref.load %arg2[%c16] : memref<64xf32, #tpu.memory_space<smem>>
    %112 = vector.broadcast %111 : f32 to vector<8x128xf32>
    %113 = arith.mulf %112, %109 : vector<8x128xf32>
    %c17 = arith.constant 17 : index
    %114 = memref.load %arg2[%c17] : memref<64xf32, #tpu.memory_space<smem>>
    %115 = vector.broadcast %114 : f32 to vector<8x128xf32>
    %116 = arith.mulf %115, %110 : vector<8x128xf32>
    %117 = arith.addf %113, %116 : vector<8x128xf32>
    %c18 = arith.constant 18 : index
    %118 = memref.load %arg2[%c18] : memref<64xf32, #tpu.memory_space<smem>>
    %119 = vector.broadcast %118 : f32 to vector<8x128xf32>
    %120 = arith.mulf %119, %109 : vector<8x128xf32>
    %c19 = arith.constant 19 : index
    %121 = memref.load %arg2[%c19] : memref<64xf32, #tpu.memory_space<smem>>
    %122 = vector.broadcast %121 : f32 to vector<8x128xf32>
    %123 = arith.mulf %122, %110 : vector<8x128xf32>
    %124 = arith.addf %120, %123 : vector<8x128xf32>
    %c20 = arith.constant 20 : index
    %125 = memref.load %arg2[%c20] : memref<64xf32, #tpu.memory_space<smem>>
    %126 = vector.broadcast %125 : f32 to vector<8x128xf32>
    %127 = arith.mulf %126, %109 : vector<8x128xf32>
    %c21 = arith.constant 21 : index
    %128 = memref.load %arg2[%c21] : memref<64xf32, #tpu.memory_space<smem>>
    %129 = vector.broadcast %128 : f32 to vector<8x128xf32>
    %130 = arith.mulf %129, %110 : vector<8x128xf32>
    %131 = arith.addf %127, %130 : vector<8x128xf32>
    %c22 = arith.constant 22 : index
    %132 = memref.load %arg2[%c22] : memref<64xf32, #tpu.memory_space<smem>>
    %133 = vector.broadcast %132 : f32 to vector<8x128xf32>
    %134 = arith.mulf %133, %109 : vector<8x128xf32>
    %c23 = arith.constant 23 : index
    %135 = memref.load %arg2[%c23] : memref<64xf32, #tpu.memory_space<smem>>
    %136 = vector.broadcast %135 : f32 to vector<8x128xf32>
    %137 = arith.mulf %136, %110 : vector<8x128xf32>
    %138 = arith.addf %134, %137 : vector<8x128xf32>
    %139 = arith.mulf %81, %117 : vector<8x128xf32>
    %140 = arith.mulf %84, %131 : vector<8x128xf32>
    %141 = arith.addf %139, %140 : vector<8x128xf32>
    %142 = arith.mulf %81, %124 : vector<8x128xf32>
    %143 = arith.mulf %84, %138 : vector<8x128xf32>
    %144 = arith.addf %142, %143 : vector<8x128xf32>
    %145 = arith.mulf %141, %141 : vector<8x128xf32>
    %146 = arith.mulf %144, %144 : vector<8x128xf32>
    %147 = arith.addf %145, %146 : vector<8x128xf32>
    %148 = math.sqrt %147 : vector<8x128xf32>
    %cst_32 = arith.constant 9.99999997E-7 : f32
    %149 = vector.broadcast %cst_32 : f32 to vector<8x128xf32>
    %150 = arith.addf %148, %149 : vector<8x128xf32>
    %cst_33 = arith.constant 1.000000e+00 : f32
    %151 = vector.broadcast %cst_33 : f32 to vector<8x128xf32>
    %152 = arith.divf %151, %150 : vector<8x128xf32>
    %153 = arith.mulf %141, %152 : vector<8x128xf32>
    %154 = arith.mulf %144, %152 : vector<8x128xf32>
    %c4_34 = arith.constant 4 : index
    %c0_35 = arith.constant 0 : index
    %c0_36 = arith.constant 0 : index
    %155 = vector.load %arg6[%c4_34, %c0_35, %c0_36] : memref<14x8x128xf32, #tpu.memory_space<vmem>>, vector<1x8x128xf32>
    %156 = vector.shape_cast %155 : vector<1x8x128xf32> to vector<8x128xf32>
    %157 = vector.shape_cast %153 : vector<8x128xf32> to vector<1x8x128xf32>
    tpu.vector_store %arg6[%c4_34, %c0_35, %c0_36], %157 {strides = array<i32>} : memref<14x8x128xf32, #tpu.memory_space<vmem>>, vector<1x8x128xf32>,
    %c5_37 = arith.constant 5 : index
    %c0_38 = arith.constant 0 : index
    %c0_39 = arith.constant 0 : index
    %158 = vector.load %arg6[%c5_37, %c0_38, %c0_39] : memref<14x8x128xf32, #tpu.memory_space<vmem>>, vector<1x8x128xf32>
    %159 = vector.shape_cast %158 : vector<1x8x128xf32> to vector<8x128xf32>
    %160 = vector.shape_cast %154 : vector<8x128xf32> to vector<1x8x128xf32>
    tpu.vector_store %arg6[%c5_37, %c0_38, %c0_39], %160 {strides = array<i32>} : memref<14x8x128xf32, #tpu.memory_space<vmem>>, vector<1x8x128xf32>,
    %c6 = arith.constant 6 : index
    %c0_40 = arith.constant 0 : index
    %c0_41 = arith.constant 0 : index
    %161 = vector.load %arg4[%c6, %c0_40, %c0_41] : memref<16x8x128xf32, #tpu.memory_space<vmem>>, vector<1x8x128xf32>
    %162 = vector.shape_cast %161 : vector<1x8x128xf32> to vector<8x128xf32>
    %c7 = arith.constant 7 : index
    %c0_42 = arith.constant 0 : index
    %c0_43 = arith.constant 0 : index
    %163 = vector.load %arg4[%c7, %c0_42, %c0_43] : memref<16x8x128xf32, #tpu.memory_space<vmem>>, vector<1x8x128xf32>
    %164 = vector.shape_cast %163 : vector<1x8x128xf32> to vector<8x128xf32>
    %165 = arith.mulf %162, %162 : vector<8x128xf32>
    %166 = arith.mulf %164, %164 : vector<8x128xf32>
    %167 = arith.addf %165, %166 : vector<8x128xf32>
    %168 = math.rsqrt %167 : vector<8x128xf32>
    %169 = arith.mulf %162, %168 : vector<8x128xf32>
    %170 = arith.mulf %164, %168 : vector<8x128xf32>
    %c24 = arith.constant 24 : index
    %171 = memref.load %arg2[%c24] : memref<64xf32, #tpu.memory_space<smem>>
    %172 = vector.broadcast %171 : f32 to vector<8x128xf32>
    %173 = arith.mulf %172, %169 : vector<8x128xf32>
    %c25 = arith.constant 25 : index
    %174 = memref.load %arg2[%c25] : memref<64xf32, #tpu.memory_space<smem>>
    %175 = vector.broadcast %174 : f32 to vector<8x128xf32>
    %176 = arith.mulf %175, %170 : vector<8x128xf32>
    %177 = arith.addf %173, %176 : vector<8x128xf32>
    %c26 = arith.constant 26 : index
    %178 = memref.load %arg2[%c26] : memref<64xf32, #tpu.memory_space<smem>>
    %179 = vector.broadcast %178 : f32 to vector<8x128xf32>
    %180 = arith.mulf %179, %169 : vector<8x128xf32>
    %c27 = arith.constant 27 : index
    %181 = memref.load %arg2[%c27] : memref<64xf32, #tpu.memory_space<smem>>
    %182 = vector.broadcast %181 : f32 to vector<8x128xf32>
    %183 = arith.mulf %182, %170 : vector<8x128xf32>
    %184 = arith.addf %180, %183 : vector<8x128xf32>
    %c28 = arith.constant 28 : index
    %185 = memref.load %arg2[%c28] : memref<64xf32, #tpu.memory_space<smem>>
    %186 = vector.broadcast %185 : f32 to vector<8x128xf32>
    %187 = arith.mulf %186, %169 : vector<8x128xf32>
    %c29 = arith.constant 29 : index
    %188 = memref.load %arg2[%c29] : memref<64xf32, #tpu.memory_space<smem>>
    %189 = vector.broadcast %188 : f32 to vector<8x128xf32>
    %190 = arith.mulf %189, %170 : vector<8x128xf32>
    %191 = arith.addf %187, %190 : vector<8x128xf32>
    %c30 = arith.constant 30 : index
    %192 = memref.load %arg2[%c30] : memref<64xf32, #tpu.memory_space<smem>>
    %193 = vector.broadcast %192 : f32 to vector<8x128xf32>
    %194 = arith.mulf %193, %169 : vector<8x128xf32>
    %c31 = arith.constant 31 : index
    %195 = memref.load %arg2[%c31] : memref<64xf32, #tpu.memory_space<smem>>
    %196 = vector.broadcast %195 : f32 to vector<8x128xf32>
    %197 = arith.mulf %196, %170 : vector<8x128xf32>
    %198 = arith.addf %194, %197 : vector<8x128xf32>
    %199 = arith.mulf %141, %177 : vector<8x128xf32>
    %200 = arith.mulf %144, %191 : vector<8x128xf32>
    %201 = arith.addf %199, %200 : vector<8x128xf32>
    %202 = arith.mulf %141, %184 : vector<8x128xf32>
    %203 = arith.mulf %144, %198 : vector<8x128xf32>
    %204 = arith.addf %202, %203 : vector<8x128xf32>
    %205 = arith.mulf %201, %201 : vector<8x128xf32>
    %206 = arith.mulf %204, %204 : vector<8x128xf32>
    %207 = arith.addf %205, %206 : vector<8x128xf32>
    %208 = math.sqrt %207 : vector<8x128xf32>
    %cst_44 = arith.constant 9.99999997E-7 : f32
    %209 = vector.broadcast %cst_44 : f32 to vector<8x128xf32>
    %210 = arith.addf %208, %209 : vector<8x128xf32>
    %cst_45 = arith.constant 1.000000e+00 : f32
    %211 = vector.broadcast %cst_45 : f32 to vector<8x128xf32>
    %212 = arith.divf %211, %210 : vector<8x128xf32>
    %213 = arith.mulf %201, %212 : vector<8x128xf32>
    %214 = arith.mulf %204, %212 : vector<8x128xf32>
    %c6_46 = arith.constant 6 : index
    %c0_47 = arith.constant 0 : index
    %c0_48 = arith.constant 0 : index
    %215 = vector.load %arg6[%c6_46, %c0_47, %c0_48] : memref<14x8x128xf32, #tpu.memory_space<vmem>>, vector<1x8x128xf32>
    %216 = vector.shape_cast %215 : vector<1x8x128xf32> to vector<8x128xf32>
    %217 = vector.shape_cast %213 : vector<8x128xf32> to vector<1x8x128xf32>
    tpu.vector_store %arg6[%c6_46, %c0_47, %c0_48], %217 {strides = array<i32>} : memref<14x8x128xf32, #tpu.memory_space<vmem>>, vector<1x8x128xf32>,
    %c7_49 = arith.constant 7 : index
    %c0_50 = arith.constant 0 : index
    %c0_51 = arith.constant 0 : index
    %218 = vector.load %arg6[%c7_49, %c0_50, %c0_51] : memref<14x8x128xf32, #tpu.memory_space<vmem>>, vector<1x8x128xf32>
    %219 = vector.shape_cast %218 : vector<1x8x128xf32> to vector<8x128xf32>
    %220 = vector.shape_cast %214 : vector<8x128xf32> to vector<1x8x128xf32>
    tpu.vector_store %arg6[%c7_49, %c0_50, %c0_51], %220 {strides = array<i32>} : memref<14x8x128xf32, #tpu.memory_space<vmem>>, vector<1x8x128xf32>,
    %c8_52 = arith.constant 8 : index
    %c0_53 = arith.constant 0 : index
    %c0_54 = arith.constant 0 : index
    %221 = vector.load %arg4[%c8_52, %c0_53, %c0_54] : memref<16x8x128xf32, #tpu.memory_space<vmem>>, vector<1x8x128xf32>
    %222 = vector.shape_cast %221 : vector<1x8x128xf32> to vector<8x128xf32>
    %c9_55 = arith.constant 9 : index
    %c0_56 = arith.constant 0 : index
    %c0_57 = arith.constant 0 : index
    %223 = vector.load %arg4[%c9_55, %c0_56, %c0_57] : memref<16x8x128xf32, #tpu.memory_space<vmem>>, vector<1x8x128xf32>
    %224 = vector.shape_cast %223 : vector<1x8x128xf32> to vector<8x128xf32>
    %225 = arith.mulf %222, %222 : vector<8x128xf32>
    %226 = arith.mulf %224, %224 : vector<8x128xf32>
    %227 = arith.addf %225, %226 : vector<8x128xf32>
    %228 = math.rsqrt %227 : vector<8x128xf32>
    %229 = arith.mulf %222, %228 : vector<8x128xf32>
    %230 = arith.mulf %224, %228 : vector<8x128xf32>
    %c32 = arith.constant 32 : index
    %231 = memref.load %arg2[%c32] : memref<64xf32, #tpu.memory_space<smem>>
    %232 = vector.broadcast %231 : f32 to vector<8x128xf32>
    %233 = arith.mulf %232, %229 : vector<8x128xf32>
    %c33 = arith.constant 33 : index
    %234 = memref.load %arg2[%c33] : memref<64xf32, #tpu.memory_space<smem>>
    %235 = vector.broadcast %234 : f32 to vector<8x128xf32>
    %236 = arith.mulf %235, %230 : vector<8x128xf32>
    %237 = arith.addf %233, %236 : vector<8x128xf32>
    %c34 = arith.constant 34 : index
    %238 = memref.load %arg2[%c34] : memref<64xf32, #tpu.memory_space<smem>>
    %239 = vector.broadcast %238 : f32 to vector<8x128xf32>
    %240 = arith.mulf %239, %229 : vector<8x128xf32>
    %c35 = arith.constant 35 : index
    %241 = memref.load %arg2[%c35] : memref<64xf32, #tpu.memory_space<smem>>
    %242 = vector.broadcast %241 : f32 to vector<8x128xf32>
    %243 = arith.mulf %242, %230 : vector<8x128xf32>
    %244 = arith.addf %240, %243 : vector<8x128xf32>
    %c36 = arith.constant 36 : index
    %245 = memref.load %arg2[%c36] : memref<64xf32, #tpu.memory_space<smem>>
    %246 = vector.broadcast %245 : f32 to vector<8x128xf32>
    %247 = arith.mulf %246, %229 : vector<8x128xf32>
    %c37 = arith.constant 37 : index
    %248 = memref.load %arg2[%c37] : memref<64xf32, #tpu.memory_space<smem>>
    %249 = vector.broadcast %248 : f32 to vector<8x128xf32>
    %250 = arith.mulf %249, %230 : vector<8x128xf32>
    %251 = arith.addf %247, %250 : vector<8x128xf32>
    %c38 = arith.constant 38 : index
    %252 = memref.load %arg2[%c38] : memref<64xf32, #tpu.memory_space<smem>>
    %253 = vector.broadcast %252 : f32 to vector<8x128xf32>
    %254 = arith.mulf %253, %229 : vector<8x128xf32>
    %c39 = arith.constant 39 : index
    %255 = memref.load %arg2[%c39] : memref<64xf32, #tpu.memory_space<smem>>
    %256 = vector.broadcast %255 : f32 to vector<8x128xf32>
    %257 = arith.mulf %256, %230 : vector<8x128xf32>
    %258 = arith.addf %254, %257 : vector<8x128xf32>
    %259 = arith.mulf %201, %237 : vector<8x128xf32>
    %260 = arith.mulf %204, %251 : vector<8x128xf32>
    %261 = arith.addf %259, %260 : vector<8x128xf32>
    %262 = arith.mulf %201, %244 : vector<8x128xf32>
    %263 = arith.mulf %204, %258 : vector<8x128xf32>
    %264 = arith.addf %262, %263 : vector<8x128xf32>
    %265 = arith.mulf %261, %261 : vector<8x128xf32>
    %266 = arith.mulf %264, %264 : vector<8x128xf32>
    %267 = arith.addf %265, %266 : vector<8x128xf32>
    %268 = math.sqrt %267 : vector<8x128xf32>
    %cst_58 = arith.constant 9.99999997E-7 : f32
    %269 = vector.broadcast %cst_58 : f32 to vector<8x128xf32>
    %270 = arith.addf %268, %269 : vector<8x128xf32>
    %cst_59 = arith.constant 1.000000e+00 : f32
    %271 = vector.broadcast %cst_59 : f32 to vector<8x128xf32>
    %272 = arith.divf %271, %270 : vector<8x128xf32>
    %273 = arith.mulf %261, %272 : vector<8x128xf32>
    %274 = arith.mulf %264, %272 : vector<8x128xf32>
    %c8_60 = arith.constant 8 : index
    %c0_61 = arith.constant 0 : index
    %c0_62 = arith.constant 0 : index
    %275 = vector.load %arg6[%c8_60, %c0_61, %c0_62] : memref<14x8x128xf32, #tpu.memory_space<vmem>>, vector<1x8x128xf32>
    %276 = vector.shape_cast %275 : vector<1x8x128xf32> to vector<8x128xf32>
    %277 = vector.shape_cast %273 : vector<8x128xf32> to vector<1x8x128xf32>
    tpu.vector_store %arg6[%c8_60, %c0_61, %c0_62], %277 {strides = array<i32>} : memref<14x8x128xf32, #tpu.memory_space<vmem>>, vector<1x8x128xf32>,
    %c9_63 = arith.constant 9 : index
    %c0_64 = arith.constant 0 : index
    %c0_65 = arith.constant 0 : index
    %278 = vector.load %arg6[%c9_63, %c0_64, %c0_65] : memref<14x8x128xf32, #tpu.memory_space<vmem>>, vector<1x8x128xf32>
    %279 = vector.shape_cast %278 : vector<1x8x128xf32> to vector<8x128xf32>
    %280 = vector.shape_cast %274 : vector<8x128xf32> to vector<1x8x128xf32>
    tpu.vector_store %arg6[%c9_63, %c0_64, %c0_65], %280 {strides = array<i32>} : memref<14x8x128xf32, #tpu.memory_space<vmem>>, vector<1x8x128xf32>,
    %c10_66 = arith.constant 10 : index
    %c0_67 = arith.constant 0 : index
    %c0_68 = arith.constant 0 : index
    %281 = vector.load %arg4[%c10_66, %c0_67, %c0_68] : memref<16x8x128xf32, #tpu.memory_space<vmem>>, vector<1x8x128xf32>
    %282 = vector.shape_cast %281 : vector<1x8x128xf32> to vector<8x128xf32>
    %c11_69 = arith.constant 11 : index
    %c0_70 = arith.constant 0 : index
    %c0_71 = arith.constant 0 : index
    %283 = vector.load %arg4[%c11_69, %c0_70, %c0_71] : memref<16x8x128xf32, #tpu.memory_space<vmem>>, vector<1x8x128xf32>
    %284 = vector.shape_cast %283 : vector<1x8x128xf32> to vector<8x128xf32>
    %285 = arith.mulf %282, %282 : vector<8x128xf32>
    %286 = arith.mulf %284, %284 : vector<8x128xf32>
    %287 = arith.addf %285, %286 : vector<8x128xf32>
    %288 = math.rsqrt %287 : vector<8x128xf32>
    %289 = arith.mulf %282, %288 : vector<8x128xf32>
    %290 = arith.mulf %284, %288 : vector<8x128xf32>
    %c40 = arith.constant 40 : index
    %291 = memref.load %arg2[%c40] : memref<64xf32, #tpu.memory_space<smem>>
    %292 = vector.broadcast %291 : f32 to vector<8x128xf32>
    %293 = arith.mulf %292, %289 : vector<8x128xf32>
    %c41 = arith.constant 41 : index
    %294 = memref.load %arg2[%c41] : memref<64xf32, #tpu.memory_space<smem>>
    %295 = vector.broadcast %294 : f32 to vector<8x128xf32>
    %296 = arith.mulf %295, %290 : vector<8x128xf32>
    %297 = arith.addf %293, %296 : vector<8x128xf32>
    %c42 = arith.constant 42 : index
    %298 = memref.load %arg2[%c42] : memref<64xf32, #tpu.memory_space<smem>>
    %299 = vector.broadcast %298 : f32 to vector<8x128xf32>
    %300 = arith.mulf %299, %289 : vector<8x128xf32>
    %c43 = arith.constant 43 : index
    %301 = memref.load %arg2[%c43] : memref<64xf32, #tpu.memory_space<smem>>
    %302 = vector.broadcast %301 : f32 to vector<8x128xf32>
    %303 = arith.mulf %302, %290 : vector<8x128xf32>
    %304 = arith.addf %300, %303 : vector<8x128xf32>
    %c44 = arith.constant 44 : index
    %305 = memref.load %arg2[%c44] : memref<64xf32, #tpu.memory_space<smem>>
    %306 = vector.broadcast %305 : f32 to vector<8x128xf32>
    %307 = arith.mulf %306, %289 : vector<8x128xf32>
    %c45 = arith.constant 45 : index
    %308 = memref.load %arg2[%c45] : memref<64xf32, #tpu.memory_space<smem>>
    %309 = vector.broadcast %308 : f32 to vector<8x128xf32>
    %310 = arith.mulf %309, %290 : vector<8x128xf32>
    %311 = arith.addf %307, %310 : vector<8x128xf32>
    %c46 = arith.constant 46 : index
    %312 = memref.load %arg2[%c46] : memref<64xf32, #tpu.memory_space<smem>>
    %313 = vector.broadcast %312 : f32 to vector<8x128xf32>
    %314 = arith.mulf %313, %289 : vector<8x128xf32>
    %c47 = arith.constant 47 : index
    %315 = memref.load %arg2[%c47] : memref<64xf32, #tpu.memory_space<smem>>
    %316 = vector.broadcast %315 : f32 to vector<8x128xf32>
    %317 = arith.mulf %316, %290 : vector<8x128xf32>
    %318 = arith.addf %314, %317 : vector<8x128xf32>
    %319 = arith.mulf %261, %297 : vector<8x128xf32>
    %320 = arith.mulf %264, %311 : vector<8x128xf32>
    %321 = arith.addf %319, %320 : vector<8x128xf32>
    %322 = arith.mulf %261, %304 : vector<8x128xf32>
    %323 = arith.mulf %264, %318 : vector<8x128xf32>
    %324 = arith.addf %322, %323 : vector<8x128xf32>
    %325 = arith.mulf %321, %321 : vector<8x128xf32>
    %326 = arith.mulf %324, %324 : vector<8x128xf32>
    %327 = arith.addf %325, %326 : vector<8x128xf32>
    %328 = math.sqrt %327 : vector<8x128xf32>
    %cst_72 = arith.constant 9.99999997E-7 : f32
    %329 = vector.broadcast %cst_72 : f32 to vector<8x128xf32>
    %330 = arith.addf %328, %329 : vector<8x128xf32>
    %cst_73 = arith.constant 1.000000e+00 : f32
    %331 = vector.broadcast %cst_73 : f32 to vector<8x128xf32>
    %332 = arith.divf %331, %330 : vector<8x128xf32>
    %333 = arith.mulf %321, %332 : vector<8x128xf32>
    %334 = arith.mulf %324, %332 : vector<8x128xf32>
    %c10_74 = arith.constant 10 : index
    %c0_75 = arith.constant 0 : index
    %c0_76 = arith.constant 0 : index
    %335 = vector.load %arg6[%c10_74, %c0_75, %c0_76] : memref<14x8x128xf32, #tpu.memory_space<vmem>>, vector<1x8x128xf32>
    %336 = vector.shape_cast %335 : vector<1x8x128xf32> to vector<8x128xf32>
    %337 = vector.shape_cast %333 : vector<8x128xf32> to vector<1x8x128xf32>
    tpu.vector_store %arg6[%c10_74, %c0_75, %c0_76], %337 {strides = array<i32>} : memref<14x8x128xf32, #tpu.memory_space<vmem>>, vector<1x8x128xf32>,
    %c11_77 = arith.constant 11 : index
    %c0_78 = arith.constant 0 : index
    %c0_79 = arith.constant 0 : index
    %338 = vector.load %arg6[%c11_77, %c0_78, %c0_79] : memref<14x8x128xf32, #tpu.memory_space<vmem>>, vector<1x8x128xf32>
    %339 = vector.shape_cast %338 : vector<1x8x128xf32> to vector<8x128xf32>
    %340 = vector.shape_cast %334 : vector<8x128xf32> to vector<1x8x128xf32>
    tpu.vector_store %arg6[%c11_77, %c0_78, %c0_79], %340 {strides = array<i32>} : memref<14x8x128xf32, #tpu.memory_space<vmem>>, vector<1x8x128xf32>,
    %c12_80 = arith.constant 12 : index
    %c0_81 = arith.constant 0 : index
    %c0_82 = arith.constant 0 : index
    %341 = vector.load %arg4[%c12_80, %c0_81, %c0_82] : memref<16x8x128xf32, #tpu.memory_space<vmem>>, vector<1x8x128xf32>
    %342 = vector.shape_cast %341 : vector<1x8x128xf32> to vector<8x128xf32>
    %c13_83 = arith.constant 13 : index
    %c0_84 = arith.constant 0 : index
    %c0_85 = arith.constant 0 : index
    %343 = vector.load %arg4[%c13_83, %c0_84, %c0_85] : memref<16x8x128xf32, #tpu.memory_space<vmem>>, vector<1x8x128xf32>
    %344 = vector.shape_cast %343 : vector<1x8x128xf32> to vector<8x128xf32>
    %345 = arith.mulf %342, %342 : vector<8x128xf32>
    %346 = arith.mulf %344, %344 : vector<8x128xf32>
    %347 = arith.addf %345, %346 : vector<8x128xf32>
    %348 = math.rsqrt %347 : vector<8x128xf32>
    %349 = arith.mulf %342, %348 : vector<8x128xf32>
    %350 = arith.mulf %344, %348 : vector<8x128xf32>
    %c48 = arith.constant 48 : index
    %351 = memref.load %arg2[%c48] : memref<64xf32, #tpu.memory_space<smem>>
    %352 = vector.broadcast %351 : f32 to vector<8x128xf32>
    %353 = arith.mulf %352, %349 : vector<8x128xf32>
    %c49 = arith.constant 49 : index
    %354 = memref.load %arg2[%c49] : memref<64xf32, #tpu.memory_space<smem>>
    %355 = vector.broadcast %354 : f32 to vector<8x128xf32>
    %356 = arith.mulf %355, %350 : vector<8x128xf32>
    %357 = arith.addf %353, %356 : vector<8x128xf32>
    %c50 = arith.constant 50 : index
    %358 = memref.load %arg2[%c50] : memref<64xf32, #tpu.memory_space<smem>>
    %359 = vector.broadcast %358 : f32 to vector<8x128xf32>
    %360 = arith.mulf %359, %349 : vector<8x128xf32>
    %c51 = arith.constant 51 : index
    %361 = memref.load %arg2[%c51] : memref<64xf32, #tpu.memory_space<smem>>
    %362 = vector.broadcast %361 : f32 to vector<8x128xf32>
    %363 = arith.mulf %362, %350 : vector<8x128xf32>
    %364 = arith.addf %360, %363 : vector<8x128xf32>
    %c52 = arith.constant 52 : index
    %365 = memref.load %arg2[%c52] : memref<64xf32, #tpu.memory_space<smem>>
    %366 = vector.broadcast %365 : f32 to vector<8x128xf32>
    %367 = arith.mulf %366, %349 : vector<8x128xf32>
    %c53 = arith.constant 53 : index
    %368 = memref.load %arg2[%c53] : memref<64xf32, #tpu.memory_space<smem>>
    %369 = vector.broadcast %368 : f32 to vector<8x128xf32>
    %370 = arith.mulf %369, %350 : vector<8x128xf32>
    %371 = arith.addf %367, %370 : vector<8x128xf32>
    %c54 = arith.constant 54 : index
    %372 = memref.load %arg2[%c54] : memref<64xf32, #tpu.memory_space<smem>>
    %373 = vector.broadcast %372 : f32 to vector<8x128xf32>
    %374 = arith.mulf %373, %349 : vector<8x128xf32>
    %c55 = arith.constant 55 : index
    %375 = memref.load %arg2[%c55] : memref<64xf32, #tpu.memory_space<smem>>
    %376 = vector.broadcast %375 : f32 to vector<8x128xf32>
    %377 = arith.mulf %376, %350 : vector<8x128xf32>
    %378 = arith.addf %374, %377 : vector<8x128xf32>
    %379 = arith.mulf %321, %357 : vector<8x128xf32>
    %380 = arith.mulf %324, %371 : vector<8x128xf32>
    %381 = arith.addf %379, %380 : vector<8x128xf32>
    %382 = arith.mulf %321, %364 : vector<8x128xf32>
    %383 = arith.mulf %324, %378 : vector<8x128xf32>
    %384 = arith.addf %382, %383 : vector<8x128xf32>
    %385 = arith.mulf %381, %381 : vector<8x128xf32>
    %386 = arith.mulf %384, %384 : vector<8x128xf32>
    %387 = arith.addf %385, %386 : vector<8x128xf32>
    %388 = math.sqrt %387 : vector<8x128xf32>
    %cst_86 = arith.constant 9.99999997E-7 : f32
    %389 = vector.broadcast %cst_86 : f32 to vector<8x128xf32>
    %390 = arith.addf %388, %389 : vector<8x128xf32>
    %cst_87 = arith.constant 1.000000e+00 : f32
    %391 = vector.broadcast %cst_87 : f32 to vector<8x128xf32>
    %392 = arith.divf %391, %390 : vector<8x128xf32>
    %393 = arith.mulf %381, %392 : vector<8x128xf32>
    %394 = arith.mulf %384, %392 : vector<8x128xf32>
    %c12_88 = arith.constant 12 : index
    %c0_89 = arith.constant 0 : index
    %c0_90 = arith.constant 0 : index
    %395 = vector.load %arg6[%c12_88, %c0_89, %c0_90] : memref<14x8x128xf32, #tpu.memory_space<vmem>>, vector<1x8x128xf32>
    %396 = vector.shape_cast %395 : vector<1x8x128xf32> to vector<8x128xf32>
    %397 = vector.shape_cast %393 : vector<8x128xf32> to vector<1x8x128xf32>
    tpu.vector_store %arg6[%c12_88, %c0_89, %c0_90], %397 {strides = array<i32>} : memref<14x8x128xf32, #tpu.memory_space<vmem>>, vector<1x8x128xf32>,
    %c13_91 = arith.constant 13 : index
    %c0_92 = arith.constant 0 : index
    %c0_93 = arith.constant 0 : index
    %398 = vector.load %arg6[%c13_91, %c0_92, %c0_93] : memref<14x8x128xf32, #tpu.memory_space<vmem>>, vector<1x8x128xf32>
    %399 = vector.shape_cast %398 : vector<1x8x128xf32> to vector<8x128xf32>
    %400 = vector.shape_cast %394 : vector<8x128xf32> to vector<1x8x128xf32>
    tpu.vector_store %arg6[%c13_91, %c0_92, %c0_93], %400 {strides = array<i32>} : memref<14x8x128xf32, #tpu.memory_space<vmem>>, vector<1x8x128xf32>,
    %c14_94 = arith.constant 14 : index
    %c0_95 = arith.constant 0 : index
    %c0_96 = arith.constant 0 : index
    %401 = vector.load %arg4[%c14_94, %c0_95, %c0_96] : memref<16x8x128xf32, #tpu.memory_space<vmem>>, vector<1x8x128xf32>
    %402 = vector.shape_cast %401 : vector<1x8x128xf32> to vector<8x128xf32>
    %c15_97 = arith.constant 15 : index
    %c0_98 = arith.constant 0 : index
    %c0_99 = arith.constant 0 : index
    %403 = vector.load %arg4[%c15_97, %c0_98, %c0_99] : memref<16x8x128xf32, #tpu.memory_space<vmem>>, vector<1x8x128xf32>
    %404 = vector.shape_cast %403 : vector<1x8x128xf32> to vector<8x128xf32>
    %c12_100 = arith.constant 12 : index
    %c0_101 = arith.constant 0 : index
    %c0_102 = arith.constant 0 : index
    %405 = vector.load %arg6[%c12_100, %c0_101, %c0_102] : memref<14x8x128xf32, #tpu.memory_space<vmem>>, vector<1x8x128xf32>
    %406 = vector.shape_cast %405 : vector<1x8x128xf32> to vector<8x128xf32>
    %c13_103 = arith.constant 13 : index
    %c0_104 = arith.constant 0 : index
    %c0_105 = arith.constant 0 : index
    %407 = vector.load %arg6[%c13_103, %c0_104, %c0_105] : memref<14x8x128xf32, #tpu.memory_space<vmem>>, vector<1x8x128xf32>
    %408 = vector.shape_cast %407 : vector<1x8x128xf32> to vector<8x128xf32>
    %c112 = arith.constant 112 : index
    %409 = memref.load %arg3[%c112] : memref<128xf32, #tpu.memory_space<smem>>
    %410 = vector.broadcast %409 : f32 to vector<8x128xf32>
    %411 = arith.mulf %410, %406 : vector<8x128xf32>
    %c120 = arith.constant 120 : index
    %412 = memref.load %arg3[%c120] : memref<128xf32, #tpu.memory_space<smem>>
    %413 = vector.broadcast %412 : f32 to vector<8x128xf32>
    %414 = arith.mulf %413, %408 : vector<8x128xf32>
    %415 = arith.addf %411, %414 : vector<8x128xf32>
    %c113 = arith.constant 113 : index
    %416 = memref.load %arg3[%c113] : memref<128xf32, #tpu.memory_space<smem>>
    %417 = vector.broadcast %416 : f32 to vector<8x128xf32>
    %418 = arith.mulf %417, %406 : vector<8x128xf32>
    %c121 = arith.constant 121 : index
    %419 = memref.load %arg3[%c121] : memref<128xf32, #tpu.memory_space<smem>>
    %420 = vector.broadcast %419 : f32 to vector<8x128xf32>
    %421 = arith.mulf %420, %408 : vector<8x128xf32>
    %422 = arith.addf %418, %421 : vector<8x128xf32>
    %c114 = arith.constant 114 : index
    %423 = memref.load %arg3[%c114] : memref<128xf32, #tpu.memory_space<smem>>
    %424 = vector.broadcast %423 : f32 to vector<8x128xf32>
    %425 = arith.mulf %424, %406 : vector<8x128xf32>
    %c122 = arith.constant 122 : index
    %426 = memref.load %arg3[%c122] : memref<128xf32, #tpu.memory_space<smem>>
    %427 = vector.broadcast %426 : f32 to vector<8x128xf32>
    %428 = arith.mulf %427, %408 : vector<8x128xf32>
    %429 = arith.addf %425, %428 : vector<8x128xf32>
    %c115 = arith.constant 115 : index
    %430 = memref.load %arg3[%c115] : memref<128xf32, #tpu.memory_space<smem>>
    %431 = vector.broadcast %430 : f32 to vector<8x128xf32>
    %432 = arith.mulf %431, %406 : vector<8x128xf32>
    %c123 = arith.constant 123 : index
    %433 = memref.load %arg3[%c123] : memref<128xf32, #tpu.memory_space<smem>>
    %434 = vector.broadcast %433 : f32 to vector<8x128xf32>
    %435 = arith.mulf %434, %408 : vector<8x128xf32>
    %436 = arith.addf %432, %435 : vector<8x128xf32>
    %437 = arith.mulf %415, %415 : vector<8x128xf32>
    %438 = arith.mulf %422, %422 : vector<8x128xf32>
    %439 = arith.mulf %429, %429 : vector<8x128xf32>
    %440 = arith.mulf %436, %436 : vector<8x128xf32>
    %441 = arith.addf %437, %438 : vector<8x128xf32>
    %442 = arith.addf %441, %439 : vector<8x128xf32>
    %443 = arith.addf %442, %440 : vector<8x128xf32>
    %444 = math.sqrt %443 : vector<8x128xf32>
    %cst_106 = arith.constant 9.99999997E-7 : f32
    %445 = vector.broadcast %cst_106 : f32 to vector<8x128xf32>
    %446 = arith.addf %444, %445 : vector<8x128xf32>
    %447 = vector.broadcast %0 : f32 to vector<8x128xf32>
    %448 = arith.divf %447, %446 : vector<8x128xf32>
    %449 = arith.mulf %415, %448 : vector<8x128xf32>
    %450 = arith.cmpf one, %449, %449 : vector<8x128xf32>
    %cst_107 = arith.constant 0.000000e+00 : f32
    %451 = vector.broadcast %cst_107 : f32 to vector<8x128xf32>
    %452 = arith.select %450, %451, %449 : vector<8x128xi1>, vector<8x128xf32>
    %453 = arith.mulf %452, %402 : vector<8x128xf32>
    %454 = arith.mulf %422, %448 : vector<8x128xf32>
    %455 = arith.cmpf one, %454, %454 : vector<8x128xf32>
    %cst_108 = arith.constant 0.000000e+00 : f32
    %456 = vector.broadcast %cst_108 : f32 to vector<8x128xf32>
    %457 = arith.select %455, %456, %454 : vector<8x128xi1>, vector<8x128xf32>
    %458 = arith.mulf %457, %404 : vector<8x128xf32>
    %459 = arith.addf %453, %458 : vector<8x128xf32>
    %cst_109 = arith.constant 0.000000e+00 : f32
    %460 = vector.broadcast %cst_109 : f32 to vector<8x128xf32>
    %461 = arith.cmpf oge, %459, %460 : vector<8x128xf32>
    %cst_110 = arith.constant 9.99999974E-6 : f32
    %462 = vector.broadcast %cst_110 : f32 to vector<8x128xf32>
    %463 = arith.mulf %462, %459 : vector<8x128xf32>
    %464 = arith.select %461, %459, %463 : vector<8x128xi1>, vector<8x128xf32>
    %465 = math.absf %464 : vector<8x128xf32>
    %466 = arith.mulf %429, %448 : vector<8x128xf32>
    %467 = arith.cmpf one, %466, %466 : vector<8x128xf32>
    %cst_111 = arith.constant 0.000000e+00 : f32
    %468 = vector.broadcast %cst_111 : f32 to vector<8x128xf32>
    %469 = arith.select %467, %468, %466 : vector<8x128xi1>, vector<8x128xf32>
    %470 = arith.mulf %469, %402 : vector<8x128xf32>
    %471 = arith.mulf %436, %448 : vector<8x128xf32>
    %472 = arith.cmpf one, %471, %471 : vector<8x128xf32>
    %cst_112 = arith.constant 0.000000e+00 : f32
    %473 = vector.broadcast %cst_112 : f32 to vector<8x128xf32>
    %474 = arith.select %472, %473, %471 : vector<8x128xi1>, vector<8x128xf32>
    %475 = arith.mulf %474, %404 : vector<8x128xf32>
    %476 = arith.addf %470, %475 : vector<8x128xf32>
    %cst_113 = arith.constant 0.000000e+00 : f32
    %477 = vector.broadcast %cst_113 : f32 to vector<8x128xf32>
    %478 = arith.cmpf oge, %476, %477 : vector<8x128xf32>
    %cst_114 = arith.constant 9.99999974E-6 : f32
    %479 = vector.broadcast %cst_114 : f32 to vector<8x128xf32>
    %480 = arith.mulf %479, %476 : vector<8x128xf32>
    %481 = arith.select %478, %476, %480 : vector<8x128xi1>, vector<8x128xf32>
    %482 = math.absf %481 : vector<8x128xf32>
    %483 = arith.addf %465, %482 : vector<8x128xf32>
    %cst_115 = arith.constant 1.000000e+00 : f32
    %484 = vector.broadcast %cst_115 : f32 to vector<8x128xf32>
    %485 = arith.divf %484, %483 : vector<8x128xf32>
    %486 = arith.mulf %465, %485 : vector<8x128xf32>
    %c14_116 = arith.constant 14 : index
    %c0_117 = arith.constant 0 : index
    %c0_118 = arith.constant 0 : index
    %487 = vector.load %arg5[%c14_116, %c0_117, %c0_118] : memref<16x8x128xf32, #tpu.memory_space<vmem>>, vector<1x8x128xf32>
    %488 = vector.shape_cast %487 : vector<1x8x128xf32> to vector<8x128xf32>
    %489 = vector.shape_cast %486 : vector<8x128xf32> to vector<1x8x128xf32>
    tpu.vector_store %arg5[%c14_116, %c0_117, %c0_118], %489 {strides = array<i32>} : memref<16x8x128xf32, #tpu.memory_space<vmem>>, vector<1x8x128xf32>,
    %490 = arith.mulf %482, %485 : vector<8x128xf32>
    %c15_119 = arith.constant 15 : index
    %c0_120 = arith.constant 0 : index
    %c0_121 = arith.constant 0 : index
    %491 = vector.load %arg5[%c15_119, %c0_120, %c0_121] : memref<16x8x128xf32, #tpu.memory_space<vmem>>, vector<1x8x128xf32>
    %492 = vector.shape_cast %491 : vector<1x8x128xf32> to vector<8x128xf32>
    %493 = vector.shape_cast %490 : vector<8x128xf32> to vector<1x8x128xf32>
    tpu.vector_store %arg5[%c15_119, %c0_120, %c0_121], %493 {strides = array<i32>} : memref<16x8x128xf32, #tpu.memory_space<vmem>>, vector<1x8x128xf32>,
    %494 = arith.mulf %402, %402 : vector<8x128xf32>
    %495 = arith.mulf %404, %404 : vector<8x128xf32>
    %496 = arith.addf %494, %495 : vector<8x128xf32>
    %497 = math.rsqrt %496 : vector<8x128xf32>
    %498 = arith.mulf %402, %497 : vector<8x128xf32>
    %499 = arith.mulf %404, %497 : vector<8x128xf32>
    %c56 = arith.constant 56 : index
    %500 = memref.load %arg2[%c56] : memref<64xf32, #tpu.memory_space<smem>>
    %501 = vector.broadcast %500 : f32 to vector<8x128xf32>
    %502 = arith.mulf %501, %498 : vector<8x128xf32>
    %c57 = arith.constant 57 : index
    %503 = memref.load %arg2[%c57] : memref<64xf32, #tpu.memory_space<smem>>
    %504 = vector.broadcast %503 : f32 to vector<8x128xf32>
    %505 = arith.mulf %504, %499 : vector<8x128xf32>
    %506 = arith.addf %502, %505 : vector<8x128xf32>
    %c60 = arith.constant 60 : index
    %507 = memref.load %arg2[%c60] : memref<64xf32, #tpu.memory_space<smem>>
    %508 = vector.broadcast %507 : f32 to vector<8x128xf32>
    %509 = arith.mulf %508, %498 : vector<8x128xf32>
    %c61 = arith.constant 61 : index
    %510 = memref.load %arg2[%c61] : memref<64xf32, #tpu.memory_space<smem>>
    %511 = vector.broadcast %510 : f32 to vector<8x128xf32>
    %512 = arith.mulf %511, %499 : vector<8x128xf32>
    %513 = arith.addf %509, %512 : vector<8x128xf32>
    %514 = arith.mulf %506, %506 : vector<8x128xf32>
    %515 = arith.mulf %513, %513 : vector<8x128xf32>
    %516 = arith.addf %514, %515 : vector<8x128xf32>
    %517 = math.sqrt %516 : vector<8x128xf32>
    %cst_122 = arith.constant 9.99999997E-7 : f32
    %518 = vector.broadcast %cst_122 : f32 to vector<8x128xf32>
    %519 = arith.addf %517, %518 : vector<8x128xf32>
    %cst_123 = arith.constant 1.000000e+00 : f32
    %520 = vector.broadcast %cst_123 : f32 to vector<8x128xf32>
    %521 = arith.divf %520, %519 : vector<8x128xf32>
    %522 = arith.mulf %506, %521 : vector<8x128xf32>
    %523 = arith.mulf %513, %521 : vector<8x128xf32>
    %c12_124 = arith.constant 12 : index
    %c0_125 = arith.constant 0 : index
    %c0_126 = arith.constant 0 : index
    %524 = vector.load %arg7[%c12_124, %c0_125, %c0_126] : memref<14x8x128xf32, #tpu.memory_space<vmem>>, vector<1x8x128xf32>
    %525 = vector.shape_cast %524 : vector<1x8x128xf32> to vector<8x128xf32>
    %526 = vector.shape_cast %522 : vector<8x128xf32> to vector<1x8x128xf32>
    tpu.vector_store %arg7[%c12_124, %c0_125, %c0_126], %526 {strides = array<i32>} : memref<14x8x128xf32, #tpu.memory_space<vmem>>, vector<1x8x128xf32>,
    %c13_127 = arith.constant 13 : index
    %c0_128 = arith.constant 0 : index
    %c0_129 = arith.constant 0 : index
    %527 = vector.load %arg7[%c13_127, %c0_128, %c0_129] : memref<14x8x128xf32, #tpu.memory_space<vmem>>, vector<1x8x128xf32>
    %528 = vector.shape_cast %527 : vector<1x8x128xf32> to vector<8x128xf32>
    %529 = vector.shape_cast %523 : vector<8x128xf32> to vector<1x8x128xf32>
    tpu.vector_store %arg7[%c13_127, %c0_128, %c0_129], %529 {strides = array<i32>} : memref<14x8x128xf32, #tpu.memory_space<vmem>>, vector<1x8x128xf32>,
    %c12_130 = arith.constant 12 : index
    %c0_131 = arith.constant 0 : index
    %c0_132 = arith.constant 0 : index
    %530 = vector.load %arg4[%c12_130, %c0_131, %c0_132] : memref<16x8x128xf32, #tpu.memory_space<vmem>>, vector<1x8x128xf32>
    %531 = vector.shape_cast %530 : vector<1x8x128xf32> to vector<8x128xf32>
    %c13_133 = arith.constant 13 : index
    %c0_134 = arith.constant 0 : index
    %c0_135 = arith.constant 0 : index
    %532 = vector.load %arg4[%c13_133, %c0_134, %c0_135] : memref<16x8x128xf32, #tpu.memory_space<vmem>>, vector<1x8x128xf32>
    %533 = vector.shape_cast %532 : vector<1x8x128xf32> to vector<8x128xf32>
    %c10_136 = arith.constant 10 : index
    %c0_137 = arith.constant 0 : index
    %c0_138 = arith.constant 0 : index
    %534 = vector.load %arg6[%c10_136, %c0_137, %c0_138] : memref<14x8x128xf32, #tpu.memory_space<vmem>>, vector<1x8x128xf32>
    %535 = vector.shape_cast %534 : vector<1x8x128xf32> to vector<8x128xf32>
    %c11_139 = arith.constant 11 : index
    %c0_140 = arith.constant 0 : index
    %c0_141 = arith.constant 0 : index
    %536 = vector.load %arg6[%c11_139, %c0_140, %c0_141] : memref<14x8x128xf32, #tpu.memory_space<vmem>>, vector<1x8x128xf32>
    %537 = vector.shape_cast %536 : vector<1x8x128xf32> to vector<8x128xf32>
    %538 = arith.mulf %535, %522 : vector<8x128xf32>
    %539 = arith.mulf %535, %523 : vector<8x128xf32>
    %540 = arith.mulf %537, %522 : vector<8x128xf32>
    %541 = arith.mulf %537, %523 : vector<8x128xf32>
    %c96 = arith.constant 96 : index
    %542 = memref.load %arg3[%c96] : memref<128xf32, #tpu.memory_space<smem>>
    %543 = vector.broadcast %542 : f32 to vector<8x128xf32>
    %544 = arith.mulf %543, %538 : vector<8x128xf32>
    %c100 = arith.constant 100 : index
    %545 = memref.load %arg3[%c100] : memref<128xf32, #tpu.memory_space<smem>>
    %546 = vector.broadcast %545 : f32 to vector<8x128xf32>
    %547 = arith.mulf %546, %539 : vector<8x128xf32>
    %c104 = arith.constant 104 : index
    %548 = memref.load %arg3[%c104] : memref<128xf32, #tpu.memory_space<smem>>
    %549 = vector.broadcast %548 : f32 to vector<8x128xf32>
    %550 = arith.mulf %549, %540 : vector<8x128xf32>
    %c108 = arith.constant 108 : index
    %551 = memref.load %arg3[%c108] : memref<128xf32, #tpu.memory_space<smem>>
    %552 = vector.broadcast %551 : f32 to vector<8x128xf32>
    %553 = arith.mulf %552, %541 : vector<8x128xf32>
    %554 = arith.addf %544, %547 : vector<8x128xf32>
    %555 = arith.addf %554, %550 : vector<8x128xf32>
    %556 = arith.addf %555, %553 : vector<8x128xf32>
    %c97 = arith.constant 97 : index
    %557 = memref.load %arg3[%c97] : memref<128xf32, #tpu.memory_space<smem>>
    %558 = vector.broadcast %557 : f32 to vector<8x128xf32>
    %559 = arith.mulf %558, %538 : vector<8x128xf32>
    %c101 = arith.constant 101 : index
    %560 = memref.load %arg3[%c101] : memref<128xf32, #tpu.memory_space<smem>>
    %561 = vector.broadcast %560 : f32 to vector<8x128xf32>
    %562 = arith.mulf %561, %539 : vector<8x128xf32>
    %c105 = arith.constant 105 : index
    %563 = memref.load %arg3[%c105] : memref<128xf32, #tpu.memory_space<smem>>
    %564 = vector.broadcast %563 : f32 to vector<8x128xf32>
    %565 = arith.mulf %564, %540 : vector<8x128xf32>
    %c109 = arith.constant 109 : index
    %566 = memref.load %arg3[%c109] : memref<128xf32, #tpu.memory_space<smem>>
    %567 = vector.broadcast %566 : f32 to vector<8x128xf32>
    %568 = arith.mulf %567, %541 : vector<8x128xf32>
    %569 = arith.addf %559, %562 : vector<8x128xf32>
    %570 = arith.addf %569, %565 : vector<8x128xf32>
    %571 = arith.addf %570, %568 : vector<8x128xf32>
    %c98 = arith.constant 98 : index
    %572 = memref.load %arg3[%c98] : memref<128xf32, #tpu.memory_space<smem>>
    %573 = vector.broadcast %572 : f32 to vector<8x128xf32>
    %574 = arith.mulf %573, %538 : vector<8x128xf32>
    %c102 = arith.constant 102 : index
    %575 = memref.load %arg3[%c102] : memref<128xf32, #tpu.memory_space<smem>>
    %576 = vector.broadcast %575 : f32 to vector<8x128xf32>
    %577 = arith.mulf %576, %539 : vector<8x128xf32>
    %c106 = arith.constant 106 : index
    %578 = memref.load %arg3[%c106] : memref<128xf32, #tpu.memory_space<smem>>
    %579 = vector.broadcast %578 : f32 to vector<8x128xf32>
    %580 = arith.mulf %579, %540 : vector<8x128xf32>
    %c110 = arith.constant 110 : index
    %581 = memref.load %arg3[%c110] : memref<128xf32, #tpu.memory_space<smem>>
    %582 = vector.broadcast %581 : f32 to vector<8x128xf32>
    %583 = arith.mulf %582, %541 : vector<8x128xf32>
    %584 = arith.addf %574, %577 : vector<8x128xf32>
    %585 = arith.addf %584, %580 : vector<8x128xf32>
    %586 = arith.addf %585, %583 : vector<8x128xf32>
    %c99 = arith.constant 99 : index
    %587 = memref.load %arg3[%c99] : memref<128xf32, #tpu.memory_space<smem>>
    %588 = vector.broadcast %587 : f32 to vector<8x128xf32>
    %589 = arith.mulf %588, %538 : vector<8x128xf32>
    %c103 = arith.constant 103 : index
    %590 = memref.load %arg3[%c103] : memref<128xf32, #tpu.memory_space<smem>>
    %591 = vector.broadcast %590 : f32 to vector<8x128xf32>
    %592 = arith.mulf %591, %539 : vector<8x128xf32>
    %c107 = arith.constant 107 : index
    %593 = memref.load %arg3[%c107] : memref<128xf32, #tpu.memory_space<smem>>
    %594 = vector.broadcast %593 : f32 to vector<8x128xf32>
    %595 = arith.mulf %594, %540 : vector<8x128xf32>
    %c111 = arith.constant 111 : index
    %596 = memref.load %arg3[%c111] : memref<128xf32, #tpu.memory_space<smem>>
    %597 = vector.broadcast %596 : f32 to vector<8x128xf32>
    %598 = arith.mulf %597, %541 : vector<8x128xf32>
    %599 = arith.addf %589, %592 : vector<8x128xf32>
    %600 = arith.addf %599, %595 : vector<8x128xf32>
    %601 = arith.addf %600, %598 : vector<8x128xf32>
    %602 = arith.mulf %556, %556 : vector<8x128xf32>
    %603 = arith.mulf %571, %571 : vector<8x128xf32>
    %604 = arith.mulf %586, %586 : vector<8x128xf32>
    %605 = arith.mulf %601, %601 : vector<8x128xf32>
    %606 = arith.addf %602, %603 : vector<8x128xf32>
    %607 = arith.addf %606, %604 : vector<8x128xf32>
    %608 = arith.addf %607, %605 : vector<8x128xf32>
    %609 = math.sqrt %608 : vector<8x128xf32>
    %cst_142 = arith.constant 9.99999997E-7 : f32
    %610 = vector.broadcast %cst_142 : f32 to vector<8x128xf32>
    %611 = arith.addf %609, %610 : vector<8x128xf32>
    %612 = vector.broadcast %0 : f32 to vector<8x128xf32>
    %613 = arith.divf %612, %611 : vector<8x128xf32>
    %614 = arith.mulf %556, %613 : vector<8x128xf32>
    %615 = arith.cmpf one, %614, %614 : vector<8x128xf32>
    %cst_143 = arith.constant 0.000000e+00 : f32
    %616 = vector.broadcast %cst_143 : f32 to vector<8x128xf32>
    %617 = arith.select %615, %616, %614 : vector<8x128xi1>, vector<8x128xf32>
    %618 = arith.mulf %617, %531 : vector<8x128xf32>
    %619 = arith.mulf %571, %613 : vector<8x128xf32>
    %620 = arith.cmpf one, %619, %619 : vector<8x128xf32>
    %cst_144 = arith.constant 0.000000e+00 : f32
    %621 = vector.broadcast %cst_144 : f32 to vector<8x128xf32>
    %622 = arith.select %620, %621, %619 : vector<8x128xi1>, vector<8x128xf32>
    %623 = arith.mulf %622, %533 : vector<8x128xf32>
    %624 = arith.addf %618, %623 : vector<8x128xf32>
    %cst_145 = arith.constant 0.000000e+00 : f32
    %625 = vector.broadcast %cst_145 : f32 to vector<8x128xf32>
    %626 = arith.cmpf oge, %624, %625 : vector<8x128xf32>
    %cst_146 = arith.constant 9.99999974E-6 : f32
    %627 = vector.broadcast %cst_146 : f32 to vector<8x128xf32>
    %628 = arith.mulf %627, %624 : vector<8x128xf32>
    %629 = arith.select %626, %624, %628 : vector<8x128xi1>, vector<8x128xf32>
    %630 = math.absf %629 : vector<8x128xf32>
    %631 = arith.mulf %586, %613 : vector<8x128xf32>
    %632 = arith.cmpf one, %631, %631 : vector<8x128xf32>
    %cst_147 = arith.constant 0.000000e+00 : f32
    %633 = vector.broadcast %cst_147 : f32 to vector<8x128xf32>
    %634 = arith.select %632, %633, %631 : vector<8x128xi1>, vector<8x128xf32>
    %635 = arith.mulf %634, %531 : vector<8x128xf32>
    %636 = arith.mulf %601, %613 : vector<8x128xf32>
    %637 = arith.cmpf one, %636, %636 : vector<8x128xf32>
    %cst_148 = arith.constant 0.000000e+00 : f32
    %638 = vector.broadcast %cst_148 : f32 to vector<8x128xf32>
    %639 = arith.select %637, %638, %636 : vector<8x128xi1>, vector<8x128xf32>
    %640 = arith.mulf %639, %533 : vector<8x128xf32>
    %641 = arith.addf %635, %640 : vector<8x128xf32>
    %cst_149 = arith.constant 0.000000e+00 : f32
    %642 = vector.broadcast %cst_149 : f32 to vector<8x128xf32>
    %643 = arith.cmpf oge, %641, %642 : vector<8x128xf32>
    %cst_150 = arith.constant 9.99999974E-6 : f32
    %644 = vector.broadcast %cst_150 : f32 to vector<8x128xf32>
    %645 = arith.mulf %644, %641 : vector<8x128xf32>
    %646 = arith.select %643, %641, %645 : vector<8x128xi1>, vector<8x128xf32>
    %647 = math.absf %646 : vector<8x128xf32>
    %648 = arith.addf %630, %647 : vector<8x128xf32>
    %cst_151 = arith.constant 1.000000e+00 : f32
    %649 = vector.broadcast %cst_151 : f32 to vector<8x128xf32>
    %650 = arith.divf %649, %648 : vector<8x128xf32>
    %651 = arith.mulf %630, %650 : vector<8x128xf32>
    %c12_152 = arith.constant 12 : index
    %c0_153 = arith.constant 0 : index
    %c0_154 = arith.constant 0 : index
    %652 = vector.load %arg5[%c12_152, %c0_153, %c0_154] : memref<16x8x128xf32, #tpu.memory_space<vmem>>, vector<1x8x128xf32>
    %653 = vector.shape_cast %652 : vector<1x8x128xf32> to vector<8x128xf32>
    %654 = vector.shape_cast %651 : vector<8x128xf32> to vector<1x8x128xf32>
    tpu.vector_store %arg5[%c12_152, %c0_153, %c0_154], %654 {strides = array<i32>} : memref<16x8x128xf32, #tpu.memory_space<vmem>>, vector<1x8x128xf32>,
    %655 = arith.mulf %647, %650 : vector<8x128xf32>
    %c13_155 = arith.constant 13 : index
    %c0_156 = arith.constant 0 : index
    %c0_157 = arith.constant 0 : index
    %656 = vector.load %arg5[%c13_155, %c0_156, %c0_157] : memref<16x8x128xf32, #tpu.memory_space<vmem>>, vector<1x8x128xf32>
    %657 = vector.shape_cast %656 : vector<1x8x128xf32> to vector<8x128xf32>
    %658 = vector.shape_cast %655 : vector<8x128xf32> to vector<1x8x128xf32>
    tpu.vector_store %arg5[%c13_155, %c0_156, %c0_157], %658 {strides = array<i32>} : memref<16x8x128xf32, #tpu.memory_space<vmem>>, vector<1x8x128xf32>,
    %659 = arith.mulf %531, %531 : vector<8x128xf32>
    %660 = arith.mulf %533, %533 : vector<8x128xf32>
    %661 = arith.addf %659, %660 : vector<8x128xf32>
    %662 = math.rsqrt %661 : vector<8x128xf32>
    %663 = arith.mulf %531, %662 : vector<8x128xf32>
    %664 = arith.mulf %533, %662 : vector<8x128xf32>
    %c48_158 = arith.constant 48 : index
    %665 = memref.load %arg2[%c48_158] : memref<64xf32, #tpu.memory_space<smem>>
    %666 = vector.broadcast %665 : f32 to vector<8x128xf32>
    %667 = arith.mulf %666, %663 : vector<8x128xf32>
    %c49_159 = arith.constant 49 : index
    %668 = memref.load %arg2[%c49_159] : memref<64xf32, #tpu.memory_space<smem>>
    %669 = vector.broadcast %668 : f32 to vector<8x128xf32>
    %670 = arith.mulf %669, %664 : vector<8x128xf32>
    %671 = arith.addf %667, %670 : vector<8x128xf32>
    %c50_160 = arith.constant 50 : index
    %672 = memref.load %arg2[%c50_160] : memref<64xf32, #tpu.memory_space<smem>>
    %673 = vector.broadcast %672 : f32 to vector<8x128xf32>
    %674 = arith.mulf %673, %663 : vector<8x128xf32>
    %c51_161 = arith.constant 51 : index
    %675 = memref.load %arg2[%c51_161] : memref<64xf32, #tpu.memory_space<smem>>
    %676 = vector.broadcast %675 : f32 to vector<8x128xf32>
    %677 = arith.mulf %676, %664 : vector<8x128xf32>
    %678 = arith.addf %674, %677 : vector<8x128xf32>
    %c52_162 = arith.constant 52 : index
    %679 = memref.load %arg2[%c52_162] : memref<64xf32, #tpu.memory_space<smem>>
    %680 = vector.broadcast %679 : f32 to vector<8x128xf32>
    %681 = arith.mulf %680, %663 : vector<8x128xf32>
    %c53_163 = arith.constant 53 : index
    %682 = memref.load %arg2[%c53_163] : memref<64xf32, #tpu.memory_space<smem>>
    %683 = vector.broadcast %682 : f32 to vector<8x128xf32>
    %684 = arith.mulf %683, %664 : vector<8x128xf32>
    %685 = arith.addf %681, %684 : vector<8x128xf32>
    %c54_164 = arith.constant 54 : index
    %686 = memref.load %arg2[%c54_164] : memref<64xf32, #tpu.memory_space<smem>>
    %687 = vector.broadcast %686 : f32 to vector<8x128xf32>
    %688 = arith.mulf %687, %663 : vector<8x128xf32>
    %c55_165 = arith.constant 55 : index
    %689 = memref.load %arg2[%c55_165] : memref<64xf32, #tpu.memory_space<smem>>
    %690 = vector.broadcast %689 : f32 to vector<8x128xf32>
    %691 = arith.mulf %690, %664 : vector<8x128xf32>
    %692 = arith.addf %688, %691 : vector<8x128xf32>
    %693 = arith.mulf %671, %506 : vector<8x128xf32>
    %694 = arith.mulf %678, %513 : vector<8x128xf32>
    %695 = arith.addf %693, %694 : vector<8x128xf32>
    %696 = arith.mulf %685, %506 : vector<8x128xf32>
    %697 = arith.mulf %692, %513 : vector<8x128xf32>
    %698 = arith.addf %696, %697 : vector<8x128xf32>
    %699 = arith.mulf %695, %695 : vector<8x128xf32>
    %700 = arith.mulf %698, %698 : vector<8x128xf32>
    %701 = arith.addf %699, %700 : vector<8x128xf32>
    %702 = math.sqrt %701 : vector<8x128xf32>
    %cst_166 = arith.constant 9.99999997E-7 : f32
    %703 = vector.broadcast %cst_166 : f32 to vector<8x128xf32>
    %704 = arith.addf %702, %703 : vector<8x128xf32>
    %cst_167 = arith.constant 1.000000e+00 : f32
    %705 = vector.broadcast %cst_167 : f32 to vector<8x128xf32>
    %706 = arith.divf %705, %704 : vector<8x128xf32>
    %707 = arith.mulf %695, %706 : vector<8x128xf32>
    %708 = arith.mulf %698, %706 : vector<8x128xf32>
    %c10_168 = arith.constant 10 : index
    %c0_169 = arith.constant 0 : index
    %c0_170 = arith.constant 0 : index
    %709 = vector.load %arg7[%c10_168, %c0_169, %c0_170] : memref<14x8x128xf32, #tpu.memory_space<vmem>>, vector<1x8x128xf32>
    %710 = vector.shape_cast %709 : vector<1x8x128xf32> to vector<8x128xf32>
    %711 = vector.shape_cast %707 : vector<8x128xf32> to vector<1x8x128xf32>
    tpu.vector_store %arg7[%c10_168, %c0_169, %c0_170], %711 {strides = array<i32>} : memref<14x8x128xf32, #tpu.memory_space<vmem>>, vector<1x8x128xf32>,
    %c11_171 = arith.constant 11 : index
    %c0_172 = arith.constant 0 : index
    %c0_173 = arith.constant 0 : index
    %712 = vector.load %arg7[%c11_171, %c0_172, %c0_173] : memref<14x8x128xf32, #tpu.memory_space<vmem>>, vector<1x8x128xf32>
    %713 = vector.shape_cast %712 : vector<1x8x128xf32> to vector<8x128xf32>
    %714 = vector.shape_cast %708 : vector<8x128xf32> to vector<1x8x128xf32>
    tpu.vector_store %arg7[%c11_171, %c0_172, %c0_173], %714 {strides = array<i32>} : memref<14x8x128xf32, #tpu.memory_space<vmem>>, vector<1x8x128xf32>,
    %c10_174 = arith.constant 10 : index
    %c0_175 = arith.constant 0 : index
    %c0_176 = arith.constant 0 : index
    %715 = vector.load %arg4[%c10_174, %c0_175, %c0_176] : memref<16x8x128xf32, #tpu.memory_space<vmem>>, vector<1x8x128xf32>
    %716 = vector.shape_cast %715 : vector<1x8x128xf32> to vector<8x128xf32>
    %c11_177 = arith.constant 11 : index
    %c0_178 = arith.constant 0 : index
    %c0_179 = arith.constant 0 : index
    %717 = vector.load %arg4[%c11_177, %c0_178, %c0_179] : memref<16x8x128xf32, #tpu.memory_space<vmem>>, vector<1x8x128xf32>
    %718 = vector.shape_cast %717 : vector<1x8x128xf32> to vector<8x128xf32>
    %c8_180 = arith.constant 8 : index
    %c0_181 = arith.constant 0 : index
    %c0_182 = arith.constant 0 : index
    %719 = vector.load %arg6[%c8_180, %c0_181, %c0_182] : memref<14x8x128xf32, #tpu.memory_space<vmem>>, vector<1x8x128xf32>
    %720 = vector.shape_cast %719 : vector<1x8x128xf32> to vector<8x128xf32>
    %c9_183 = arith.constant 9 : index
    %c0_184 = arith.constant 0 : index
    %c0_185 = arith.constant 0 : index
    %721 = vector.load %arg6[%c9_183, %c0_184, %c0_185] : memref<14x8x128xf32, #tpu.memory_space<vmem>>, vector<1x8x128xf32>
    %722 = vector.shape_cast %721 : vector<1x8x128xf32> to vector<8x128xf32>
    %723 = arith.mulf %720, %707 : vector<8x128xf32>
    %724 = arith.mulf %720, %708 : vector<8x128xf32>
    %725 = arith.mulf %722, %707 : vector<8x128xf32>
    %726 = arith.mulf %722, %708 : vector<8x128xf32>
    %c80 = arith.constant 80 : index
    %727 = memref.load %arg3[%c80] : memref<128xf32, #tpu.memory_space<smem>>
    %728 = vector.broadcast %727 : f32 to vector<8x128xf32>
    %729 = arith.mulf %728, %723 : vector<8x128xf32>
    %c84 = arith.constant 84 : index
    %730 = memref.load %arg3[%c84] : memref<128xf32, #tpu.memory_space<smem>>
    %731 = vector.broadcast %730 : f32 to vector<8x128xf32>
    %732 = arith.mulf %731, %724 : vector<8x128xf32>
    %c88 = arith.constant 88 : index
    %733 = memref.load %arg3[%c88] : memref<128xf32, #tpu.memory_space<smem>>
    %734 = vector.broadcast %733 : f32 to vector<8x128xf32>
    %735 = arith.mulf %734, %725 : vector<8x128xf32>
    %c92 = arith.constant 92 : index
    %736 = memref.load %arg3[%c92] : memref<128xf32, #tpu.memory_space<smem>>
    %737 = vector.broadcast %736 : f32 to vector<8x128xf32>
    %738 = arith.mulf %737, %726 : vector<8x128xf32>
    %739 = arith.addf %729, %732 : vector<8x128xf32>
    %740 = arith.addf %739, %735 : vector<8x128xf32>
    %741 = arith.addf %740, %738 : vector<8x128xf32>
    %c81 = arith.constant 81 : index
    %742 = memref.load %arg3[%c81] : memref<128xf32, #tpu.memory_space<smem>>
    %743 = vector.broadcast %742 : f32 to vector<8x128xf32>
    %744 = arith.mulf %743, %723 : vector<8x128xf32>
    %c85 = arith.constant 85 : index
    %745 = memref.load %arg3[%c85] : memref<128xf32, #tpu.memory_space<smem>>
    %746 = vector.broadcast %745 : f32 to vector<8x128xf32>
    %747 = arith.mulf %746, %724 : vector<8x128xf32>
    %c89 = arith.constant 89 : index
    %748 = memref.load %arg3[%c89] : memref<128xf32, #tpu.memory_space<smem>>
    %749 = vector.broadcast %748 : f32 to vector<8x128xf32>
    %750 = arith.mulf %749, %725 : vector<8x128xf32>
    %c93 = arith.constant 93 : index
    %751 = memref.load %arg3[%c93] : memref<128xf32, #tpu.memory_space<smem>>
    %752 = vector.broadcast %751 : f32 to vector<8x128xf32>
    %753 = arith.mulf %752, %726 : vector<8x128xf32>
    %754 = arith.addf %744, %747 : vector<8x128xf32>
    %755 = arith.addf %754, %750 : vector<8x128xf32>
    %756 = arith.addf %755, %753 : vector<8x128xf32>
    %c82 = arith.constant 82 : index
    %757 = memref.load %arg3[%c82] : memref<128xf32, #tpu.memory_space<smem>>
    %758 = vector.broadcast %757 : f32 to vector<8x128xf32>
    %759 = arith.mulf %758, %723 : vector<8x128xf32>
    %c86 = arith.constant 86 : index
    %760 = memref.load %arg3[%c86] : memref<128xf32, #tpu.memory_space<smem>>
    %761 = vector.broadcast %760 : f32 to vector<8x128xf32>
    %762 = arith.mulf %761, %724 : vector<8x128xf32>
    %c90 = arith.constant 90 : index
    %763 = memref.load %arg3[%c90] : memref<128xf32, #tpu.memory_space<smem>>
    %764 = vector.broadcast %763 : f32 to vector<8x128xf32>
    %765 = arith.mulf %764, %725 : vector<8x128xf32>
    %c94 = arith.constant 94 : index
    %766 = memref.load %arg3[%c94] : memref<128xf32, #tpu.memory_space<smem>>
    %767 = vector.broadcast %766 : f32 to vector<8x128xf32>
    %768 = arith.mulf %767, %726 : vector<8x128xf32>
    %769 = arith.addf %759, %762 : vector<8x128xf32>
    %770 = arith.addf %769, %765 : vector<8x128xf32>
    %771 = arith.addf %770, %768 : vector<8x128xf32>
    %c83 = arith.constant 83 : index
    %772 = memref.load %arg3[%c83] : memref<128xf32, #tpu.memory_space<smem>>
    %773 = vector.broadcast %772 : f32 to vector<8x128xf32>
    %774 = arith.mulf %773, %723 : vector<8x128xf32>
    %c87 = arith.constant 87 : index
    %775 = memref.load %arg3[%c87] : memref<128xf32, #tpu.memory_space<smem>>
    %776 = vector.broadcast %775 : f32 to vector<8x128xf32>
    %777 = arith.mulf %776, %724 : vector<8x128xf32>
    %c91 = arith.constant 91 : index
    %778 = memref.load %arg3[%c91] : memref<128xf32, #tpu.memory_space<smem>>
    %779 = vector.broadcast %778 : f32 to vector<8x128xf32>
    %780 = arith.mulf %779, %725 : vector<8x128xf32>
    %c95 = arith.constant 95 : index
    %781 = memref.load %arg3[%c95] : memref<128xf32, #tpu.memory_space<smem>>
    %782 = vector.broadcast %781 : f32 to vector<8x128xf32>
    %783 = arith.mulf %782, %726 : vector<8x128xf32>
    %784 = arith.addf %774, %777 : vector<8x128xf32>
    %785 = arith.addf %784, %780 : vector<8x128xf32>
    %786 = arith.addf %785, %783 : vector<8x128xf32>
    %787 = arith.mulf %741, %741 : vector<8x128xf32>
    %788 = arith.mulf %756, %756 : vector<8x128xf32>
    %789 = arith.mulf %771, %771 : vector<8x128xf32>
    %790 = arith.mulf %786, %786 : vector<8x128xf32>
    %791 = arith.addf %787, %788 : vector<8x128xf32>
    %792 = arith.addf %791, %789 : vector<8x128xf32>
    %793 = arith.addf %792, %790 : vector<8x128xf32>
    %794 = math.sqrt %793 : vector<8x128xf32>
    %cst_186 = arith.constant 9.99999997E-7 : f32
    %795 = vector.broadcast %cst_186 : f32 to vector<8x128xf32>
    %796 = arith.addf %794, %795 : vector<8x128xf32>
    %797 = vector.broadcast %0 : f32 to vector<8x128xf32>
    %798 = arith.divf %797, %796 : vector<8x128xf32>
    %799 = arith.mulf %741, %798 : vector<8x128xf32>
    %800 = arith.cmpf one, %799, %799 : vector<8x128xf32>
    %cst_187 = arith.constant 0.000000e+00 : f32
    %801 = vector.broadcast %cst_187 : f32 to vector<8x128xf32>
    %802 = arith.select %800, %801, %799 : vector<8x128xi1>, vector<8x128xf32>
    %803 = arith.mulf %802, %716 : vector<8x128xf32>
    %804 = arith.mulf %756, %798 : vector<8x128xf32>
    %805 = arith.cmpf one, %804, %804 : vector<8x128xf32>
    %cst_188 = arith.constant 0.000000e+00 : f32
    %806 = vector.broadcast %cst_188 : f32 to vector<8x128xf32>
    %807 = arith.select %805, %806, %804 : vector<8x128xi1>, vector<8x128xf32>
    %808 = arith.mulf %807, %718 : vector<8x128xf32>
    %809 = arith.addf %803, %808 : vector<8x128xf32>
    %cst_189 = arith.constant 0.000000e+00 : f32
    %810 = vector.broadcast %cst_189 : f32 to vector<8x128xf32>
    %811 = arith.cmpf oge, %809, %810 : vector<8x128xf32>
    %cst_190 = arith.constant 9.99999974E-6 : f32
    %812 = vector.broadcast %cst_190 : f32 to vector<8x128xf32>
    %813 = arith.mulf %812, %809 : vector<8x128xf32>
    %814 = arith.select %811, %809, %813 : vector<8x128xi1>, vector<8x128xf32>
    %815 = math.absf %814 : vector<8x128xf32>
    %816 = arith.mulf %771, %798 : vector<8x128xf32>
    %817 = arith.cmpf one, %816, %816 : vector<8x128xf32>
    %cst_191 = arith.constant 0.000000e+00 : f32
    %818 = vector.broadcast %cst_191 : f32 to vector<8x128xf32>
    %819 = arith.select %817, %818, %816 : vector<8x128xi1>, vector<8x128xf32>
    %820 = arith.mulf %819, %716 : vector<8x128xf32>
    %821 = arith.mulf %786, %798 : vector<8x128xf32>
    %822 = arith.cmpf one, %821, %821 : vector<8x128xf32>
    %cst_192 = arith.constant 0.000000e+00 : f32
    %823 = vector.broadcast %cst_192 : f32 to vector<8x128xf32>
    %824 = arith.select %822, %823, %821 : vector<8x128xi1>, vector<8x128xf32>
    %825 = arith.mulf %824, %718 : vector<8x128xf32>
    %826 = arith.addf %820, %825 : vector<8x128xf32>
    %cst_193 = arith.constant 0.000000e+00 : f32
    %827 = vector.broadcast %cst_193 : f32 to vector<8x128xf32>
    %828 = arith.cmpf oge, %826, %827 : vector<8x128xf32>
    %cst_194 = arith.constant 9.99999974E-6 : f32
    %829 = vector.broadcast %cst_194 : f32 to vector<8x128xf32>
    %830 = arith.mulf %829, %826 : vector<8x128xf32>
    %831 = arith.select %828, %826, %830 : vector<8x128xi1>, vector<8x128xf32>
    %832 = math.absf %831 : vector<8x128xf32>
    %833 = arith.addf %815, %832 : vector<8x128xf32>
    %cst_195 = arith.constant 1.000000e+00 : f32
    %834 = vector.broadcast %cst_195 : f32 to vector<8x128xf32>
    %835 = arith.divf %834, %833 : vector<8x128xf32>
    %836 = arith.mulf %815, %835 : vector<8x128xf32>
    %c10_196 = arith.constant 10 : index
    %c0_197 = arith.constant 0 : index
    %c0_198 = arith.constant 0 : index
    %837 = vector.load %arg5[%c10_196, %c0_197, %c0_198] : memref<16x8x128xf32, #tpu.memory_space<vmem>>, vector<1x8x128xf32>
    %838 = vector.shape_cast %837 : vector<1x8x128xf32> to vector<8x128xf32>
    %839 = vector.shape_cast %836 : vector<8x128xf32> to vector<1x8x128xf32>
    tpu.vector_store %arg5[%c10_196, %c0_197, %c0_198], %839 {strides = array<i32>} : memref<16x8x128xf32, #tpu.memory_space<vmem>>, vector<1x8x128xf32>,
    %840 = arith.mulf %832, %835 : vector<8x128xf32>
    %c11_199 = arith.constant 11 : index
    %c0_200 = arith.constant 0 : index
    %c0_201 = arith.constant 0 : index
    %841 = vector.load %arg5[%c11_199, %c0_200, %c0_201] : memref<16x8x128xf32, #tpu.memory_space<vmem>>, vector<1x8x128xf32>
    %842 = vector.shape_cast %841 : vector<1x8x128xf32> to vector<8x128xf32>
    %843 = vector.shape_cast %840 : vector<8x128xf32> to vector<1x8x128xf32>
    tpu.vector_store %arg5[%c11_199, %c0_200, %c0_201], %843 {strides = array<i32>} : memref<16x8x128xf32, #tpu.memory_space<vmem>>, vector<1x8x128xf32>,
    %844 = arith.mulf %716, %716 : vector<8x128xf32>
    %845 = arith.mulf %718, %718 : vector<8x128xf32>
    %846 = arith.addf %844, %845 : vector<8x128xf32>
    %847 = math.rsqrt %846 : vector<8x128xf32>
    %848 = arith.mulf %716, %847 : vector<8x128xf32>
    %849 = arith.mulf %718, %847 : vector<8x128xf32>
    %c40_202 = arith.constant 40 : index
    %850 = memref.load %arg2[%c40_202] : memref<64xf32, #tpu.memory_space<smem>>
    %851 = vector.broadcast %850 : f32 to vector<8x128xf32>
    %852 = arith.mulf %851, %848 : vector<8x128xf32>
    %c41_203 = arith.constant 41 : index
    %853 = memref.load %arg2[%c41_203] : memref<64xf32, #tpu.memory_space<smem>>
    %854 = vector.broadcast %853 : f32 to vector<8x128xf32>
    %855 = arith.mulf %854, %849 : vector<8x128xf32>
    %856 = arith.addf %852, %855 : vector<8x128xf32>
    %c42_204 = arith.constant 42 : index
    %857 = memref.load %arg2[%c42_204] : memref<64xf32, #tpu.memory_space<smem>>
    %858 = vector.broadcast %857 : f32 to vector<8x128xf32>
    %859 = arith.mulf %858, %848 : vector<8x128xf32>
    %c43_205 = arith.constant 43 : index
    %860 = memref.load %arg2[%c43_205] : memref<64xf32, #tpu.memory_space<smem>>
    %861 = vector.broadcast %860 : f32 to vector<8x128xf32>
    %862 = arith.mulf %861, %849 : vector<8x128xf32>
    %863 = arith.addf %859, %862 : vector<8x128xf32>
    %c44_206 = arith.constant 44 : index
    %864 = memref.load %arg2[%c44_206] : memref<64xf32, #tpu.memory_space<smem>>
    %865 = vector.broadcast %864 : f32 to vector<8x128xf32>
    %866 = arith.mulf %865, %848 : vector<8x128xf32>
    %c45_207 = arith.constant 45 : index
    %867 = memref.load %arg2[%c45_207] : memref<64xf32, #tpu.memory_space<smem>>
    %868 = vector.broadcast %867 : f32 to vector<8x128xf32>
    %869 = arith.mulf %868, %849 : vector<8x128xf32>
    %870 = arith.addf %866, %869 : vector<8x128xf32>
    %c46_208 = arith.constant 46 : index
    %871 = memref.load %arg2[%c46_208] : memref<64xf32, #tpu.memory_space<smem>>
    %872 = vector.broadcast %871 : f32 to vector<8x128xf32>
    %873 = arith.mulf %872, %848 : vector<8x128xf32>
    %c47_209 = arith.constant 47 : index
    %874 = memref.load %arg2[%c47_209] : memref<64xf32, #tpu.memory_space<smem>>
    %875 = vector.broadcast %874 : f32 to vector<8x128xf32>
    %876 = arith.mulf %875, %849 : vector<8x128xf32>
    %877 = arith.addf %873, %876 : vector<8x128xf32>
    %878 = arith.mulf %856, %695 : vector<8x128xf32>
    %879 = arith.mulf %863, %698 : vector<8x128xf32>
    %880 = arith.addf %878, %879 : vector<8x128xf32>
    %881 = arith.mulf %870, %695 : vector<8x128xf32>
    %882 = arith.mulf %877, %698 : vector<8x128xf32>
    %883 = arith.addf %881, %882 : vector<8x128xf32>
    %884 = arith.mulf %880, %880 : vector<8x128xf32>
    %885 = arith.mulf %883, %883 : vector<8x128xf32>
    %886 = arith.addf %884, %885 : vector<8x128xf32>
    %887 = math.sqrt %886 : vector<8x128xf32>
    %cst_210 = arith.constant 9.99999997E-7 : f32
    %888 = vector.broadcast %cst_210 : f32 to vector<8x128xf32>
    %889 = arith.addf %887, %888 : vector<8x128xf32>
    %cst_211 = arith.constant 1.000000e+00 : f32
    %890 = vector.broadcast %cst_211 : f32 to vector<8x128xf32>
    %891 = arith.divf %890, %889 : vector<8x128xf32>
    %892 = arith.mulf %880, %891 : vector<8x128xf32>
    %893 = arith.mulf %883, %891 : vector<8x128xf32>
    %c8_212 = arith.constant 8 : index
    %c0_213 = arith.constant 0 : index
    %c0_214 = arith.constant 0 : index
    %894 = vector.load %arg7[%c8_212, %c0_213, %c0_214] : memref<14x8x128xf32, #tpu.memory_space<vmem>>, vector<1x8x128xf32>
    %895 = vector.shape_cast %894 : vector<1x8x128xf32> to vector<8x128xf32>
    %896 = vector.shape_cast %892 : vector<8x128xf32> to vector<1x8x128xf32>
    tpu.vector_store %arg7[%c8_212, %c0_213, %c0_214], %896 {strides = array<i32>} : memref<14x8x128xf32, #tpu.memory_space<vmem>>, vector<1x8x128xf32>,
    %c9_215 = arith.constant 9 : index
    %c0_216 = arith.constant 0 : index
    %c0_217 = arith.constant 0 : index
    %897 = vector.load %arg7[%c9_215, %c0_216, %c0_217] : memref<14x8x128xf32, #tpu.memory_space<vmem>>, vector<1x8x128xf32>
    %898 = vector.shape_cast %897 : vector<1x8x128xf32> to vector<8x128xf32>
    %899 = vector.shape_cast %893 : vector<8x128xf32> to vector<1x8x128xf32>
    tpu.vector_store %arg7[%c9_215, %c0_216, %c0_217], %899 {strides = array<i32>} : memref<14x8x128xf32, #tpu.memory_space<vmem>>, vector<1x8x128xf32>,
    %c8_218 = arith.constant 8 : index
    %c0_219 = arith.constant 0 : index
    %c0_220 = arith.constant 0 : index
    %900 = vector.load %arg4[%c8_218, %c0_219, %c0_220] : memref<16x8x128xf32, #tpu.memory_space<vmem>>, vector<1x8x128xf32>
    %901 = vector.shape_cast %900 : vector<1x8x128xf32> to vector<8x128xf32>
    %c9_221 = arith.constant 9 : index
    %c0_222 = arith.constant 0 : index
    %c0_223 = arith.constant 0 : index
    %902 = vector.load %arg4[%c9_221, %c0_222, %c0_223] : memref<16x8x128xf32, #tpu.memory_space<vmem>>, vector<1x8x128xf32>
    %903 = vector.shape_cast %902 : vector<1x8x128xf32> to vector<8x128xf32>
    %c6_224 = arith.constant 6 : index
    %c0_225 = arith.constant 0 : index
    %c0_226 = arith.constant 0 : index
    %904 = vector.load %arg6[%c6_224, %c0_225, %c0_226] : memref<14x8x128xf32, #tpu.memory_space<vmem>>, vector<1x8x128xf32>
    %905 = vector.shape_cast %904 : vector<1x8x128xf32> to vector<8x128xf32>
    %c7_227 = arith.constant 7 : index
    %c0_228 = arith.constant 0 : index
    %c0_229 = arith.constant 0 : index
    %906 = vector.load %arg6[%c7_227, %c0_228, %c0_229] : memref<14x8x128xf32, #tpu.memory_space<vmem>>, vector<1x8x128xf32>
    %907 = vector.shape_cast %906 : vector<1x8x128xf32> to vector<8x128xf32>
    %908 = arith.mulf %905, %892 : vector<8x128xf32>
    %909 = arith.mulf %905, %893 : vector<8x128xf32>
    %910 = arith.mulf %907, %892 : vector<8x128xf32>
    %911 = arith.mulf %907, %893 : vector<8x128xf32>
    %c64 = arith.constant 64 : index
    %912 = memref.load %arg3[%c64] : memref<128xf32, #tpu.memory_space<smem>>
    %913 = vector.broadcast %912 : f32 to vector<8x128xf32>
    %914 = arith.mulf %913, %908 : vector<8x128xf32>
    %c68 = arith.constant 68 : index
    %915 = memref.load %arg3[%c68] : memref<128xf32, #tpu.memory_space<smem>>
    %916 = vector.broadcast %915 : f32 to vector<8x128xf32>
    %917 = arith.mulf %916, %909 : vector<8x128xf32>
    %c72 = arith.constant 72 : index
    %918 = memref.load %arg3[%c72] : memref<128xf32, #tpu.memory_space<smem>>
    %919 = vector.broadcast %918 : f32 to vector<8x128xf32>
    %920 = arith.mulf %919, %910 : vector<8x128xf32>
    %c76 = arith.constant 76 : index
    %921 = memref.load %arg3[%c76] : memref<128xf32, #tpu.memory_space<smem>>
    %922 = vector.broadcast %921 : f32 to vector<8x128xf32>
    %923 = arith.mulf %922, %911 : vector<8x128xf32>
    %924 = arith.addf %914, %917 : vector<8x128xf32>
    %925 = arith.addf %924, %920 : vector<8x128xf32>
    %926 = arith.addf %925, %923 : vector<8x128xf32>
    %c65 = arith.constant 65 : index
    %927 = memref.load %arg3[%c65] : memref<128xf32, #tpu.memory_space<smem>>
    %928 = vector.broadcast %927 : f32 to vector<8x128xf32>
    %929 = arith.mulf %928, %908 : vector<8x128xf32>
    %c69 = arith.constant 69 : index
    %930 = memref.load %arg3[%c69] : memref<128xf32, #tpu.memory_space<smem>>
    %931 = vector.broadcast %930 : f32 to vector<8x128xf32>
    %932 = arith.mulf %931, %909 : vector<8x128xf32>
    %c73 = arith.constant 73 : index
    %933 = memref.load %arg3[%c73] : memref<128xf32, #tpu.memory_space<smem>>
    %934 = vector.broadcast %933 : f32 to vector<8x128xf32>
    %935 = arith.mulf %934, %910 : vector<8x128xf32>
    %c77 = arith.constant 77 : index
    %936 = memref.load %arg3[%c77] : memref<128xf32, #tpu.memory_space<smem>>
    %937 = vector.broadcast %936 : f32 to vector<8x128xf32>
    %938 = arith.mulf %937, %911 : vector<8x128xf32>
    %939 = arith.addf %929, %932 : vector<8x128xf32>
    %940 = arith.addf %939, %935 : vector<8x128xf32>
    %941 = arith.addf %940, %938 : vector<8x128xf32>
    %c66 = arith.constant 66 : index
    %942 = memref.load %arg3[%c66] : memref<128xf32, #tpu.memory_space<smem>>
    %943 = vector.broadcast %942 : f32 to vector<8x128xf32>
    %944 = arith.mulf %943, %908 : vector<8x128xf32>
    %c70 = arith.constant 70 : index
    %945 = memref.load %arg3[%c70] : memref<128xf32, #tpu.memory_space<smem>>
    %946 = vector.broadcast %945 : f32 to vector<8x128xf32>
    %947 = arith.mulf %946, %909 : vector<8x128xf32>
    %c74 = arith.constant 74 : index
    %948 = memref.load %arg3[%c74] : memref<128xf32, #tpu.memory_space<smem>>
    %949 = vector.broadcast %948 : f32 to vector<8x128xf32>
    %950 = arith.mulf %949, %910 : vector<8x128xf32>
    %c78 = arith.constant 78 : index
    %951 = memref.load %arg3[%c78] : memref<128xf32, #tpu.memory_space<smem>>
    %952 = vector.broadcast %951 : f32 to vector<8x128xf32>
    %953 = arith.mulf %952, %911 : vector<8x128xf32>
    %954 = arith.addf %944, %947 : vector<8x128xf32>
    %955 = arith.addf %954, %950 : vector<8x128xf32>
    %956 = arith.addf %955, %953 : vector<8x128xf32>
    %c67 = arith.constant 67 : index
    %957 = memref.load %arg3[%c67] : memref<128xf32, #tpu.memory_space<smem>>
    %958 = vector.broadcast %957 : f32 to vector<8x128xf32>
    %959 = arith.mulf %958, %908 : vector<8x128xf32>
    %c71 = arith.constant 71 : index
    %960 = memref.load %arg3[%c71] : memref<128xf32, #tpu.memory_space<smem>>
    %961 = vector.broadcast %960 : f32 to vector<8x128xf32>
    %962 = arith.mulf %961, %909 : vector<8x128xf32>
    %c75 = arith.constant 75 : index
    %963 = memref.load %arg3[%c75] : memref<128xf32, #tpu.memory_space<smem>>
    %964 = vector.broadcast %963 : f32 to vector<8x128xf32>
    %965 = arith.mulf %964, %910 : vector<8x128xf32>
    %c79 = arith.constant 79 : index
    %966 = memref.load %arg3[%c79] : memref<128xf32, #tpu.memory_space<smem>>
    %967 = vector.broadcast %966 : f32 to vector<8x128xf32>
    %968 = arith.mulf %967, %911 : vector<8x128xf32>
    %969 = arith.addf %959, %962 : vector<8x128xf32>
    %970 = arith.addf %969, %965 : vector<8x128xf32>
    %971 = arith.addf %970, %968 : vector<8x128xf32>
    %972 = arith.mulf %926, %926 : vector<8x128xf32>
    %973 = arith.mulf %941, %941 : vector<8x128xf32>
    %974 = arith.mulf %956, %956 : vector<8x128xf32>
    %975 = arith.mulf %971, %971 : vector<8x128xf32>
    %976 = arith.addf %972, %973 : vector<8x128xf32>
    %977 = arith.addf %976, %974 : vector<8x128xf32>
    %978 = arith.addf %977, %975 : vector<8x128xf32>
    %979 = math.sqrt %978 : vector<8x128xf32>
    %cst_230 = arith.constant 9.99999997E-7 : f32
    %980 = vector.broadcast %cst_230 : f32 to vector<8x128xf32>
    %981 = arith.addf %979, %980 : vector<8x128xf32>
    %982 = vector.broadcast %0 : f32 to vector<8x128xf32>
    %983 = arith.divf %982, %981 : vector<8x128xf32>
    %984 = arith.mulf %926, %983 : vector<8x128xf32>
    %985 = arith.cmpf one, %984, %984 : vector<8x128xf32>
    %cst_231 = arith.constant 0.000000e+00 : f32
    %986 = vector.broadcast %cst_231 : f32 to vector<8x128xf32>
    %987 = arith.select %985, %986, %984 : vector<8x128xi1>, vector<8x128xf32>
    %988 = arith.mulf %987, %901 : vector<8x128xf32>
    %989 = arith.mulf %941, %983 : vector<8x128xf32>
    %990 = arith.cmpf one, %989, %989 : vector<8x128xf32>
    %cst_232 = arith.constant 0.000000e+00 : f32
    %991 = vector.broadcast %cst_232 : f32 to vector<8x128xf32>
    %992 = arith.select %990, %991, %989 : vector<8x128xi1>, vector<8x128xf32>
    %993 = arith.mulf %992, %903 : vector<8x128xf32>
    %994 = arith.addf %988, %993 : vector<8x128xf32>
    %cst_233 = arith.constant 0.000000e+00 : f32
    %995 = vector.broadcast %cst_233 : f32 to vector<8x128xf32>
    %996 = arith.cmpf oge, %994, %995 : vector<8x128xf32>
    %cst_234 = arith.constant 9.99999974E-6 : f32
    %997 = vector.broadcast %cst_234 : f32 to vector<8x128xf32>
    %998 = arith.mulf %997, %994 : vector<8x128xf32>
    %999 = arith.select %996, %994, %998 : vector<8x128xi1>, vector<8x128xf32>
    %1000 = math.absf %999 : vector<8x128xf32>
    %1001 = arith.mulf %956, %983 : vector<8x128xf32>
    %1002 = arith.cmpf one, %1001, %1001 : vector<8x128xf32>
    %cst_235 = arith.constant 0.000000e+00 : f32
    %1003 = vector.broadcast %cst_235 : f32 to vector<8x128xf32>
    %1004 = arith.select %1002, %1003, %1001 : vector<8x128xi1>, vector<8x128xf32>
    %1005 = arith.mulf %1004, %901 : vector<8x128xf32>
    %1006 = arith.mulf %971, %983 : vector<8x128xf32>
    %1007 = arith.cmpf one, %1006, %1006 : vector<8x128xf32>
    %cst_236 = arith.constant 0.000000e+00 : f32
    %1008 = vector.broadcast %cst_236 : f32 to vector<8x128xf32>
    %1009 = arith.select %1007, %1008, %1006 : vector<8x128xi1>, vector<8x128xf32>
    %1010 = arith.mulf %1009, %903 : vector<8x128xf32>
    %1011 = arith.addf %1005, %1010 : vector<8x128xf32>
    %cst_237 = arith.constant 0.000000e+00 : f32
    %1012 = vector.broadcast %cst_237 : f32 to vector<8x128xf32>
    %1013 = arith.cmpf oge, %1011, %1012 : vector<8x128xf32>
    %cst_238 = arith.constant 9.99999974E-6 : f32
    %1014 = vector.broadcast %cst_238 : f32 to vector<8x128xf32>
    %1015 = arith.mulf %1014, %1011 : vector<8x128xf32>
    %1016 = arith.select %1013, %1011, %1015 : vector<8x128xi1>, vector<8x128xf32>
    %1017 = math.absf %1016 : vector<8x128xf32>
    %1018 = arith.addf %1000, %1017 : vector<8x128xf32>
    %cst_239 = arith.constant 1.000000e+00 : f32
    %1019 = vector.broadcast %cst_239 : f32 to vector<8x128xf32>
    %1020 = arith.divf %1019, %1018 : vector<8x128xf32>
    %1021 = arith.mulf %1000, %1020 : vector<8x128xf32>
    %c8_240 = arith.constant 8 : index
    %c0_241 = arith.constant 0 : index
    %c0_242 = arith.constant 0 : index
    %1022 = vector.load %arg5[%c8_240, %c0_241, %c0_242] : memref<16x8x128xf32, #tpu.memory_space<vmem>>, vector<1x8x128xf32>
    %1023 = vector.shape_cast %1022 : vector<1x8x128xf32> to vector<8x128xf32>
    %1024 = vector.shape_cast %1021 : vector<8x128xf32> to vector<1x8x128xf32>
    tpu.vector_store %arg5[%c8_240, %c0_241, %c0_242], %1024 {strides = array<i32>} : memref<16x8x128xf32, #tpu.memory_space<vmem>>, vector<1x8x128xf32>,
    %1025 = arith.mulf %1017, %1020 : vector<8x128xf32>
    %c9_243 = arith.constant 9 : index
    %c0_244 = arith.constant 0 : index
    %c0_245 = arith.constant 0 : index
    %1026 = vector.load %arg5[%c9_243, %c0_244, %c0_245] : memref<16x8x128xf32, #tpu.memory_space<vmem>>, vector<1x8x128xf32>
    %1027 = vector.shape_cast %1026 : vector<1x8x128xf32> to vector<8x128xf32>
    %1028 = vector.shape_cast %1025 : vector<8x128xf32> to vector<1x8x128xf32>
    tpu.vector_store %arg5[%c9_243, %c0_244, %c0_245], %1028 {strides = array<i32>} : memref<16x8x128xf32, #tpu.memory_space<vmem>>, vector<1x8x128xf32>,
    %1029 = arith.mulf %901, %901 : vector<8x128xf32>
    %1030 = arith.mulf %903, %903 : vector<8x128xf32>
    %1031 = arith.addf %1029, %1030 : vector<8x128xf32>
    %1032 = math.rsqrt %1031 : vector<8x128xf32>
    %1033 = arith.mulf %901, %1032 : vector<8x128xf32>
    %1034 = arith.mulf %903, %1032 : vector<8x128xf32>
    %c32_246 = arith.constant 32 : index
    %1035 = memref.load %arg2[%c32_246] : memref<64xf32, #tpu.memory_space<smem>>
    %1036 = vector.broadcast %1035 : f32 to vector<8x128xf32>
    %1037 = arith.mulf %1036, %1033 : vector<8x128xf32>
    %c33_247 = arith.constant 33 : index
    %1038 = memref.load %arg2[%c33_247] : memref<64xf32, #tpu.memory_space<smem>>
    %1039 = vector.broadcast %1038 : f32 to vector<8x128xf32>
    %1040 = arith.mulf %1039, %1034 : vector<8x128xf32>
    %1041 = arith.addf %1037, %1040 : vector<8x128xf32>
    %c34_248 = arith.constant 34 : index
    %1042 = memref.load %arg2[%c34_248] : memref<64xf32, #tpu.memory_space<smem>>
    %1043 = vector.broadcast %1042 : f32 to vector<8x128xf32>
    %1044 = arith.mulf %1043, %1033 : vector<8x128xf32>
    %c35_249 = arith.constant 35 : index
    %1045 = memref.load %arg2[%c35_249] : memref<64xf32, #tpu.memory_space<smem>>
    %1046 = vector.broadcast %1045 : f32 to vector<8x128xf32>
    %1047 = arith.mulf %1046, %1034 : vector<8x128xf32>
    %1048 = arith.addf %1044, %1047 : vector<8x128xf32>
    %c36_250 = arith.constant 36 : index
    %1049 = memref.load %arg2[%c36_250] : memref<64xf32, #tpu.memory_space<smem>>
    %1050 = vector.broadcast %1049 : f32 to vector<8x128xf32>
    %1051 = arith.mulf %1050, %1033 : vector<8x128xf32>
    %c37_251 = arith.constant 37 : index
    %1052 = memref.load %arg2[%c37_251] : memref<64xf32, #tpu.memory_space<smem>>
    %1053 = vector.broadcast %1052 : f32 to vector<8x128xf32>
    %1054 = arith.mulf %1053, %1034 : vector<8x128xf32>
    %1055 = arith.addf %1051, %1054 : vector<8x128xf32>
    %c38_252 = arith.constant 38 : index
    %1056 = memref.load %arg2[%c38_252] : memref<64xf32, #tpu.memory_space<smem>>
    %1057 = vector.broadcast %1056 : f32 to vector<8x128xf32>
    %1058 = arith.mulf %1057, %1033 : vector<8x128xf32>
    %c39_253 = arith.constant 39 : index
    %1059 = memref.load %arg2[%c39_253] : memref<64xf32, #tpu.memory_space<smem>>
    %1060 = vector.broadcast %1059 : f32 to vector<8x128xf32>
    %1061 = arith.mulf %1060, %1034 : vector<8x128xf32>
    %1062 = arith.addf %1058, %1061 : vector<8x128xf32>
    %1063 = arith.mulf %1041, %880 : vector<8x128xf32>
    %1064 = arith.mulf %1048, %883 : vector<8x128xf32>
    %1065 = arith.addf %1063, %1064 : vector<8x128xf32>
    %1066 = arith.mulf %1055, %880 : vector<8x128xf32>
    %1067 = arith.mulf %1062, %883 : vector<8x128xf32>
    %1068 = arith.addf %1066, %1067 : vector<8x128xf32>
    %1069 = arith.mulf %1065, %1065 : vector<8x128xf32>
    %1070 = arith.mulf %1068, %1068 : vector<8x128xf32>
    %1071 = arith.addf %1069, %1070 : vector<8x128xf32>
    %1072 = math.sqrt %1071 : vector<8x128xf32>
    %cst_254 = arith.constant 9.99999997E-7 : f32
    %1073 = vector.broadcast %cst_254 : f32 to vector<8x128xf32>
    %1074 = arith.addf %1072, %1073 : vector<8x128xf32>
    %cst_255 = arith.constant 1.000000e+00 : f32
    %1075 = vector.broadcast %cst_255 : f32 to vector<8x128xf32>
    %1076 = arith.divf %1075, %1074 : vector<8x128xf32>
    %1077 = arith.mulf %1065, %1076 : vector<8x128xf32>
    %1078 = arith.mulf %1068, %1076 : vector<8x128xf32>
    %c6_256 = arith.constant 6 : index
    %c0_257 = arith.constant 0 : index
    %c0_258 = arith.constant 0 : index
    %1079 = vector.load %arg7[%c6_256, %c0_257, %c0_258] : memref<14x8x128xf32, #tpu.memory_space<vmem>>, vector<1x8x128xf32>
    %1080 = vector.shape_cast %1079 : vector<1x8x128xf32> to vector<8x128xf32>
    %1081 = vector.shape_cast %1077 : vector<8x128xf32> to vector<1x8x128xf32>
    tpu.vector_store %arg7[%c6_256, %c0_257, %c0_258], %1081 {strides = array<i32>} : memref<14x8x128xf32, #tpu.memory_space<vmem>>, vector<1x8x128xf32>,
    %c7_259 = arith.constant 7 : index
    %c0_260 = arith.constant 0 : index
    %c0_261 = arith.constant 0 : index
    %1082 = vector.load %arg7[%c7_259, %c0_260, %c0_261] : memref<14x8x128xf32, #tpu.memory_space<vmem>>, vector<1x8x128xf32>
    %1083 = vector.shape_cast %1082 : vector<1x8x128xf32> to vector<8x128xf32>
    %1084 = vector.shape_cast %1078 : vector<8x128xf32> to vector<1x8x128xf32>
    tpu.vector_store %arg7[%c7_259, %c0_260, %c0_261], %1084 {strides = array<i32>} : memref<14x8x128xf32, #tpu.memory_space<vmem>>, vector<1x8x128xf32>,
    %c6_262 = arith.constant 6 : index
    %c0_263 = arith.constant 0 : index
    %c0_264 = arith.constant 0 : index
    %1085 = vector.load %arg4[%c6_262, %c0_263, %c0_264] : memref<16x8x128xf32, #tpu.memory_space<vmem>>, vector<1x8x128xf32>
    %1086 = vector.shape_cast %1085 : vector<1x8x128xf32> to vector<8x128xf32>
    %c7_265 = arith.constant 7 : index
    %c0_266 = arith.constant 0 : index
    %c0_267 = arith.constant 0 : index
    %1087 = vector.load %arg4[%c7_265, %c0_266, %c0_267] : memref<16x8x128xf32, #tpu.memory_space<vmem>>, vector<1x8x128xf32>
    %1088 = vector.shape_cast %1087 : vector<1x8x128xf32> to vector<8x128xf32>
    %c4_268 = arith.constant 4 : index
    %c0_269 = arith.constant 0 : index
    %c0_270 = arith.constant 0 : index
    %1089 = vector.load %arg6[%c4_268, %c0_269, %c0_270] : memref<14x8x128xf32, #tpu.memory_space<vmem>>, vector<1x8x128xf32>
    %1090 = vector.shape_cast %1089 : vector<1x8x128xf32> to vector<8x128xf32>
    %c5_271 = arith.constant 5 : index
    %c0_272 = arith.constant 0 : index
    %c0_273 = arith.constant 0 : index
    %1091 = vector.load %arg6[%c5_271, %c0_272, %c0_273] : memref<14x8x128xf32, #tpu.memory_space<vmem>>, vector<1x8x128xf32>
    %1092 = vector.shape_cast %1091 : vector<1x8x128xf32> to vector<8x128xf32>
    %1093 = arith.mulf %1090, %1077 : vector<8x128xf32>
    %1094 = arith.mulf %1090, %1078 : vector<8x128xf32>
    %1095 = arith.mulf %1092, %1077 : vector<8x128xf32>
    %1096 = arith.mulf %1092, %1078 : vector<8x128xf32>
    %c48_274 = arith.constant 48 : index
    %1097 = memref.load %arg3[%c48_274] : memref<128xf32, #tpu.memory_space<smem>>
    %1098 = vector.broadcast %1097 : f32 to vector<8x128xf32>
    %1099 = arith.mulf %1098, %1093 : vector<8x128xf32>
    %c52_275 = arith.constant 52 : index
    %1100 = memref.load %arg3[%c52_275] : memref<128xf32, #tpu.memory_space<smem>>
    %1101 = vector.broadcast %1100 : f32 to vector<8x128xf32>
    %1102 = arith.mulf %1101, %1094 : vector<8x128xf32>
    %c56_276 = arith.constant 56 : index
    %1103 = memref.load %arg3[%c56_276] : memref<128xf32, #tpu.memory_space<smem>>
    %1104 = vector.broadcast %1103 : f32 to vector<8x128xf32>
    %1105 = arith.mulf %1104, %1095 : vector<8x128xf32>
    %c60_277 = arith.constant 60 : index
    %1106 = memref.load %arg3[%c60_277] : memref<128xf32, #tpu.memory_space<smem>>
    %1107 = vector.broadcast %1106 : f32 to vector<8x128xf32>
    %1108 = arith.mulf %1107, %1096 : vector<8x128xf32>
    %1109 = arith.addf %1099, %1102 : vector<8x128xf32>
    %1110 = arith.addf %1109, %1105 : vector<8x128xf32>
    %1111 = arith.addf %1110, %1108 : vector<8x128xf32>
    %c49_278 = arith.constant 49 : index
    %1112 = memref.load %arg3[%c49_278] : memref<128xf32, #tpu.memory_space<smem>>
    %1113 = vector.broadcast %1112 : f32 to vector<8x128xf32>
    %1114 = arith.mulf %1113, %1093 : vector<8x128xf32>
    %c53_279 = arith.constant 53 : index
    %1115 = memref.load %arg3[%c53_279] : memref<128xf32, #tpu.memory_space<smem>>
    %1116 = vector.broadcast %1115 : f32 to vector<8x128xf32>
    %1117 = arith.mulf %1116, %1094 : vector<8x128xf32>
    %c57_280 = arith.constant 57 : index
    %1118 = memref.load %arg3[%c57_280] : memref<128xf32, #tpu.memory_space<smem>>
    %1119 = vector.broadcast %1118 : f32 to vector<8x128xf32>
    %1120 = arith.mulf %1119, %1095 : vector<8x128xf32>
    %c61_281 = arith.constant 61 : index
    %1121 = memref.load %arg3[%c61_281] : memref<128xf32, #tpu.memory_space<smem>>
    %1122 = vector.broadcast %1121 : f32 to vector<8x128xf32>
    %1123 = arith.mulf %1122, %1096 : vector<8x128xf32>
    %1124 = arith.addf %1114, %1117 : vector<8x128xf32>
    %1125 = arith.addf %1124, %1120 : vector<8x128xf32>
    %1126 = arith.addf %1125, %1123 : vector<8x128xf32>
    %c50_282 = arith.constant 50 : index
    %1127 = memref.load %arg3[%c50_282] : memref<128xf32, #tpu.memory_space<smem>>
    %1128 = vector.broadcast %1127 : f32 to vector<8x128xf32>
    %1129 = arith.mulf %1128, %1093 : vector<8x128xf32>
    %c54_283 = arith.constant 54 : index
    %1130 = memref.load %arg3[%c54_283] : memref<128xf32, #tpu.memory_space<smem>>
    %1131 = vector.broadcast %1130 : f32 to vector<8x128xf32>
    %1132 = arith.mulf %1131, %1094 : vector<8x128xf32>
    %c58 = arith.constant 58 : index
    %1133 = memref.load %arg3[%c58] : memref<128xf32, #tpu.memory_space<smem>>
    %1134 = vector.broadcast %1133 : f32 to vector<8x128xf32>
    %1135 = arith.mulf %1134, %1095 : vector<8x128xf32>
    %c62 = arith.constant 62 : index
    %1136 = memref.load %arg3[%c62] : memref<128xf32, #tpu.memory_space<smem>>
    %1137 = vector.broadcast %1136 : f32 to vector<8x128xf32>
    %1138 = arith.mulf %1137, %1096 : vector<8x128xf32>
    %1139 = arith.addf %1129, %1132 : vector<8x128xf32>
    %1140 = arith.addf %1139, %1135 : vector<8x128xf32>
    %1141 = arith.addf %1140, %1138 : vector<8x128xf32>
    %c51_284 = arith.constant 51 : index
    %1142 = memref.load %arg3[%c51_284] : memref<128xf32, #tpu.memory_space<smem>>
    %1143 = vector.broadcast %1142 : f32 to vector<8x128xf32>
    %1144 = arith.mulf %1143, %1093 : vector<8x128xf32>
    %c55_285 = arith.constant 55 : index
    %1145 = memref.load %arg3[%c55_285] : memref<128xf32, #tpu.memory_space<smem>>
    %1146 = vector.broadcast %1145 : f32 to vector<8x128xf32>
    %1147 = arith.mulf %1146, %1094 : vector<8x128xf32>
    %c59 = arith.constant 59 : index
    %1148 = memref.load %arg3[%c59] : memref<128xf32, #tpu.memory_space<smem>>
    %1149 = vector.broadcast %1148 : f32 to vector<8x128xf32>
    %1150 = arith.mulf %1149, %1095 : vector<8x128xf32>
    %c63 = arith.constant 63 : index
    %1151 = memref.load %arg3[%c63] : memref<128xf32, #tpu.memory_space<smem>>
    %1152 = vector.broadcast %1151 : f32 to vector<8x128xf32>
    %1153 = arith.mulf %1152, %1096 : vector<8x128xf32>
    %1154 = arith.addf %1144, %1147 : vector<8x128xf32>
    %1155 = arith.addf %1154, %1150 : vector<8x128xf32>
    %1156 = arith.addf %1155, %1153 : vector<8x128xf32>
    %1157 = arith.mulf %1111, %1111 : vector<8x128xf32>
    %1158 = arith.mulf %1126, %1126 : vector<8x128xf32>
    %1159 = arith.mulf %1141, %1141 : vector<8x128xf32>
    %1160 = arith.mulf %1156, %1156 : vector<8x128xf32>
    %1161 = arith.addf %1157, %1158 : vector<8x128xf32>
    %1162 = arith.addf %1161, %1159 : vector<8x128xf32>
    %1163 = arith.addf %1162, %1160 : vector<8x128xf32>
    %1164 = math.sqrt %1163 : vector<8x128xf32>
    %cst_286 = arith.constant 9.99999997E-7 : f32
    %1165 = vector.broadcast %cst_286 : f32 to vector<8x128xf32>
    %1166 = arith.addf %1164, %1165 : vector<8x128xf32>
    %1167 = vector.broadcast %0 : f32 to vector<8x128xf32>
    %1168 = arith.divf %1167, %1166 : vector<8x128xf32>
    %1169 = arith.mulf %1111, %1168 : vector<8x128xf32>
    %1170 = arith.cmpf one, %1169, %1169 : vector<8x128xf32>
    %cst_287 = arith.constant 0.000000e+00 : f32
    %1171 = vector.broadcast %cst_287 : f32 to vector<8x128xf32>
    %1172 = arith.select %1170, %1171, %1169 : vector<8x128xi1>, vector<8x128xf32>
    %1173 = arith.mulf %1172, %1086 : vector<8x128xf32>
    %1174 = arith.mulf %1126, %1168 : vector<8x128xf32>
    %1175 = arith.cmpf one, %1174, %1174 : vector<8x128xf32>
    %cst_288 = arith.constant 0.000000e+00 : f32
    %1176 = vector.broadcast %cst_288 : f32 to vector<8x128xf32>
    %1177 = arith.select %1175, %1176, %1174 : vector<8x128xi1>, vector<8x128xf32>
    %1178 = arith.mulf %1177, %1088 : vector<8x128xf32>
    %1179 = arith.addf %1173, %1178 : vector<8x128xf32>
    %cst_289 = arith.constant 0.000000e+00 : f32
    %1180 = vector.broadcast %cst_289 : f32 to vector<8x128xf32>
    %1181 = arith.cmpf oge, %1179, %1180 : vector<8x128xf32>
    %cst_290 = arith.constant 9.99999974E-6 : f32
    %1182 = vector.broadcast %cst_290 : f32 to vector<8x128xf32>
    %1183 = arith.mulf %1182, %1179 : vector<8x128xf32>
    %1184 = arith.select %1181, %1179, %1183 : vector<8x128xi1>, vector<8x128xf32>
    %1185 = math.absf %1184 : vector<8x128xf32>
    %1186 = arith.mulf %1141, %1168 : vector<8x128xf32>
    %1187 = arith.cmpf one, %1186, %1186 : vector<8x128xf32>
    %cst_291 = arith.constant 0.000000e+00 : f32
    %1188 = vector.broadcast %cst_291 : f32 to vector<8x128xf32>
    %1189 = arith.select %1187, %1188, %1186 : vector<8x128xi1>, vector<8x128xf32>
    %1190 = arith.mulf %1189, %1086 : vector<8x128xf32>
    %1191 = arith.mulf %1156, %1168 : vector<8x128xf32>
    %1192 = arith.cmpf one, %1191, %1191 : vector<8x128xf32>
    %cst_292 = arith.constant 0.000000e+00 : f32
    %1193 = vector.broadcast %cst_292 : f32 to vector<8x128xf32>
    %1194 = arith.select %1192, %1193, %1191 : vector<8x128xi1>, vector<8x128xf32>
    %1195 = arith.mulf %1194, %1088 : vector<8x128xf32>
    %1196 = arith.addf %1190, %1195 : vector<8x128xf32>
    %cst_293 = arith.constant 0.000000e+00 : f32
    %1197 = vector.broadcast %cst_293 : f32 to vector<8x128xf32>
    %1198 = arith.cmpf oge, %1196, %1197 : vector<8x128xf32>
    %cst_294 = arith.constant 9.99999974E-6 : f32
    %1199 = vector.broadcast %cst_294 : f32 to vector<8x128xf32>
    %1200 = arith.mulf %1199, %1196 : vector<8x128xf32>
    %1201 = arith.select %1198, %1196, %1200 : vector<8x128xi1>, vector<8x128xf32>
    %1202 = math.absf %1201 : vector<8x128xf32>
    %1203 = arith.addf %1185, %1202 : vector<8x128xf32>
    %cst_295 = arith.constant 1.000000e+00 : f32
    %1204 = vector.broadcast %cst_295 : f32 to vector<8x128xf32>
    %1205 = arith.divf %1204, %1203 : vector<8x128xf32>
    %1206 = arith.mulf %1185, %1205 : vector<8x128xf32>
    %c6_296 = arith.constant 6 : index
    %c0_297 = arith.constant 0 : index
    %c0_298 = arith.constant 0 : index
    %1207 = vector.load %arg5[%c6_296, %c0_297, %c0_298] : memref<16x8x128xf32, #tpu.memory_space<vmem>>, vector<1x8x128xf32>
    %1208 = vector.shape_cast %1207 : vector<1x8x128xf32> to vector<8x128xf32>
    %1209 = vector.shape_cast %1206 : vector<8x128xf32> to vector<1x8x128xf32>
    tpu.vector_store %arg5[%c6_296, %c0_297, %c0_298], %1209 {strides = array<i32>} : memref<16x8x128xf32, #tpu.memory_space<vmem>>, vector<1x8x128xf32>,
    %1210 = arith.mulf %1202, %1205 : vector<8x128xf32>
    %c7_299 = arith.constant 7 : index
    %c0_300 = arith.constant 0 : index
    %c0_301 = arith.constant 0 : index
    %1211 = vector.load %arg5[%c7_299, %c0_300, %c0_301] : memref<16x8x128xf32, #tpu.memory_space<vmem>>, vector<1x8x128xf32>
    %1212 = vector.shape_cast %1211 : vector<1x8x128xf32> to vector<8x128xf32>
    %1213 = vector.shape_cast %1210 : vector<8x128xf32> to vector<1x8x128xf32>
    tpu.vector_store %arg5[%c7_299, %c0_300, %c0_301], %1213 {strides = array<i32>} : memref<16x8x128xf32, #tpu.memory_space<vmem>>, vector<1x8x128xf32>,
    %1214 = arith.mulf %1086, %1086 : vector<8x128xf32>
    %1215 = arith.mulf %1088, %1088 : vector<8x128xf32>
    %1216 = arith.addf %1214, %1215 : vector<8x128xf32>
    %1217 = math.rsqrt %1216 : vector<8x128xf32>
    %1218 = arith.mulf %1086, %1217 : vector<8x128xf32>
    %1219 = arith.mulf %1088, %1217 : vector<8x128xf32>
    %c24_302 = arith.constant 24 : index
    %1220 = memref.load %arg2[%c24_302] : memref<64xf32, #tpu.memory_space<smem>>
    %1221 = vector.broadcast %1220 : f32 to vector<8x128xf32>
    %1222 = arith.mulf %1221, %1218 : vector<8x128xf32>
    %c25_303 = arith.constant 25 : index
    %1223 = memref.load %arg2[%c25_303] : memref<64xf32, #tpu.memory_space<smem>>
    %1224 = vector.broadcast %1223 : f32 to vector<8x128xf32>
    %1225 = arith.mulf %1224, %1219 : vector<8x128xf32>
    %1226 = arith.addf %1222, %1225 : vector<8x128xf32>
    %c26_304 = arith.constant 26 : index
    %1227 = memref.load %arg2[%c26_304] : memref<64xf32, #tpu.memory_space<smem>>
    %1228 = vector.broadcast %1227 : f32 to vector<8x128xf32>
    %1229 = arith.mulf %1228, %1218 : vector<8x128xf32>
    %c27_305 = arith.constant 27 : index
    %1230 = memref.load %arg2[%c27_305] : memref<64xf32, #tpu.memory_space<smem>>
    %1231 = vector.broadcast %1230 : f32 to vector<8x128xf32>
    %1232 = arith.mulf %1231, %1219 : vector<8x128xf32>
    %1233 = arith.addf %1229, %1232 : vector<8x128xf32>
    %c28_306 = arith.constant 28 : index
    %1234 = memref.load %arg2[%c28_306] : memref<64xf32, #tpu.memory_space<smem>>
    %1235 = vector.broadcast %1234 : f32 to vector<8x128xf32>
    %1236 = arith.mulf %1235, %1218 : vector<8x128xf32>
    %c29_307 = arith.constant 29 : index
    %1237 = memref.load %arg2[%c29_307] : memref<64xf32, #tpu.memory_space<smem>>
    %1238 = vector.broadcast %1237 : f32 to vector<8x128xf32>
    %1239 = arith.mulf %1238, %1219 : vector<8x128xf32>
    %1240 = arith.addf %1236, %1239 : vector<8x128xf32>
    %c30_308 = arith.constant 30 : index
    %1241 = memref.load %arg2[%c30_308] : memref<64xf32, #tpu.memory_space<smem>>
    %1242 = vector.broadcast %1241 : f32 to vector<8x128xf32>
    %1243 = arith.mulf %1242, %1218 : vector<8x128xf32>
    %c31_309 = arith.constant 31 : index
    %1244 = memref.load %arg2[%c31_309] : memref<64xf32, #tpu.memory_space<smem>>
    %1245 = vector.broadcast %1244 : f32 to vector<8x128xf32>
    %1246 = arith.mulf %1245, %1219 : vector<8x128xf32>
    %1247 = arith.addf %1243, %1246 : vector<8x128xf32>
    %1248 = arith.mulf %1226, %1065 : vector<8x128xf32>
    %1249 = arith.mulf %1233, %1068 : vector<8x128xf32>
    %1250 = arith.addf %1248, %1249 : vector<8x128xf32>
    %1251 = arith.mulf %1240, %1065 : vector<8x128xf32>
    %1252 = arith.mulf %1247, %1068 : vector<8x128xf32>
    %1253 = arith.addf %1251, %1252 : vector<8x128xf32>
    %1254 = arith.mulf %1250, %1250 : vector<8x128xf32>
    %1255 = arith.mulf %1253, %1253 : vector<8x128xf32>
    %1256 = arith.addf %1254, %1255 : vector<8x128xf32>
    %1257 = math.sqrt %1256 : vector<8x128xf32>
    %cst_310 = arith.constant 9.99999997E-7 : f32
    %1258 = vector.broadcast %cst_310 : f32 to vector<8x128xf32>
    %1259 = arith.addf %1257, %1258 : vector<8x128xf32>
    %cst_311 = arith.constant 1.000000e+00 : f32
    %1260 = vector.broadcast %cst_311 : f32 to vector<8x128xf32>
    %1261 = arith.divf %1260, %1259 : vector<8x128xf32>
    %1262 = arith.mulf %1250, %1261 : vector<8x128xf32>
    %1263 = arith.mulf %1253, %1261 : vector<8x128xf32>
    %c4_312 = arith.constant 4 : index
    %c0_313 = arith.constant 0 : index
    %c0_314 = arith.constant 0 : index
    %1264 = vector.load %arg7[%c4_312, %c0_313, %c0_314] : memref<14x8x128xf32, #tpu.memory_space<vmem>>, vector<1x8x128xf32>
    %1265 = vector.shape_cast %1264 : vector<1x8x128xf32> to vector<8x128xf32>
    %1266 = vector.shape_cast %1262 : vector<8x128xf32> to vector<1x8x128xf32>
    tpu.vector_store %arg7[%c4_312, %c0_313, %c0_314], %1266 {strides = array<i32>} : memref<14x8x128xf32, #tpu.memory_space<vmem>>, vector<1x8x128xf32>,
    %c5_315 = arith.constant 5 : index
    %c0_316 = arith.constant 0 : index
    %c0_317 = arith.constant 0 : index
    %1267 = vector.load %arg7[%c5_315, %c0_316, %c0_317] : memref<14x8x128xf32, #tpu.memory_space<vmem>>, vector<1x8x128xf32>
    %1268 = vector.shape_cast %1267 : vector<1x8x128xf32> to vector<8x128xf32>
    %1269 = vector.shape_cast %1263 : vector<8x128xf32> to vector<1x8x128xf32>
    tpu.vector_store %arg7[%c5_315, %c0_316, %c0_317], %1269 {strides = array<i32>} : memref<14x8x128xf32, #tpu.memory_space<vmem>>, vector<1x8x128xf32>,
    %c4_318 = arith.constant 4 : index
    %c0_319 = arith.constant 0 : index
    %c0_320 = arith.constant 0 : index
    %1270 = vector.load %arg4[%c4_318, %c0_319, %c0_320] : memref<16x8x128xf32, #tpu.memory_space<vmem>>, vector<1x8x128xf32>
    %1271 = vector.shape_cast %1270 : vector<1x8x128xf32> to vector<8x128xf32>
    %c5_321 = arith.constant 5 : index
    %c0_322 = arith.constant 0 : index
    %c0_323 = arith.constant 0 : index
    %1272 = vector.load %arg4[%c5_321, %c0_322, %c0_323] : memref<16x8x128xf32, #tpu.memory_space<vmem>>, vector<1x8x128xf32>
    %1273 = vector.shape_cast %1272 : vector<1x8x128xf32> to vector<8x128xf32>
    %c2_324 = arith.constant 2 : index
    %c0_325 = arith.constant 0 : index
    %c0_326 = arith.constant 0 : index
    %1274 = vector.load %arg6[%c2_324, %c0_325, %c0_326] : memref<14x8x128xf32, #tpu.memory_space<vmem>>, vector<1x8x128xf32>
    %1275 = vector.shape_cast %1274 : vector<1x8x128xf32> to vector<8x128xf32>
    %c3_327 = arith.constant 3 : index
    %c0_328 = arith.constant 0 : index
    %c0_329 = arith.constant 0 : index
    %1276 = vector.load %arg6[%c3_327, %c0_328, %c0_329] : memref<14x8x128xf32, #tpu.memory_space<vmem>>, vector<1x8x128xf32>
    %1277 = vector.shape_cast %1276 : vector<1x8x128xf32> to vector<8x128xf32>
    %1278 = arith.mulf %1275, %1262 : vector<8x128xf32>
    %1279 = arith.mulf %1275, %1263 : vector<8x128xf32>
    %1280 = arith.mulf %1277, %1262 : vector<8x128xf32>
    %1281 = arith.mulf %1277, %1263 : vector<8x128xf32>
    %c32_330 = arith.constant 32 : index
    %1282 = memref.load %arg3[%c32_330] : memref<128xf32, #tpu.memory_space<smem>>
    %1283 = vector.broadcast %1282 : f32 to vector<8x128xf32>
    %1284 = arith.mulf %1283, %1278 : vector<8x128xf32>
    %c36_331 = arith.constant 36 : index
    %1285 = memref.load %arg3[%c36_331] : memref<128xf32, #tpu.memory_space<smem>>
    %1286 = vector.broadcast %1285 : f32 to vector<8x128xf32>
    %1287 = arith.mulf %1286, %1279 : vector<8x128xf32>
    %c40_332 = arith.constant 40 : index
    %1288 = memref.load %arg3[%c40_332] : memref<128xf32, #tpu.memory_space<smem>>
    %1289 = vector.broadcast %1288 : f32 to vector<8x128xf32>
    %1290 = arith.mulf %1289, %1280 : vector<8x128xf32>
    %c44_333 = arith.constant 44 : index
    %1291 = memref.load %arg3[%c44_333] : memref<128xf32, #tpu.memory_space<smem>>
    %1292 = vector.broadcast %1291 : f32 to vector<8x128xf32>
    %1293 = arith.mulf %1292, %1281 : vector<8x128xf32>
    %1294 = arith.addf %1284, %1287 : vector<8x128xf32>
    %1295 = arith.addf %1294, %1290 : vector<8x128xf32>
    %1296 = arith.addf %1295, %1293 : vector<8x128xf32>
    %c33_334 = arith.constant 33 : index
    %1297 = memref.load %arg3[%c33_334] : memref<128xf32, #tpu.memory_space<smem>>
    %1298 = vector.broadcast %1297 : f32 to vector<8x128xf32>
    %1299 = arith.mulf %1298, %1278 : vector<8x128xf32>
    %c37_335 = arith.constant 37 : index
    %1300 = memref.load %arg3[%c37_335] : memref<128xf32, #tpu.memory_space<smem>>
    %1301 = vector.broadcast %1300 : f32 to vector<8x128xf32>
    %1302 = arith.mulf %1301, %1279 : vector<8x128xf32>
    %c41_336 = arith.constant 41 : index
    %1303 = memref.load %arg3[%c41_336] : memref<128xf32, #tpu.memory_space<smem>>
    %1304 = vector.broadcast %1303 : f32 to vector<8x128xf32>
    %1305 = arith.mulf %1304, %1280 : vector<8x128xf32>
    %c45_337 = arith.constant 45 : index
    %1306 = memref.load %arg3[%c45_337] : memref<128xf32, #tpu.memory_space<smem>>
    %1307 = vector.broadcast %1306 : f32 to vector<8x128xf32>
    %1308 = arith.mulf %1307, %1281 : vector<8x128xf32>
    %1309 = arith.addf %1299, %1302 : vector<8x128xf32>
    %1310 = arith.addf %1309, %1305 : vector<8x128xf32>
    %1311 = arith.addf %1310, %1308 : vector<8x128xf32>
    %c34_338 = arith.constant 34 : index
    %1312 = memref.load %arg3[%c34_338] : memref<128xf32, #tpu.memory_space<smem>>
    %1313 = vector.broadcast %1312 : f32 to vector<8x128xf32>
    %1314 = arith.mulf %1313, %1278 : vector<8x128xf32>
    %c38_339 = arith.constant 38 : index
    %1315 = memref.load %arg3[%c38_339] : memref<128xf32, #tpu.memory_space<smem>>
    %1316 = vector.broadcast %1315 : f32 to vector<8x128xf32>
    %1317 = arith.mulf %1316, %1279 : vector<8x128xf32>
    %c42_340 = arith.constant 42 : index
    %1318 = memref.load %arg3[%c42_340] : memref<128xf32, #tpu.memory_space<smem>>
    %1319 = vector.broadcast %1318 : f32 to vector<8x128xf32>
    %1320 = arith.mulf %1319, %1280 : vector<8x128xf32>
    %c46_341 = arith.constant 46 : index
    %1321 = memref.load %arg3[%c46_341] : memref<128xf32, #tpu.memory_space<smem>>
    %1322 = vector.broadcast %1321 : f32 to vector<8x128xf32>
    %1323 = arith.mulf %1322, %1281 : vector<8x128xf32>
    %1324 = arith.addf %1314, %1317 : vector<8x128xf32>
    %1325 = arith.addf %1324, %1320 : vector<8x128xf32>
    %1326 = arith.addf %1325, %1323 : vector<8x128xf32>
    %c35_342 = arith.constant 35 : index
    %1327 = memref.load %arg3[%c35_342] : memref<128xf32, #tpu.memory_space<smem>>
    %1328 = vector.broadcast %1327 : f32 to vector<8x128xf32>
    %1329 = arith.mulf %1328, %1278 : vector<8x128xf32>
    %c39_343 = arith.constant 39 : index
    %1330 = memref.load %arg3[%c39_343] : memref<128xf32, #tpu.memory_space<smem>>
    %1331 = vector.broadcast %1330 : f32 to vector<8x128xf32>
    %1332 = arith.mulf %1331, %1279 : vector<8x128xf32>
    %c43_344 = arith.constant 43 : index
    %1333 = memref.load %arg3[%c43_344] : memref<128xf32, #tpu.memory_space<smem>>
    %1334 = vector.broadcast %1333 : f32 to vector<8x128xf32>
    %1335 = arith.mulf %1334, %1280 : vector<8x128xf32>
    %c47_345 = arith.constant 47 : index
    %1336 = memref.load %arg3[%c47_345] : memref<128xf32, #tpu.memory_space<smem>>
    %1337 = vector.broadcast %1336 : f32 to vector<8x128xf32>
    %1338 = arith.mulf %1337, %1281 : vector<8x128xf32>
    %1339 = arith.addf %1329, %1332 : vector<8x128xf32>
    %1340 = arith.addf %1339, %1335 : vector<8x128xf32>
    %1341 = arith.addf %1340, %1338 : vector<8x128xf32>
    %1342 = arith.mulf %1296, %1296 : vector<8x128xf32>
    %1343 = arith.mulf %1311, %1311 : vector<8x128xf32>
    %1344 = arith.mulf %1326, %1326 : vector<8x128xf32>
    %1345 = arith.mulf %1341, %1341 : vector<8x128xf32>
    %1346 = arith.addf %1342, %1343 : vector<8x128xf32>
    %1347 = arith.addf %1346, %1344 : vector<8x128xf32>
    %1348 = arith.addf %1347, %1345 : vector<8x128xf32>
    %1349 = math.sqrt %1348 : vector<8x128xf32>
    %cst_346 = arith.constant 9.99999997E-7 : f32
    %1350 = vector.broadcast %cst_346 : f32 to vector<8x128xf32>
    %1351 = arith.addf %1349, %1350 : vector<8x128xf32>
    %1352 = vector.broadcast %0 : f32 to vector<8x128xf32>
    %1353 = arith.divf %1352, %1351 : vector<8x128xf32>
    %1354 = arith.mulf %1296, %1353 : vector<8x128xf32>
    %1355 = arith.cmpf one, %1354, %1354 : vector<8x128xf32>
    %cst_347 = arith.constant 0.000000e+00 : f32
    %1356 = vector.broadcast %cst_347 : f32 to vector<8x128xf32>
    %1357 = arith.select %1355, %1356, %1354 : vector<8x128xi1>, vector<8x128xf32>
    %1358 = arith.mulf %1357, %1271 : vector<8x128xf32>
    %1359 = arith.mulf %1311, %1353 : vector<8x128xf32>
    %1360 = arith.cmpf one, %1359, %1359 : vector<8x128xf32>
    %cst_348 = arith.constant 0.000000e+00 : f32
    %1361 = vector.broadcast %cst_348 : f32 to vector<8x128xf32>
    %1362 = arith.select %1360, %1361, %1359 : vector<8x128xi1>, vector<8x128xf32>
    %1363 = arith.mulf %1362, %1273 : vector<8x128xf32>
    %1364 = arith.addf %1358, %1363 : vector<8x128xf32>
    %cst_349 = arith.constant 0.000000e+00 : f32
    %1365 = vector.broadcast %cst_349 : f32 to vector<8x128xf32>
    %1366 = arith.cmpf oge, %1364, %1365 : vector<8x128xf32>
    %cst_350 = arith.constant 9.99999974E-6 : f32
    %1367 = vector.broadcast %cst_350 : f32 to vector<8x128xf32>
    %1368 = arith.mulf %1367, %1364 : vector<8x128xf32>
    %1369 = arith.select %1366, %1364, %1368 : vector<8x128xi1>, vector<8x128xf32>
    %1370 = math.absf %1369 : vector<8x128xf32>
    %1371 = arith.mulf %1326, %1353 : vector<8x128xf32>
    %1372 = arith.cmpf one, %1371, %1371 : vector<8x128xf32>
    %cst_351 = arith.constant 0.000000e+00 : f32
    %1373 = vector.broadcast %cst_351 : f32 to vector<8x128xf32>
    %1374 = arith.select %1372, %1373, %1371 : vector<8x128xi1>, vector<8x128xf32>
    %1375 = arith.mulf %1374, %1271 : vector<8x128xf32>
    %1376 = arith.mulf %1341, %1353 : vector<8x128xf32>
    %1377 = arith.cmpf one, %1376, %1376 : vector<8x128xf32>
    %cst_352 = arith.constant 0.000000e+00 : f32
    %1378 = vector.broadcast %cst_352 : f32 to vector<8x128xf32>
    %1379 = arith.select %1377, %1378, %1376 : vector<8x128xi1>, vector<8x128xf32>
    %1380 = arith.mulf %1379, %1273 : vector<8x128xf32>
    %1381 = arith.addf %1375, %1380 : vector<8x128xf32>
    %cst_353 = arith.constant 0.000000e+00 : f32
    %1382 = vector.broadcast %cst_353 : f32 to vector<8x128xf32>
    %1383 = arith.cmpf oge, %1381, %1382 : vector<8x128xf32>
    %cst_354 = arith.constant 9.99999974E-6 : f32
    %1384 = vector.broadcast %cst_354 : f32 to vector<8x128xf32>
    %1385 = arith.mulf %1384, %1381 : vector<8x128xf32>
    %1386 = arith.select %1383, %1381, %1385 : vector<8x128xi1>, vector<8x128xf32>
    %1387 = math.absf %1386 : vector<8x128xf32>
    %1388 = arith.addf %1370, %1387 : vector<8x128xf32>
    %cst_355 = arith.constant 1.000000e+00 : f32
    %1389 = vector.broadcast %cst_355 : f32 to vector<8x128xf32>
    %1390 = arith.divf %1389, %1388 : vector<8x128xf32>
    %1391 = arith.mulf %1370, %1390 : vector<8x128xf32>
    %c4_356 = arith.constant 4 : index
    %c0_357 = arith.constant 0 : index
    %c0_358 = arith.constant 0 : index
    %1392 = vector.load %arg5[%c4_356, %c0_357, %c0_358] : memref<16x8x128xf32, #tpu.memory_space<vmem>>, vector<1x8x128xf32>
    %1393 = vector.shape_cast %1392 : vector<1x8x128xf32> to vector<8x128xf32>
    %1394 = vector.shape_cast %1391 : vector<8x128xf32> to vector<1x8x128xf32>
    tpu.vector_store %arg5[%c4_356, %c0_357, %c0_358], %1394 {strides = array<i32>} : memref<16x8x128xf32, #tpu.memory_space<vmem>>, vector<1x8x128xf32>,
    %1395 = arith.mulf %1387, %1390 : vector<8x128xf32>
    %c5_359 = arith.constant 5 : index
    %c0_360 = arith.constant 0 : index
    %c0_361 = arith.constant 0 : index
    %1396 = vector.load %arg5[%c5_359, %c0_360, %c0_361] : memref<16x8x128xf32, #tpu.memory_space<vmem>>, vector<1x8x128xf32>
    %1397 = vector.shape_cast %1396 : vector<1x8x128xf32> to vector<8x128xf32>
    %1398 = vector.shape_cast %1395 : vector<8x128xf32> to vector<1x8x128xf32>
    tpu.vector_store %arg5[%c5_359, %c0_360, %c0_361], %1398 {strides = array<i32>} : memref<16x8x128xf32, #tpu.memory_space<vmem>>, vector<1x8x128xf32>,
    %1399 = arith.mulf %1271, %1271 : vector<8x128xf32>
    %1400 = arith.mulf %1273, %1273 : vector<8x128xf32>
    %1401 = arith.addf %1399, %1400 : vector<8x128xf32>
    %1402 = math.rsqrt %1401 : vector<8x128xf32>
    %1403 = arith.mulf %1271, %1402 : vector<8x128xf32>
    %1404 = arith.mulf %1273, %1402 : vector<8x128xf32>
    %c16_362 = arith.constant 16 : index
    %1405 = memref.load %arg2[%c16_362] : memref<64xf32, #tpu.memory_space<smem>>
    %1406 = vector.broadcast %1405 : f32 to vector<8x128xf32>
    %1407 = arith.mulf %1406, %1403 : vector<8x128xf32>
    %c17_363 = arith.constant 17 : index
    %1408 = memref.load %arg2[%c17_363] : memref<64xf32, #tpu.memory_space<smem>>
    %1409 = vector.broadcast %1408 : f32 to vector<8x128xf32>
    %1410 = arith.mulf %1409, %1404 : vector<8x128xf32>
    %1411 = arith.addf %1407, %1410 : vector<8x128xf32>
    %c18_364 = arith.constant 18 : index
    %1412 = memref.load %arg2[%c18_364] : memref<64xf32, #tpu.memory_space<smem>>
    %1413 = vector.broadcast %1412 : f32 to vector<8x128xf32>
    %1414 = arith.mulf %1413, %1403 : vector<8x128xf32>
    %c19_365 = arith.constant 19 : index
    %1415 = memref.load %arg2[%c19_365] : memref<64xf32, #tpu.memory_space<smem>>
    %1416 = vector.broadcast %1415 : f32 to vector<8x128xf32>
    %1417 = arith.mulf %1416, %1404 : vector<8x128xf32>
    %1418 = arith.addf %1414, %1417 : vector<8x128xf32>
    %c20_366 = arith.constant 20 : index
    %1419 = memref.load %arg2[%c20_366] : memref<64xf32, #tpu.memory_space<smem>>
    %1420 = vector.broadcast %1419 : f32 to vector<8x128xf32>
    %1421 = arith.mulf %1420, %1403 : vector<8x128xf32>
    %c21_367 = arith.constant 21 : index
    %1422 = memref.load %arg2[%c21_367] : memref<64xf32, #tpu.memory_space<smem>>
    %1423 = vector.broadcast %1422 : f32 to vector<8x128xf32>
    %1424 = arith.mulf %1423, %1404 : vector<8x128xf32>
    %1425 = arith.addf %1421, %1424 : vector<8x128xf32>
    %c22_368 = arith.constant 22 : index
    %1426 = memref.load %arg2[%c22_368] : memref<64xf32, #tpu.memory_space<smem>>
    %1427 = vector.broadcast %1426 : f32 to vector<8x128xf32>
    %1428 = arith.mulf %1427, %1403 : vector<8x128xf32>
    %c23_369 = arith.constant 23 : index
    %1429 = memref.load %arg2[%c23_369] : memref<64xf32, #tpu.memory_space<smem>>
    %1430 = vector.broadcast %1429 : f32 to vector<8x128xf32>
    %1431 = arith.mulf %1430, %1404 : vector<8x128xf32>
    %1432 = arith.addf %1428, %1431 : vector<8x128xf32>
    %1433 = arith.mulf %1411, %1250 : vector<8x128xf32>
    %1434 = arith.mulf %1418, %1253 : vector<8x128xf32>
    %1435 = arith.addf %1433, %1434 : vector<8x128xf32>
    %1436 = arith.mulf %1425, %1250 : vector<8x128xf32>
    %1437 = arith.mulf %1432, %1253 : vector<8x128xf32>
    %1438 = arith.addf %1436, %1437 : vector<8x128xf32>
    %1439 = arith.mulf %1435, %1435 : vector<8x128xf32>
    %1440 = arith.mulf %1438, %1438 : vector<8x128xf32>
    %1441 = arith.addf %1439, %1440 : vector<8x128xf32>
    %1442 = math.sqrt %1441 : vector<8x128xf32>
    %cst_370 = arith.constant 9.99999997E-7 : f32
    %1443 = vector.broadcast %cst_370 : f32 to vector<8x128xf32>
    %1444 = arith.addf %1442, %1443 : vector<8x128xf32>
    %cst_371 = arith.constant 1.000000e+00 : f32
    %1445 = vector.broadcast %cst_371 : f32 to vector<8x128xf32>
    %1446 = arith.divf %1445, %1444 : vector<8x128xf32>
    %1447 = arith.mulf %1435, %1446 : vector<8x128xf32>
    %1448 = arith.mulf %1438, %1446 : vector<8x128xf32>
    %c2_372 = arith.constant 2 : index
    %c0_373 = arith.constant 0 : index
    %c0_374 = arith.constant 0 : index
    %1449 = vector.load %arg7[%c2_372, %c0_373, %c0_374] : memref<14x8x128xf32, #tpu.memory_space<vmem>>, vector<1x8x128xf32>
    %1450 = vector.shape_cast %1449 : vector<1x8x128xf32> to vector<8x128xf32>
    %1451 = vector.shape_cast %1447 : vector<8x128xf32> to vector<1x8x128xf32>
    tpu.vector_store %arg7[%c2_372, %c0_373, %c0_374], %1451 {strides = array<i32>} : memref<14x8x128xf32, #tpu.memory_space<vmem>>, vector<1x8x128xf32>,
    %c3_375 = arith.constant 3 : index
    %c0_376 = arith.constant 0 : index
    %c0_377 = arith.constant 0 : index
    %1452 = vector.load %arg7[%c3_375, %c0_376, %c0_377] : memref<14x8x128xf32, #tpu.memory_space<vmem>>, vector<1x8x128xf32>
    %1453 = vector.shape_cast %1452 : vector<1x8x128xf32> to vector<8x128xf32>
    %1454 = vector.shape_cast %1448 : vector<8x128xf32> to vector<1x8x128xf32>
    tpu.vector_store %arg7[%c3_375, %c0_376, %c0_377], %1454 {strides = array<i32>} : memref<14x8x128xf32, #tpu.memory_space<vmem>>, vector<1x8x128xf32>,
    %c2_378 = arith.constant 2 : index
    %c0_379 = arith.constant 0 : index
    %c0_380 = arith.constant 0 : index
    %1455 = vector.load %arg4[%c2_378, %c0_379, %c0_380] : memref<16x8x128xf32, #tpu.memory_space<vmem>>, vector<1x8x128xf32>
    %1456 = vector.shape_cast %1455 : vector<1x8x128xf32> to vector<8x128xf32>
    %c3_381 = arith.constant 3 : index
    %c0_382 = arith.constant 0 : index
    %c0_383 = arith.constant 0 : index
    %1457 = vector.load %arg4[%c3_381, %c0_382, %c0_383] : memref<16x8x128xf32, #tpu.memory_space<vmem>>, vector<1x8x128xf32>
    %1458 = vector.shape_cast %1457 : vector<1x8x128xf32> to vector<8x128xf32>
    %c0_384 = arith.constant 0 : index
    %c0_385 = arith.constant 0 : index
    %c0_386 = arith.constant 0 : index
    %1459 = vector.load %arg6[%c0_384, %c0_385, %c0_386] : memref<14x8x128xf32, #tpu.memory_space<vmem>>, vector<1x8x128xf32>
    %1460 = vector.shape_cast %1459 : vector<1x8x128xf32> to vector<8x128xf32>
    %c1_387 = arith.constant 1 : index
    %c0_388 = arith.constant 0 : index
    %c0_389 = arith.constant 0 : index
    %1461 = vector.load %arg6[%c1_387, %c0_388, %c0_389] : memref<14x8x128xf32, #tpu.memory_space<vmem>>, vector<1x8x128xf32>
    %1462 = vector.shape_cast %1461 : vector<1x8x128xf32> to vector<8x128xf32>
    %1463 = arith.mulf %1460, %1447 : vector<8x128xf32>
    %1464 = arith.mulf %1460, %1448 : vector<8x128xf32>
    %1465 = arith.mulf %1462, %1447 : vector<8x128xf32>
    %1466 = arith.mulf %1462, %1448 : vector<8x128xf32>
    %c16_390 = arith.constant 16 : index
    %1467 = memref.load %arg3[%c16_390] : memref<128xf32, #tpu.memory_space<smem>>
    %1468 = vector.broadcast %1467 : f32 to vector<8x128xf32>
    %1469 = arith.mulf %1468, %1463 : vector<8x128xf32>
    %c20_391 = arith.constant 20 : index
    %1470 = memref.load %arg3[%c20_391] : memref<128xf32, #tpu.memory_space<smem>>
    %1471 = vector.broadcast %1470 : f32 to vector<8x128xf32>
    %1472 = arith.mulf %1471, %1464 : vector<8x128xf32>
    %c24_392 = arith.constant 24 : index
    %1473 = memref.load %arg3[%c24_392] : memref<128xf32, #tpu.memory_space<smem>>
    %1474 = vector.broadcast %1473 : f32 to vector<8x128xf32>
    %1475 = arith.mulf %1474, %1465 : vector<8x128xf32>
    %c28_393 = arith.constant 28 : index
    %1476 = memref.load %arg3[%c28_393] : memref<128xf32, #tpu.memory_space<smem>>
    %1477 = vector.broadcast %1476 : f32 to vector<8x128xf32>
    %1478 = arith.mulf %1477, %1466 : vector<8x128xf32>
    %1479 = arith.addf %1469, %1472 : vector<8x128xf32>
    %1480 = arith.addf %1479, %1475 : vector<8x128xf32>
    %1481 = arith.addf %1480, %1478 : vector<8x128xf32>
    %c17_394 = arith.constant 17 : index
    %1482 = memref.load %arg3[%c17_394] : memref<128xf32, #tpu.memory_space<smem>>
    %1483 = vector.broadcast %1482 : f32 to vector<8x128xf32>
    %1484 = arith.mulf %1483, %1463 : vector<8x128xf32>
    %c21_395 = arith.constant 21 : index
    %1485 = memref.load %arg3[%c21_395] : memref<128xf32, #tpu.memory_space<smem>>
    %1486 = vector.broadcast %1485 : f32 to vector<8x128xf32>
    %1487 = arith.mulf %1486, %1464 : vector<8x128xf32>
    %c25_396 = arith.constant 25 : index
    %1488 = memref.load %arg3[%c25_396] : memref<128xf32, #tpu.memory_space<smem>>
    %1489 = vector.broadcast %1488 : f32 to vector<8x128xf32>
    %1490 = arith.mulf %1489, %1465 : vector<8x128xf32>
    %c29_397 = arith.constant 29 : index
    %1491 = memref.load %arg3[%c29_397] : memref<128xf32, #tpu.memory_space<smem>>
    %1492 = vector.broadcast %1491 : f32 to vector<8x128xf32>
    %1493 = arith.mulf %1492, %1466 : vector<8x128xf32>
    %1494 = arith.addf %1484, %1487 : vector<8x128xf32>
    %1495 = arith.addf %1494, %1490 : vector<8x128xf32>
    %1496 = arith.addf %1495, %1493 : vector<8x128xf32>
    %c18_398 = arith.constant 18 : index
    %1497 = memref.load %arg3[%c18_398] : memref<128xf32, #tpu.memory_space<smem>>
    %1498 = vector.broadcast %1497 : f32 to vector<8x128xf32>
    %1499 = arith.mulf %1498, %1463 : vector<8x128xf32>
    %c22_399 = arith.constant 22 : index
    %1500 = memref.load %arg3[%c22_399] : memref<128xf32, #tpu.memory_space<smem>>
    %1501 = vector.broadcast %1500 : f32 to vector<8x128xf32>
    %1502 = arith.mulf %1501, %1464 : vector<8x128xf32>
    %c26_400 = arith.constant 26 : index
    %1503 = memref.load %arg3[%c26_400] : memref<128xf32, #tpu.memory_space<smem>>
    %1504 = vector.broadcast %1503 : f32 to vector<8x128xf32>
    %1505 = arith.mulf %1504, %1465 : vector<8x128xf32>
    %c30_401 = arith.constant 30 : index
    %1506 = memref.load %arg3[%c30_401] : memref<128xf32, #tpu.memory_space<smem>>
    %1507 = vector.broadcast %1506 : f32 to vector<8x128xf32>
    %1508 = arith.mulf %1507, %1466 : vector<8x128xf32>
    %1509 = arith.addf %1499, %1502 : vector<8x128xf32>
    %1510 = arith.addf %1509, %1505 : vector<8x128xf32>
    %1511 = arith.addf %1510, %1508 : vector<8x128xf32>
    %c19_402 = arith.constant 19 : index
    %1512 = memref.load %arg3[%c19_402] : memref<128xf32, #tpu.memory_space<smem>>
    %1513 = vector.broadcast %1512 : f32 to vector<8x128xf32>
    %1514 = arith.mulf %1513, %1463 : vector<8x128xf32>
    %c23_403 = arith.constant 23 : index
    %1515 = memref.load %arg3[%c23_403] : memref<128xf32, #tpu.memory_space<smem>>
    %1516 = vector.broadcast %1515 : f32 to vector<8x128xf32>
    %1517 = arith.mulf %1516, %1464 : vector<8x128xf32>
    %c27_404 = arith.constant 27 : index
    %1518 = memref.load %arg3[%c27_404] : memref<128xf32, #tpu.memory_space<smem>>
    %1519 = vector.broadcast %1518 : f32 to vector<8x128xf32>
    %1520 = arith.mulf %1519, %1465 : vector<8x128xf32>
    %c31_405 = arith.constant 31 : index
    %1521 = memref.load %arg3[%c31_405] : memref<128xf32, #tpu.memory_space<smem>>
    %1522 = vector.broadcast %1521 : f32 to vector<8x128xf32>
    %1523 = arith.mulf %1522, %1466 : vector<8x128xf32>
    %1524 = arith.addf %1514, %1517 : vector<8x128xf32>
    %1525 = arith.addf %1524, %1520 : vector<8x128xf32>
    %1526 = arith.addf %1525, %1523 : vector<8x128xf32>
    %1527 = arith.mulf %1481, %1481 : vector<8x128xf32>
    %1528 = arith.mulf %1496, %1496 : vector<8x128xf32>
    %1529 = arith.mulf %1511, %1511 : vector<8x128xf32>
    %1530 = arith.mulf %1526, %1526 : vector<8x128xf32>
    %1531 = arith.addf %1527, %1528 : vector<8x128xf32>
    %1532 = arith.addf %1531, %1529 : vector<8x128xf32>
    %1533 = arith.addf %1532, %1530 : vector<8x128xf32>
    %1534 = math.sqrt %1533 : vector<8x128xf32>
    %cst_406 = arith.constant 9.99999997E-7 : f32
    %1535 = vector.broadcast %cst_406 : f32 to vector<8x128xf32>
    %1536 = arith.addf %1534, %1535 : vector<8x128xf32>
    %1537 = vector.broadcast %0 : f32 to vector<8x128xf32>
    %1538 = arith.divf %1537, %1536 : vector<8x128xf32>
    %1539 = arith.mulf %1481, %1538 : vector<8x128xf32>
    %1540 = arith.cmpf one, %1539, %1539 : vector<8x128xf32>
    %cst_407 = arith.constant 0.000000e+00 : f32
    %1541 = vector.broadcast %cst_407 : f32 to vector<8x128xf32>
    %1542 = arith.select %1540, %1541, %1539 : vector<8x128xi1>, vector<8x128xf32>
    %1543 = arith.mulf %1542, %1456 : vector<8x128xf32>
    %1544 = arith.mulf %1496, %1538 : vector<8x128xf32>
    %1545 = arith.cmpf one, %1544, %1544 : vector<8x128xf32>
    %cst_408 = arith.constant 0.000000e+00 : f32
    %1546 = vector.broadcast %cst_408 : f32 to vector<8x128xf32>
    %1547 = arith.select %1545, %1546, %1544 : vector<8x128xi1>, vector<8x128xf32>
    %1548 = arith.mulf %1547, %1458 : vector<8x128xf32>
    %1549 = arith.addf %1543, %1548 : vector<8x128xf32>
    %cst_409 = arith.constant 0.000000e+00 : f32
    %1550 = vector.broadcast %cst_409 : f32 to vector<8x128xf32>
    %1551 = arith.cmpf oge, %1549, %1550 : vector<8x128xf32>
    %cst_410 = arith.constant 9.99999974E-6 : f32
    %1552 = vector.broadcast %cst_410 : f32 to vector<8x128xf32>
    %1553 = arith.mulf %1552, %1549 : vector<8x128xf32>
    %1554 = arith.select %1551, %1549, %1553 : vector<8x128xi1>, vector<8x128xf32>
    %1555 = math.absf %1554 : vector<8x128xf32>
    %1556 = arith.mulf %1511, %1538 : vector<8x128xf32>
    %1557 = arith.cmpf one, %1556, %1556 : vector<8x128xf32>
    %cst_411 = arith.constant 0.000000e+00 : f32
    %1558 = vector.broadcast %cst_411 : f32 to vector<8x128xf32>
    %1559 = arith.select %1557, %1558, %1556 : vector<8x128xi1>, vector<8x128xf32>
    %1560 = arith.mulf %1559, %1456 : vector<8x128xf32>
    %1561 = arith.mulf %1526, %1538 : vector<8x128xf32>
    %1562 = arith.cmpf one, %1561, %1561 : vector<8x128xf32>
    %cst_412 = arith.constant 0.000000e+00 : f32
    %1563 = vector.broadcast %cst_412 : f32 to vector<8x128xf32>
    %1564 = arith.select %1562, %1563, %1561 : vector<8x128xi1>, vector<8x128xf32>
    %1565 = arith.mulf %1564, %1458 : vector<8x128xf32>
    %1566 = arith.addf %1560, %1565 : vector<8x128xf32>
    %cst_413 = arith.constant 0.000000e+00 : f32
    %1567 = vector.broadcast %cst_413 : f32 to vector<8x128xf32>
    %1568 = arith.cmpf oge, %1566, %1567 : vector<8x128xf32>
    %cst_414 = arith.constant 9.99999974E-6 : f32
    %1569 = vector.broadcast %cst_414 : f32 to vector<8x128xf32>
    %1570 = arith.mulf %1569, %1566 : vector<8x128xf32>
    %1571 = arith.select %1568, %1566, %1570 : vector<8x128xi1>, vector<8x128xf32>
    %1572 = math.absf %1571 : vector<8x128xf32>
    %1573 = arith.addf %1555, %1572 : vector<8x128xf32>
    %cst_415 = arith.constant 1.000000e+00 : f32
    %1574 = vector.broadcast %cst_415 : f32 to vector<8x128xf32>
    %1575 = arith.divf %1574, %1573 : vector<8x128xf32>
    %1576 = arith.mulf %1555, %1575 : vector<8x128xf32>
    %c2_416 = arith.constant 2 : index
    %c0_417 = arith.constant 0 : index
    %c0_418 = arith.constant 0 : index
    %1577 = vector.load %arg5[%c2_416, %c0_417, %c0_418] : memref<16x8x128xf32, #tpu.memory_space<vmem>>, vector<1x8x128xf32>
    %1578 = vector.shape_cast %1577 : vector<1x8x128xf32> to vector<8x128xf32>
    %1579 = vector.shape_cast %1576 : vector<8x128xf32> to vector<1x8x128xf32>
    tpu.vector_store %arg5[%c2_416, %c0_417, %c0_418], %1579 {strides = array<i32>} : memref<16x8x128xf32, #tpu.memory_space<vmem>>, vector<1x8x128xf32>,
    %1580 = arith.mulf %1572, %1575 : vector<8x128xf32>
    %c3_419 = arith.constant 3 : index
    %c0_420 = arith.constant 0 : index
    %c0_421 = arith.constant 0 : index
    %1581 = vector.load %arg5[%c3_419, %c0_420, %c0_421] : memref<16x8x128xf32, #tpu.memory_space<vmem>>, vector<1x8x128xf32>
    %1582 = vector.shape_cast %1581 : vector<1x8x128xf32> to vector<8x128xf32>
    %1583 = vector.shape_cast %1580 : vector<8x128xf32> to vector<1x8x128xf32>
    tpu.vector_store %arg5[%c3_419, %c0_420, %c0_421], %1583 {strides = array<i32>} : memref<16x8x128xf32, #tpu.memory_space<vmem>>, vector<1x8x128xf32>,
    %1584 = arith.mulf %1456, %1456 : vector<8x128xf32>
    %1585 = arith.mulf %1458, %1458 : vector<8x128xf32>
    %1586 = arith.addf %1584, %1585 : vector<8x128xf32>
    %1587 = math.rsqrt %1586 : vector<8x128xf32>
    %1588 = arith.mulf %1456, %1587 : vector<8x128xf32>
    %1589 = arith.mulf %1458, %1587 : vector<8x128xf32>
    %c8_422 = arith.constant 8 : index
    %1590 = memref.load %arg2[%c8_422] : memref<64xf32, #tpu.memory_space<smem>>
    %1591 = vector.broadcast %1590 : f32 to vector<8x128xf32>
    %1592 = arith.mulf %1591, %1588 : vector<8x128xf32>
    %c9_423 = arith.constant 9 : index
    %1593 = memref.load %arg2[%c9_423] : memref<64xf32, #tpu.memory_space<smem>>
    %1594 = vector.broadcast %1593 : f32 to vector<8x128xf32>
    %1595 = arith.mulf %1594, %1589 : vector<8x128xf32>
    %1596 = arith.addf %1592, %1595 : vector<8x128xf32>
    %c10_424 = arith.constant 10 : index
    %1597 = memref.load %arg2[%c10_424] : memref<64xf32, #tpu.memory_space<smem>>
    %1598 = vector.broadcast %1597 : f32 to vector<8x128xf32>
    %1599 = arith.mulf %1598, %1588 : vector<8x128xf32>
    %c11_425 = arith.constant 11 : index
    %1600 = memref.load %arg2[%c11_425] : memref<64xf32, #tpu.memory_space<smem>>
    %1601 = vector.broadcast %1600 : f32 to vector<8x128xf32>
    %1602 = arith.mulf %1601, %1589 : vector<8x128xf32>
    %1603 = arith.addf %1599, %1602 : vector<8x128xf32>
    %c12_426 = arith.constant 12 : index
    %1604 = memref.load %arg2[%c12_426] : memref<64xf32, #tpu.memory_space<smem>>
    %1605 = vector.broadcast %1604 : f32 to vector<8x128xf32>
    %1606 = arith.mulf %1605, %1588 : vector<8x128xf32>
    %c13_427 = arith.constant 13 : index
    %1607 = memref.load %arg2[%c13_427] : memref<64xf32, #tpu.memory_space<smem>>
    %1608 = vector.broadcast %1607 : f32 to vector<8x128xf32>
    %1609 = arith.mulf %1608, %1589 : vector<8x128xf32>
    %1610 = arith.addf %1606, %1609 : vector<8x128xf32>
    %c14_428 = arith.constant 14 : index
    %1611 = memref.load %arg2[%c14_428] : memref<64xf32, #tpu.memory_space<smem>>
    %1612 = vector.broadcast %1611 : f32 to vector<8x128xf32>
    %1613 = arith.mulf %1612, %1588 : vector<8x128xf32>
    %c15_429 = arith.constant 15 : index
    %1614 = memref.load %arg2[%c15_429] : memref<64xf32, #tpu.memory_space<smem>>
    %1615 = vector.broadcast %1614 : f32 to vector<8x128xf32>
    %1616 = arith.mulf %1615, %1589 : vector<8x128xf32>
    %1617 = arith.addf %1613, %1616 : vector<8x128xf32>
    %1618 = arith.mulf %1596, %1435 : vector<8x128xf32>
    %1619 = arith.mulf %1603, %1438 : vector<8x128xf32>
    %1620 = arith.addf %1618, %1619 : vector<8x128xf32>
    %1621 = arith.mulf %1610, %1435 : vector<8x128xf32>
    %1622 = arith.mulf %1617, %1438 : vector<8x128xf32>
    %1623 = arith.addf %1621, %1622 : vector<8x128xf32>
    %1624 = arith.mulf %1620, %1620 : vector<8x128xf32>
    %1625 = arith.mulf %1623, %1623 : vector<8x128xf32>
    %1626 = arith.addf %1624, %1625 : vector<8x128xf32>
    %1627 = math.sqrt %1626 : vector<8x128xf32>
    %cst_430 = arith.constant 9.99999997E-7 : f32
    %1628 = vector.broadcast %cst_430 : f32 to vector<8x128xf32>
    %1629 = arith.addf %1627, %1628 : vector<8x128xf32>
    %cst_431 = arith.constant 1.000000e+00 : f32
    %1630 = vector.broadcast %cst_431 : f32 to vector<8x128xf32>
    %1631 = arith.divf %1630, %1629 : vector<8x128xf32>
    %1632 = arith.mulf %1620, %1631 : vector<8x128xf32>
    %1633 = arith.mulf %1623, %1631 : vector<8x128xf32>
    %c0_432 = arith.constant 0 : index
    %c0_433 = arith.constant 0 : index
    %c0_434 = arith.constant 0 : index
    %1634 = vector.load %arg7[%c0_432, %c0_433, %c0_434] : memref<14x8x128xf32, #tpu.memory_space<vmem>>, vector<1x8x128xf32>
    %1635 = vector.shape_cast %1634 : vector<1x8x128xf32> to vector<8x128xf32>
    %1636 = vector.shape_cast %1632 : vector<8x128xf32> to vector<1x8x128xf32>
    tpu.vector_store %arg7[%c0_432, %c0_433, %c0_434], %1636 {strides = array<i32>} : memref<14x8x128xf32, #tpu.memory_space<vmem>>, vector<1x8x128xf32>,
    %c1_435 = arith.constant 1 : index
    %c0_436 = arith.constant 0 : index
    %c0_437 = arith.constant 0 : index
    %1637 = vector.load %arg7[%c1_435, %c0_436, %c0_437] : memref<14x8x128xf32, #tpu.memory_space<vmem>>, vector<1x8x128xf32>
    %1638 = vector.shape_cast %1637 : vector<1x8x128xf32> to vector<8x128xf32>
    %1639 = vector.shape_cast %1633 : vector<8x128xf32> to vector<1x8x128xf32>
    tpu.vector_store %arg7[%c1_435, %c0_436, %c0_437], %1639 {strides = array<i32>} : memref<14x8x128xf32, #tpu.memory_space<vmem>>, vector<1x8x128xf32>,
    %c0_438 = arith.constant 0 : index
    %c0_439 = arith.constant 0 : index
    %c0_440 = arith.constant 0 : index
    %1640 = vector.load %arg4[%c0_438, %c0_439, %c0_440] : memref<16x8x128xf32, #tpu.memory_space<vmem>>, vector<1x8x128xf32>
    %1641 = vector.shape_cast %1640 : vector<1x8x128xf32> to vector<8x128xf32>
    %c1_441 = arith.constant 1 : index
    %c0_442 = arith.constant 0 : index
    %c0_443 = arith.constant 0 : index
    %1642 = vector.load %arg4[%c1_441, %c0_442, %c0_443] : memref<16x8x128xf32, #tpu.memory_space<vmem>>, vector<1x8x128xf32>
    %1643 = vector.shape_cast %1642 : vector<1x8x128xf32> to vector<8x128xf32>
    %c0_444 = arith.constant 0 : index
    %1644 = memref.load %arg3[%c0_444] : memref<128xf32, #tpu.memory_space<smem>>
    %1645 = vector.broadcast %1644 : f32 to vector<8x128xf32>
    %1646 = arith.mulf %1645, %1632 : vector<8x128xf32>
    %c4_445 = arith.constant 4 : index
    %1647 = memref.load %arg3[%c4_445] : memref<128xf32, #tpu.memory_space<smem>>
    %1648 = vector.broadcast %1647 : f32 to vector<8x128xf32>
    %1649 = arith.mulf %1648, %1633 : vector<8x128xf32>
    %1650 = arith.addf %1646, %1649 : vector<8x128xf32>
    %c1_446 = arith.constant 1 : index
    %1651 = memref.load %arg3[%c1_446] : memref<128xf32, #tpu.memory_space<smem>>
    %1652 = vector.broadcast %1651 : f32 to vector<8x128xf32>
    %1653 = arith.mulf %1652, %1632 : vector<8x128xf32>
    %c5_447 = arith.constant 5 : index
    %1654 = memref.load %arg3[%c5_447] : memref<128xf32, #tpu.memory_space<smem>>
    %1655 = vector.broadcast %1654 : f32 to vector<8x128xf32>
    %1656 = arith.mulf %1655, %1633 : vector<8x128xf32>
    %1657 = arith.addf %1653, %1656 : vector<8x128xf32>
    %c2_448 = arith.constant 2 : index
    %1658 = memref.load %arg3[%c2_448] : memref<128xf32, #tpu.memory_space<smem>>
    %1659 = vector.broadcast %1658 : f32 to vector<8x128xf32>
    %1660 = arith.mulf %1659, %1632 : vector<8x128xf32>
    %c6_449 = arith.constant 6 : index
    %1661 = memref.load %arg3[%c6_449] : memref<128xf32, #tpu.memory_space<smem>>
    %1662 = vector.broadcast %1661 : f32 to vector<8x128xf32>
    %1663 = arith.mulf %1662, %1633 : vector<8x128xf32>
    %1664 = arith.addf %1660, %1663 : vector<8x128xf32>
    %c3_450 = arith.constant 3 : index
    %1665 = memref.load %arg3[%c3_450] : memref<128xf32, #tpu.memory_space<smem>>
    %1666 = vector.broadcast %1665 : f32 to vector<8x128xf32>
    %1667 = arith.mulf %1666, %1632 : vector<8x128xf32>
    %c7_451 = arith.constant 7 : index
    %1668 = memref.load %arg3[%c7_451] : memref<128xf32, #tpu.memory_space<smem>>
    %1669 = vector.broadcast %1668 : f32 to vector<8x128xf32>
    %1670 = arith.mulf %1669, %1633 : vector<8x128xf32>
    %1671 = arith.addf %1667, %1670 : vector<8x128xf32>
    %1672 = arith.mulf %1650, %1650 : vector<8x128xf32>
    %1673 = arith.mulf %1657, %1657 : vector<8x128xf32>
    %1674 = arith.mulf %1664, %1664 : vector<8x128xf32>
    %1675 = arith.mulf %1671, %1671 : vector<8x128xf32>
    %1676 = arith.addf %1672, %1673 : vector<8x128xf32>
    %1677 = arith.addf %1676, %1674 : vector<8x128xf32>
    %1678 = arith.addf %1677, %1675 : vector<8x128xf32>
    %1679 = math.sqrt %1678 : vector<8x128xf32>
    %cst_452 = arith.constant 9.99999997E-7 : f32
    %1680 = vector.broadcast %cst_452 : f32 to vector<8x128xf32>
    %1681 = arith.addf %1679, %1680 : vector<8x128xf32>
    %1682 = vector.broadcast %0 : f32 to vector<8x128xf32>
    %1683 = arith.divf %1682, %1681 : vector<8x128xf32>
    %1684 = arith.mulf %1650, %1683 : vector<8x128xf32>
    %1685 = arith.cmpf one, %1684, %1684 : vector<8x128xf32>
    %cst_453 = arith.constant 0.000000e+00 : f32
    %1686 = vector.broadcast %cst_453 : f32 to vector<8x128xf32>
    %1687 = arith.select %1685, %1686, %1684 : vector<8x128xi1>, vector<8x128xf32>
    %1688 = arith.mulf %1687, %1641 : vector<8x128xf32>
    %1689 = arith.mulf %1657, %1683 : vector<8x128xf32>
    %1690 = arith.cmpf one, %1689, %1689 : vector<8x128xf32>
    %cst_454 = arith.constant 0.000000e+00 : f32
    %1691 = vector.broadcast %cst_454 : f32 to vector<8x128xf32>
    %1692 = arith.select %1690, %1691, %1689 : vector<8x128xi1>, vector<8x128xf32>
    %1693 = arith.mulf %1692, %1643 : vector<8x128xf32>
    %1694 = arith.addf %1688, %1693 : vector<8x128xf32>
    %cst_455 = arith.constant 0.000000e+00 : f32
    %1695 = vector.broadcast %cst_455 : f32 to vector<8x128xf32>
    %1696 = arith.cmpf oge, %1694, %1695 : vector<8x128xf32>
    %cst_456 = arith.constant 9.99999974E-6 : f32
    %1697 = vector.broadcast %cst_456 : f32 to vector<8x128xf32>
    %1698 = arith.mulf %1697, %1694 : vector<8x128xf32>
    %1699 = arith.select %1696, %1694, %1698 : vector<8x128xi1>, vector<8x128xf32>
    %1700 = math.absf %1699 : vector<8x128xf32>
    %1701 = arith.mulf %1664, %1683 : vector<8x128xf32>
    %1702 = arith.cmpf one, %1701, %1701 : vector<8x128xf32>
    %cst_457 = arith.constant 0.000000e+00 : f32
    %1703 = vector.broadcast %cst_457 : f32 to vector<8x128xf32>
    %1704 = arith.select %1702, %1703, %1701 : vector<8x128xi1>, vector<8x128xf32>
    %1705 = arith.mulf %1704, %1641 : vector<8x128xf32>
    %1706 = arith.mulf %1671, %1683 : vector<8x128xf32>
    %1707 = arith.cmpf one, %1706, %1706 : vector<8x128xf32>
    %cst_458 = arith.constant 0.000000e+00 : f32
    %1708 = vector.broadcast %cst_458 : f32 to vector<8x128xf32>
    %1709 = arith.select %1707, %1708, %1706 : vector<8x128xi1>, vector<8x128xf32>
    %1710 = arith.mulf %1709, %1643 : vector<8x128xf32>
    %1711 = arith.addf %1705, %1710 : vector<8x128xf32>
    %cst_459 = arith.constant 0.000000e+00 : f32
    %1712 = vector.broadcast %cst_459 : f32 to vector<8x128xf32>
    %1713 = arith.cmpf oge, %1711, %1712 : vector<8x128xf32>
    %cst_460 = arith.constant 9.99999974E-6 : f32
    %1714 = vector.broadcast %cst_460 : f32 to vector<8x128xf32>
    %1715 = arith.mulf %1714, %1711 : vector<8x128xf32>
    %1716 = arith.select %1713, %1711, %1715 : vector<8x128xi1>, vector<8x128xf32>
    %1717 = math.absf %1716 : vector<8x128xf32>
    %1718 = arith.addf %1700, %1717 : vector<8x128xf32>
    %cst_461 = arith.constant 1.000000e+00 : f32
    %1719 = vector.broadcast %cst_461 : f32 to vector<8x128xf32>
    %1720 = arith.divf %1719, %1718 : vector<8x128xf32>
    %1721 = arith.mulf %1700, %1720 : vector<8x128xf32>
    %c0_462 = arith.constant 0 : index
    %c0_463 = arith.constant 0 : index
    %c0_464 = arith.constant 0 : index
    %1722 = vector.load %arg5[%c0_462, %c0_463, %c0_464] : memref<16x8x128xf32, #tpu.memory_space<vmem>>, vector<1x8x128xf32>
    %1723 = vector.shape_cast %1722 : vector<1x8x128xf32> to vector<8x128xf32>
    %1724 = vector.shape_cast %1721 : vector<8x128xf32> to vector<1x8x128xf32>
    tpu.vector_store %arg5[%c0_462, %c0_463, %c0_464], %1724 {strides = array<i32>} : memref<16x8x128xf32, #tpu.memory_space<vmem>>, vector<1x8x128xf32>,
    %1725 = arith.mulf %1717, %1720 : vector<8x128xf32>
    %c1_465 = arith.constant 1 : index
    %c0_466 = arith.constant 0 : index
    %c0_467 = arith.constant 0 : index
    %1726 = vector.load %arg5[%c1_465, %c0_466, %c0_467] : memref<16x8x128xf32, #tpu.memory_space<vmem>>, vector<1x8x128xf32>
    %1727 = vector.shape_cast %1726 : vector<1x8x128xf32> to vector<8x128xf32>
    %1728 = vector.shape_cast %1725 : vector<8x128xf32> to vector<1x8x128xf32>
    tpu.vector_store %arg5[%c1_465, %c0_466, %c0_467], %1728 {strides = array<i32>} : memref<16x8x128xf32, #tpu.memory_space<vmem>>, vector<1x8x128xf32>,
    return
  }
  func.func @transform_0(%arg0: i32) -> i32 {
    %c0_i32 = arith.constant 0 : i32
    %c0_i32_0 = arith.constant 0 : i32
    return %c0_i32 : i32
  }
  func.func @transform_1(%arg0: i32) -> i32 {
    %c0_i32 = arith.constant 0 : i32
    %c0_i32_0 = arith.constant 0 : i32
    return %c0_i32 : i32
  }
  func.func @transform_2(%arg0: i32) -> i32 {
    %c0_i32 = arith.constant 0 : i32
    %c0_i32_0 = arith.constant 0 : i32
    return %c0_i32 : i32
  }
  func.func @transform_3(%arg0: i32) -> (i32, i32, i32) {
    %c0_i32 = arith.constant 0 : i32
    %c0_i32_0 = arith.constant 0 : i32
    %c0_i32_1 = arith.constant 0 : i32
    return %c0_i32, %arg0, %c0_i32_0 : i32, i32, i32
  }
  func.func @transform_4(%arg0: i32) -> (i32, i32, i32) {
    %c0_i32 = arith.constant 0 : i32
    %c0_i32_0 = arith.constant 0 : i32
    %c0_i32_1 = arith.constant 0 : i32
    return %c0_i32, %arg0, %c0_i32_0 : i32, i32, i32
  }
  func.func @transform_5(%arg0: i32) -> (i32, i32, i32) {
    %c0_i32 = arith.constant 0 : i32
    %c0_i32_0 = arith.constant 0 : i32
    %c0_i32_1 = arith.constant 0 : i32
    return %c0_i32, %arg0, %c0_i32_0 : i32, i32, i32
  }
  func.func @transform_6(%arg0: i32) -> (i32, i32, i32) {
    %c0_i32 = arith.constant 0 : i32
    %c0_i32_0 = arith.constant 0 : i32
    %c0_i32_1 = arith.constant 0 : i32
    return %c0_i32, %arg0, %c0_i32_0 : i32, i32, i32
  }
}

</mosaic_0001>

<llo_original>
// kernel: tpu_custom_call.1
$region0: #{tpu_custom_call.1}
  #allocation0 [shape = 'u32[]', space=smem, size = 0x4, offset = 0x4, fixed_abs, tag = 'smem constant byte address 0x4 - core index']
  #allocation1 [shape = 'u32[144,128]{1,0:T(1,128)}', space=vmem, size = 0x12000, scoped, tag = 'internal scratch']
  #allocation2 [shape = 'f32[1]{0:T(128)S(6)}', space=smem, size = 0x200, scoped, tag = 'scoped memory for tpu_custom_call.1']
  %s0 = inlined_call_operand.<no memory space> [shape: f32[1], index: 0, kind: input, shape index: {}]
  %s1 = inlined_call_operand.vmem [shape: f32[64], index: 1, kind: input, shape index: {}]
  %s2 = inlined_call_operand.vmem [shape: f32[128], index: 2, kind: input, shape index: {}]
  %s3 = inlined_call_operand.hbm [shape: f32[16,8,128], index: 3, kind: input, shape index: {}]
  %s4 = inlined_call_operand.hbm [shape: f32[16,8,128], index: 4, kind: output, shape index: {0}]
  %s5 = inlined_call_operand.hbm [shape: f32[14,8,128], index: 5, kind: output, shape index: {1}]
  %s6 = inlined_call_operand.hbm [shape: f32[14,8,128], index: 6, kind: output, shape index: {2}]
  %7 = xla_tuple %s4, %s5, %s6
  %s8 = sld [smem:[#allocation0]]
  $region54: #{tpu_custom_call.1} parent=0
    _
  %s10 = ssub.s32 1, %s8
  %s11 = scalar_select 0, %s10, %s8
  %12 = sst [smem:[#allocation2]] %s0
  $region1: #{tpu_custom_call.1} parent=0
    #allocation3 [shape = 'u8[512]{0}', space=smem, size = 0x200, scoped, tag = 'input window, operand 1, single buffered']
    #allocation4 [shape = 's32[1]{0}', space=sflag, size = 0x4, scoped, tag = 'scoped memory for tpu_custom_call.1']
    #allocation5 [shape = 's32[1]{0}', space=sflag, size = 0x4, scoped, tag = 'scoped memory for tpu_custom_call.1']
    #allocation6 [shape = 's32[1]{0}', space=sflag, size = 0x4, scoped, tag = 'scoped memory for tpu_custom_call.1']
    #allocation7 [shape = 'u8[512]{0}', space=smem, size = 0x200, scoped, tag = 'input window, operand 2, single buffered']
    #allocation8 [shape = 's32[1]{0}', space=sflag, size = 0x4, scoped, tag = 'scoped memory for tpu_custom_call.1']
    #allocation9 [shape = 'u8[65536]{0}', space=vmem, size = 0x10000, scoped, tag = 'input window, operand 3, single buffered']
    #allocation10 [shape = 'u8[65536]{0}', space=vmem, size = 0x10000, scoped, tag = 'output window, operand 0, single buffered']
    #allocation11 [shape = 'u8[57344]{0}', space=vmem, size = 0xe000, scoped, tag = 'output window, operand 1, single buffered']
    #allocation12 [shape = 's32[1]{0}', space=sflag, size = 0x4, scoped, tag = 'scoped memory for tpu_custom_call.1']
    #allocation13 [shape = 'u8[57344]{0}', space=vmem, size = 0xe000, scoped, tag = 'output window, operand 2, single buffered']
    %13 = vsyncpa [#allocation6], 0
    %14 = vsyncpa [#allocation8], 0
    %15 = vsyncpa [#allocation4], 0
    %16 = vsyncpa [#allocation5], 0
    %17 = vsyncpa [#allocation12], 0
    // Predicated region
    $region2: #{tpu_custom_call.1} parent=1 // pred_check
      _
    $region3: #{tpu_custom_call.1} parent=1 // pred_check_branch
      %19 = sbr.rel (0) target = $region5
    $region4: #{tpu_custom_call.1} parent=1 // pred_region
      _
    $region5: #{tpu_custom_call.1} parent=1 // pred_fallthru
      _
    // Predicated region
    $region6: #{tpu_custom_call.1} parent=1 // pred_check
      _
    $region7: #{tpu_custom_call.1} parent=1 // pred_check_branch
      %21 = sbr.rel (0) target = $region9
    $region8: #{tpu_custom_call.1} parent=1 // pred_region
      %s23 = ssub.s32 16, 16
      %24 = vsyncadd [#allocation6], %s23
      %s26 = sshll.u32 %s1, 4
      %s27 = int_to_ptr.vmem [resolvable:$true] %s26
      %29 = dma.vmem_to_smem %s27, 16, [#allocation3], [#allocation6]
    $region9: #{tpu_custom_call.1} parent=1 // pred_fallthru
      _
    // Predicated region
    $region10: #{tpu_custom_call.1} parent=1 // pred_check
      _
    $region11: #{tpu_custom_call.1} parent=1 // pred_check_branch
      %31 = sbr.rel (0) target = $region13
    $region12: #{tpu_custom_call.1} parent=1 // pred_region
      %s33 = ssub.s32 16, 16
      %34 = vsyncadd [#allocation8], %s33
      %s36 = sshll.u32 %s2, 4
      %s37 = int_to_ptr.vmem [resolvable:$true] %s36
      %39 = dma.vmem_to_smem %s37, 16, [#allocation7], [#allocation8]
    $region13: #{tpu_custom_call.1} parent=1 // pred_fallthru
      _
    // Predicated region
    $region14: #{tpu_custom_call.1} parent=1 // pred_check
      _
    $region15: #{tpu_custom_call.1} parent=1 // pred_check_branch
      %41 = sbr.rel (0) target = $region17
    $region16: #{tpu_custom_call.1} parent=1 // pred_region
      %s43 = ssub.s32 2048, 2048
      %44 = vsyncadd [#allocation4], %s43
      %s45 = sshll.u32 [#allocation9], 4
      %s46 = int_to_ptr.vmem [resolvable:$true] %s45
      %51 = dma.hbm_to_vmem [thread:$0]  %s3, 2048, %s46, [#allocation4], 128, 128, 8
    $region17: #{tpu_custom_call.1} parent=1 // pred_fallthru
      _
    // Predicated region
    $region18: #{tpu_custom_call.1} parent=1 // pred_check
      _
    $region19: #{tpu_custom_call.1} parent=1 // pred_check_branch
      %53 = sbr.rel (0) target = $region21
    $region20: #{tpu_custom_call.1} parent=1 // pred_region
      %54 = dma.done [#allocation6], 16
    $region21: #{tpu_custom_call.1} parent=1 // pred_fallthru
      _
    // Predicated region
    $region22: #{tpu_custom_call.1} parent=1 // pred_check
      _
    $region23: #{tpu_custom_call.1} parent=1 // pred_check_branch
      %56 = sbr.rel (0) target = $region25
    $region24: #{tpu_custom_call.1} parent=1 // pred_region
      %57 = dma.done [#allocation8], 16
    $region25: #{tpu_custom_call.1} parent=1 // pred_fallthru
      _
    // Predicated region
    $region26: #{tpu_custom_call.1} parent=1 // pred_check
      _
    $region27: #{tpu_custom_call.1} parent=1 // pred_check_branch
      %59 = sbr.rel (0) target = $region29
    $region28: #{tpu_custom_call.1} parent=1 // pred_region
      %60 = dma.done [#allocation4], 2048
    $region29: #{tpu_custom_call.1} parent=1 // pred_fallthru
      _
    %61 = sfence
    %s62 = sld [smem:[#allocation2]]
    %v63 = vld [vmem:[#allocation9] sm:$0xff]
    %s64 = scalar_lea.vmem [#allocation9], 8
    %v65 = vld [vmem:[%s64] sm:$0xff]
    %v66 = vmul.f32 %v63, %v63
    %v67 = vmul.f32 %v65, %v65
    %v68 = vadd.f32 %v66, %v67
    %v69 = vrsqrt.pop %v68
    %v70 = vmul.f32 %v63, %v69
    %v71 = vmul.f32 %v65, %v69
    %s72 = sld [smem:[#allocation3]]
    %v73 = vstv %s72
    %v74 = vmul.f32 %v73, %v70
    %s75 = sld [smem:[#allocation3 + $0x1]]
    %v76 = vstv %s75
    %v77 = vmul.f32 %v76, %v71
    %v78 = vadd.f32 %v74, %v77
    %s79 = sld [smem:[#allocation3 + $0x2]]
    %v80 = vstv %s79
    %v81 = vmul.f32 %v80, %v70
    %s82 = sld [smem:[#allocation3 + $0x3]]
    %v83 = vstv %s82
    %v84 = vmul.f32 %v83, %v71
    %v85 = vadd.f32 %v81, %v84
    %v86 = vmul.f32 %v78, %v78
    %v87 = vmul.f32 %v85, %v85
    %v88 = vadd.f32 %v86, %v87
    %v89 = vrsqrt.pop %v88
    %v90 = vmul.f32 %v88, %v89
    %vm91 = vcmp.eq.f32.partialorder %v88, inf
    %v92 = vsel %vm91, %v88, %v90
    %vm93 = vcmp.eq.f32.partialorder %v88, 0.0
    %v94 = vand.u32 %v88, 2147483648
    %v95 = vsel %vm93, %v94, %v92
    %v96 = vadd.f32 %v95, 1e-06
    %v97 = vrcp.pop %v96
    %v98 = vmul.f32 1.0, %v97
    %v99 = vmul.f32 %v78, %v98
    %v100 = vmul.f32 %v85, %v98
    %101 = vst [vmem:[#allocation11] sm:$0xff] %v99
    %s102 = scalar_lea.vmem [#allocation11], 8
    %103 = vst [vmem:[%s102] sm:$0xff] %v100
    %s104 = scalar_lea.vmem [#allocation9], 16
    %v105 = vld [vmem:[%s104] sm:$0xff]
    %s106 = scalar_lea.vmem [#allocation9], 24
    %v107 = vld [vmem:[%s106] sm:$0xff]
    %v108 = vmul.f32 %v105, %v105
    %v109 = vmul.f32 %v107, %v107
    %v110 = vadd.f32 %v108, %v109
    %v111 = vrsqrt.pop %v110
    %v112 = vmul.f32 %v105, %v111
    %v113 = vmul.f32 %v107, %v111
    %s114 = sld [smem:[#allocation3 + $0x8]]
    %v115 = vstv %s114
    %v116 = vmul.f32 %v115, %v112
    %s117 = sld [smem:[#allocation3 + $0x9]]
    %v118 = vstv %s117
    %v119 = vmul.f32 %v118, %v113
    %v120 = vadd.f32 %v116, %v119
    %s121 = sld [smem:[#allocation3 + $0xa]]
    %v122 = vstv %s121
    %v123 = vmul.f32 %v122, %v112
    %s124 = sld [smem:[#allocation3 + $0xb]]
    %v125 = vstv %s124
    %v126 = vmul.f32 %v125, %v113
    %v127 = vadd.f32 %v123, %v126
    %s128 = sld [smem:[#allocation3 + $0xc]]
    %v129 = vstv %s128
    %v130 = vmul.f32 %v129, %v112
    %s131 = sld [smem:[#allocation3 + $0xd]]
    %v132 = vstv %s131
    %v133 = vmul.f32 %v132, %v113
    %v134 = vadd.f32 %v130, %v133
    %s135 = sld [smem:[#allocation3 + $0xe]]
    %v136 = vstv %s135
    %v137 = vmul.f32 %v136, %v112
    %s138 = sld [smem:[#allocation3 + $0xf]]
    %v139 = vstv %s138
    %v140 = vmul.f32 %v139, %v113
    %v141 = vadd.f32 %v137, %v140
    %v142 = vmul.f32 %v78, %v120
    %v143 = vmul.f32 %v85, %v134
    %v144 = vadd.f32 %v142, %v143
    %v145 = vmul.f32 %v78, %v127
    %v146 = vmul.f32 %v85, %v141
    %v147 = vadd.f32 %v145, %v146
    %v148 = vmul.f32 %v144, %v144
    %v149 = vmul.f32 %v147, %v147
    %v150 = vadd.f32 %v148, %v149
    %v151 = vrsqrt.pop %v150
    %v152 = vmul.f32 %v150, %v151
    %vm153 = vcmp.eq.f32.partialorder %v150, inf
    %v154 = vsel %vm153, %v150, %v152
    %vm155 = vcmp.eq.f32.partialorder %v150, 0.0
    %v156 = vand.u32 %v150, 2147483648
    %v157 = vsel %vm155, %v156, %v154
    %v158 = vadd.f32 %v157, 1e-06
    %v159 = vrcp.pop %v158
    %v160 = vmul.f32 1.0, %v159
    %v161 = vmul.f32 %v144, %v160
    %v162 = vmul.f32 %v147, %v160
    %s163 = scalar_lea.vmem [#allocation11], 16
    %164 = vst [vmem:[%s163] sm:$0xff] %v161
    %s165 = scalar_lea.vmem [#allocation11], 24
    %166 = vst [vmem:[%s165] sm:$0xff] %v162
    %s167 = scalar_lea.vmem [#allocation9], 32
    %v168 = vld [vmem:[%s167] sm:$0xff]
    %s169 = scalar_lea.vmem [#allocation9], 40
    %v170 = vld [vmem:[%s169] sm:$0xff]
    %v171 = vmul.f32 %v168, %v168
    %v172 = vmul.f32 %v170, %v170
    %v173 = vadd.f32 %v171, %v172
    %v174 = vrsqrt.pop %v173
    %v175 = vmul.f32 %v168, %v174
    %v176 = vmul.f32 %v170, %v174
    %s177 = sld [smem:[#allocation3 + $0x10]]
    %v178 = vstv %s177
    %v179 = vmul.f32 %v178, %v175
    %s180 = sld [smem:[#allocation3 + $0x11]]
    %v181 = vstv %s180
    %v182 = vmul.f32 %v181, %v176
    %v183 = vadd.f32 %v179, %v182
    %s184 = sld [smem:[#allocation3 + $0x12]]
    %v185 = vstv %s184
    %v186 = vmul.f32 %v185, %v175
    %s187 = sld [smem:[#allocation3 + $0x13]]
    %v188 = vstv %s187
    %v189 = vmul.f32 %v188, %v176
    %v190 = vadd.f32 %v186, %v189
    %s191 = sld [smem:[#allocation3 + $0x14]]
    %v192 = vstv %s191
    %v193 = vmul.f32 %v192, %v175
    %s194 = sld [smem:[#allocation3 + $0x15]]
    %v195 = vstv %s194
    %v196 = vmul.f32 %v195, %v176
    %v197 = vadd.f32 %v193, %v196
    %s198 = sld [smem:[#allocation3 + $0x16]]
    %v199 = vstv %s198
    %v200 = vmul.f32 %v199, %v175
    %s201 = sld [smem:[#allocation3 + $0x17]]
    %v202 = vstv %s201
    %v203 = vmul.f32 %v202, %v176
    %v204 = vadd.f32 %v200, %v203
    %v205 = vmul.f32 %v144, %v183
    %v206 = vmul.f32 %v147, %v197
    %v207 = vadd.f32 %v205, %v206
    %v208 = vmul.f32 %v144, %v190
    %v209 = vmul.f32 %v147, %v204
    %v210 = vadd.f32 %v208, %v209
    %v211 = vmul.f32 %v207, %v207
    %v212 = vmul.f32 %v210, %v210
    %v213 = vadd.f32 %v211, %v212
    %v214 = vrsqrt.pop %v213
    %v215 = vmul.f32 %v213, %v214
    %vm216 = vcmp.eq.f32.partialorder %v213, inf
    %v217 = vsel %vm216, %v213, %v215
    %vm218 = vcmp.eq.f32.partialorder %v213, 0.0
    %v219 = vand.u32 %v213, 2147483648
    %v220 = vsel %vm218, %v219, %v217
    %v221 = vadd.f32 %v220, 1e-06
    %v222 = vrcp.pop %v221
    %v223 = vmul.f32 1.0, %v222
    %v224 = vmul.f32 %v207, %v223
    %v225 = vmul.f32 %v210, %v223
    %s226 = scalar_lea.vmem [#allocation11], 32
    %227 = vst [vmem:[%s226] sm:$0xff] %v224
    %s228 = scalar_lea.vmem [#allocation11], 40
    %229 = vst [vmem:[%s228] sm:$0xff] %v225
    %s230 = scalar_lea.vmem [#allocation9], 48
    %v231 = vld [vmem:[%s230] sm:$0xff]
    %s232 = scalar_lea.vmem [#allocation9], 56
    %v233 = vld [vmem:[%s232] sm:$0xff]
    %v234 = vmul.f32 %v231, %v231
    %v235 = vmul.f32 %v233, %v233
    %v236 = vadd.f32 %v234, %v235
    %v237 = vrsqrt.pop %v236
    %v238 = vmul.f32 %v231, %v237
    %v239 = vmul.f32 %v233, %v237
    %s240 = sld [smem:[#allocation3 + $0x18]]
    %v241 = vstv %s240
    %v242 = vmul.f32 %v241, %v238
    %s243 = sld [smem:[#allocation3 + $0x19]]
    %v244 = vstv %s243
    %v245 = vmul.f32 %v244, %v239
    %v246 = vadd.f32 %v242, %v245
    %s247 = sld [smem:[#allocation3 + $0x1a]]
    %v248 = vstv %s247
    %v249 = vmul.f32 %v248, %v238
    %s250 = sld [smem:[#allocation3 + $0x1b]]
    %v251 = vstv %s250
    %v252 = vmul.f32 %v251, %v239
    %v253 = vadd.f32 %v249, %v252
    %s254 = sld [smem:[#allocation3 + $0x1c]]
    %v255 = vstv %s254
    %v256 = vmul.f32 %v255, %v238
    %s257 = sld [smem:[#allocation3 + $0x1d]]
    %v258 = vstv %s257
    %v259 = vmul.f32 %v258, %v239
    %v260 = vadd.f32 %v256, %v259
    %s261 = sld [smem:[#allocation3 + $0x1e]]
    %v262 = vstv %s261
    %v263 = vmul.f32 %v262, %v238
    %s264 = sld [smem:[#allocation3 + $0x1f]]
    %v265 = vstv %s264
    %v266 = vmul.f32 %v265, %v239
    %v267 = vadd.f32 %v263, %v266
    %v268 = vmul.f32 %v207, %v246
    %v269 = vmul.f32 %v210, %v260
    %v270 = vadd.f32 %v268, %v269
    %v271 = vmul.f32 %v207, %v253
    %v272 = vmul.f32 %v210, %v267
    %v273 = vadd.f32 %v271, %v272
    %v274 = vmul.f32 %v270, %v270
    %v275 = vmul.f32 %v273, %v273
    %v276 = vadd.f32 %v274, %v275
    %v277 = vrsqrt.pop %v276
    %v278 = vmul.f32 %v276, %v277
    %vm279 = vcmp.eq.f32.partialorder %v276, inf
    %v280 = vsel %vm279, %v276, %v278
    %vm281 = vcmp.eq.f32.partialorder %v276, 0.0
    %v282 = vand.u32 %v276, 2147483648
    %v283 = vsel %vm281, %v282, %v280
    %v284 = vadd.f32 %v283, 1e-06
    %v285 = vrcp.pop %v284
    %v286 = vmul.f32 1.0, %v285
    %v287 = vmul.f32 %v270, %v286
    %v288 = vmul.f32 %v273, %v286
    %s289 = scalar_lea.vmem [#allocation11], 48
    %290 = vst [vmem:[%s289] sm:$0xff] %v287
    %s291 = scalar_lea.vmem [#allocation11], 56
    %292 = vst [vmem:[%s291] sm:$0xff] %v288
    %s293 = scalar_lea.vmem [#allocation9], 64
    %v294 = vld [vmem:[%s293] sm:$0xff]
    %s295 = scalar_lea.vmem [#allocation9], 72
    %v296 = vld [vmem:[%s295] sm:$0xff]
    %v297 = vmul.f32 %v294, %v294
    %v298 = vmul.f32 %v296, %v296
    %v299 = vadd.f32 %v297, %v298
    %v300 = vrsqrt.pop %v299
    %v301 = vmul.f32 %v294, %v300
    %v302 = vmul.f32 %v296, %v300
    %s303 = sld [smem:[#allocation3 + $0x20]]
    %v304 = vstv %s303
    %v305 = vmul.f32 %v304, %v301
    %s306 = sld [smem:[#allocation3 + $0x21]]
    %v307 = vstv %s306
    %v308 = vmul.f32 %v307, %v302
    %v309 = vadd.f32 %v305, %v308
    %s310 = sld [smem:[#allocation3 + $0x22]]
    %v311 = vstv %s310
    %v312 = vmul.f32 %v311, %v301
    %s313 = sld [smem:[#allocation3 + $0x23]]
    %v314 = vstv %s313
    %v315 = vmul.f32 %v314, %v302
    %v316 = vadd.f32 %v312, %v315
    %s317 = sld [smem:[#allocation3 + $0x24]]
    %v318 = vstv %s317
    %v319 = vmul.f32 %v318, %v301
    %s320 = sld [smem:[#allocation3 + $0x25]]
    %v321 = vstv %s320
    %v322 = vmul.f32 %v321, %v302
    %v323 = vadd.f32 %v319, %v322
    %s324 = sld [smem:[#allocation3 + $0x26]]
    %v325 = vstv %s324
    %v326 = vmul.f32 %v325, %v301
    %s327 = sld [smem:[#allocation3 + $0x27]]
    %v328 = vstv %s327
    %v329 = vmul.f32 %v328, %v302
    %v330 = vadd.f32 %v326, %v329
    %v331 = vmul.f32 %v270, %v309
    %v332 = vmul.f32 %v273, %v323
    %v333 = vadd.f32 %v331, %v332
    %v334 = vmul.f32 %v270, %v316
    %v335 = vmul.f32 %v273, %v330
    %v336 = vadd.f32 %v334, %v335
    %v337 = vmul.f32 %v333, %v333
    %v338 = vmul.f32 %v336, %v336
    %v339 = vadd.f32 %v337, %v338
    %v340 = vrsqrt.pop %v339
    %v341 = vmul.f32 %v339, %v340
    %vm342 = vcmp.eq.f32.partialorder %v339, inf
    %v343 = vsel %vm342, %v339, %v341
    %vm344 = vcmp.eq.f32.partialorder %v339, 0.0
    %v345 = vand.u32 %v339, 2147483648
    %v346 = vsel %vm344, %v345, %v343
    %v347 = vadd.f32 %v346, 1e-06
    %v348 = vrcp.pop %v347
    %v349 = vmul.f32 1.0, %v348
    %v350 = vmul.f32 %v333, %v349
    %v351 = vmul.f32 %v336, %v349
    %s352 = scalar_lea.vmem [#allocation11], 64
    %353 = vst [vmem:[%s352] sm:$0xff] %v350
    %s354 = scalar_lea.vmem [#allocation11], 72
    %355 = vst [vmem:[%s354] sm:$0xff] %v351
    %s356 = scalar_lea.vmem [#allocation9], 80
    %v357 = vld [vmem:[%s356] sm:$0xff]
    %s358 = scalar_lea.vmem [#allocation9], 88
    %v359 = vld [vmem:[%s358] sm:$0xff]
    %v360 = vmul.f32 %v357, %v357
    %v361 = vmul.f32 %v359, %v359
    %v362 = vadd.f32 %v360, %v361
    %v363 = vrsqrt.pop %v362
    %v364 = vmul.f32 %v357, %v363
    %v365 = vmul.f32 %v359, %v363
    %s366 = sld [smem:[#allocation3 + $0x28]]
    %v367 = vstv %s366
    %v368 = vmul.f32 %v367, %v364
    %s369 = sld [smem:[#allocation3 + $0x29]]
    %v370 = vstv %s369
    %v371 = vmul.f32 %v370, %v365
    %v372 = vadd.f32 %v368, %v371
    %s373 = sld [smem:[#allocation3 + $0x2a]]
    %v374 = vstv %s373
    %v375 = vmul.f32 %v374, %v364
    %s376 = sld [smem:[#allocation3 + $0x2b]]
    %v377 = vstv %s376
    %v378 = vmul.f32 %v377, %v365
    %v379 = vadd.f32 %v375, %v378
    %s380 = sld [smem:[#allocation3 + $0x2c]]
    %v381 = vstv %s380
    %v382 = vmul.f32 %v381, %v364
    %s383 = sld [smem:[#allocation3 + $0x2d]]
    %v384 = vstv %s383
    %v385 = vmul.f32 %v384, %v365
    %v386 = vadd.f32 %v382, %v385
    %s387 = sld [smem:[#allocation3 + $0x2e]]
    %v388 = vstv %s387
    %v389 = vmul.f32 %v388, %v364
    %s390 = sld [smem:[#allocation3 + $0x2f]]
    %v391 = vstv %s390
    %v392 = vmul.f32 %v391, %v365
    %v393 = vadd.f32 %v389, %v392
    %v394 = vmul.f32 %v333, %v372
    %v395 = vmul.f32 %v336, %v386
    %v396 = vadd.f32 %v394, %v395
    %v397 = vmul.f32 %v333, %v379
    %v398 = vmul.f32 %v336, %v393
    %v399 = vadd.f32 %v397, %v398
    %v400 = vmul.f32 %v396, %v396
    %v401 = vmul.f32 %v399, %v399
    %v402 = vadd.f32 %v400, %v401
    %v403 = vrsqrt.pop %v402
    %v404 = vmul.f32 %v402, %v403
    %vm405 = vcmp.eq.f32.partialorder %v402, inf
    %v406 = vsel %vm405, %v402, %v404
    %vm407 = vcmp.eq.f32.partialorder %v402, 0.0
    %v408 = vand.u32 %v402, 2147483648
    %v409 = vsel %vm407, %v408, %v406
    %v410 = vadd.f32 %v409, 1e-06
    %v411 = vrcp.pop %v410
    %v412 = vmul.f32 1.0, %v411
    %v413 = vmul.f32 %v396, %v412
    %v414 = vmul.f32 %v399, %v412
    %s415 = scalar_lea.vmem [#allocation11], 80
    %416 = vst [vmem:[%s415] sm:$0xff] %v413
    %s417 = scalar_lea.vmem [#allocation11], 88
    %418 = vst [vmem:[%s417] sm:$0xff] %v414
    %s419 = scalar_lea.vmem [#allocation9], 96
    %v420 = vld [vmem:[%s419] sm:$0xff]
    %s421 = scalar_lea.vmem [#allocation9], 104
    %v422 = vld [vmem:[%s421] sm:$0xff]
    %v423 = vmul.f32 %v420, %v420
    %v424 = vmul.f32 %v422, %v422
    %v425 = vadd.f32 %v423, %v424
    %v426 = vrsqrt.pop %v425
    %v427 = vmul.f32 %v420, %v426
    %v428 = vmul.f32 %v422, %v426
    %s429 = sld [smem:[#allocation3 + $0x30]]
    %v430 = vstv %s429
    %v431 = vmul.f32 %v430, %v427
    %s432 = sld [smem:[#allocation3 + $0x31]]
    %v433 = vstv %s432
    %v434 = vmul.f32 %v433, %v428
    %v435 = vadd.f32 %v431, %v434
    %s436 = sld [smem:[#allocation3 + $0x32]]
    %v437 = vstv %s436
    %v438 = vmul.f32 %v437, %v427
    %s439 = sld [smem:[#allocation3 + $0x33]]
    %v440 = vstv %s439
    %v441 = vmul.f32 %v440, %v428
    %v442 = vadd.f32 %v438, %v441
    %s443 = sld [smem:[#allocation3 + $0x34]]
    %v444 = vstv %s443
    %v445 = vmul.f32 %v444, %v427
    %s446 = sld [smem:[#allocation3 + $0x35]]
    %v447 = vstv %s446
    %v448 = vmul.f32 %v447, %v428
    %v449 = vadd.f32 %v445, %v448
    %s450 = sld [smem:[#allocation3 + $0x36]]
    %v451 = vstv %s450
    %v452 = vmul.f32 %v451, %v427
    %s453 = sld [smem:[#allocation3 + $0x37]]
    %v454 = vstv %s453
    %v455 = vmul.f32 %v454, %v428
    %v456 = vadd.f32 %v452, %v455
    %v457 = vmul.f32 %v396, %v435
    %v458 = vmul.f32 %v399, %v449
    %v459 = vadd.f32 %v457, %v458
    %v460 = vmul.f32 %v396, %v442
    %v461 = vmul.f32 %v399, %v456
    %v462 = vadd.f32 %v460, %v461
    %v463 = vmul.f32 %v459, %v459
    %v464 = vmul.f32 %v462, %v462
    %v465 = vadd.f32 %v463, %v464
    %v466 = vrsqrt.pop %v465
    %v467 = vmul.f32 %v465, %v466
    %vm468 = vcmp.eq.f32.partialorder %v465, inf
    %v469 = vsel %vm468, %v465, %v467
    %vm470 = vcmp.eq.f32.partialorder %v465, 0.0
    %v471 = vand.u32 %v465, 2147483648
    %v472 = vsel %vm470, %v471, %v469
    %v473 = vadd.f32 %v472, 1e-06
    %v474 = vrcp.pop %v473
    %v475 = vmul.f32 1.0, %v474
    %v476 = vmul.f32 %v459, %v475
    %v477 = vmul.f32 %v462, %v475
    %s478 = scalar_lea.vmem [#allocation11], 96
    %479 = vst [vmem:[%s478] sm:$0xff] %v476
    %s480 = scalar_lea.vmem [#allocation11], 104
    %481 = vst [vmem:[%s480] sm:$0xff] %v477
    %s482 = scalar_lea.vmem [#allocation9], 112
    %v483 = vld [vmem:[%s482] sm:$0xff]
    %s484 = scalar_lea.vmem [#allocation9], 120
    %v485 = vld [vmem:[%s484] sm:$0xff]
    %v486 = vld [vmem:[%s478] sm:$0xff]
    %v487 = vld [vmem:[%s480] sm:$0xff]
    %s488 = sld [smem:[#allocation7 + $0x70]]
    %v489 = vstv %s488
    %v490 = vmul.f32 %v489, %v486
    %s491 = sld [smem:[#allocation7 + $0x78]]
    %v492 = vstv %s491
    %v493 = vmul.f32 %v492, %v487
    %v494 = vadd.f32 %v490, %v493
    %s495 = sld [smem:[#allocation7 + $0x71]]
    %v496 = vstv %s495
    %v497 = vmul.f32 %v496, %v486
    %s498 = sld [smem:[#allocation7 + $0x79]]
    %v499 = vstv %s498
    %v500 = vmul.f32 %v499, %v487
    %v501 = vadd.f32 %v497, %v500
    %s502 = sld [smem:[#allocation7 + $0x72]]
    %v503 = vstv %s502
    %v504 = vmul.f32 %v503, %v486
    %s505 = sld [smem:[#allocation7 + $0x7a]]
    %v506 = vstv %s505
    %v507 = vmul.f32 %v506, %v487
    %v508 = vadd.f32 %v504, %v507
    %s509 = sld [smem:[#allocation7 + $0x73]]
    %v510 = vstv %s509
    %v511 = vmul.f32 %v510, %v486
    %s512 = sld [smem:[#allocation7 + $0x7b]]
    %v513 = vstv %s512
    %v514 = vmul.f32 %v513, %v487
    %v515 = vadd.f32 %v511, %v514
    %v516 = vmul.f32 %v494, %v494
    %v517 = vmul.f32 %v501, %v501
    %v518 = vmul.f32 %v508, %v508
    %v519 = vmul.f32 %v515, %v515
    %v520 = vadd.f32 %v516, %v517
    %v521 = vadd.f32 %v520, %v518
    %v522 = vadd.f32 %v521, %v519
    %v523 = vrsqrt.pop %v522
    %v524 = vmul.f32 %v522, %v523
    %vm525 = vcmp.eq.f32.partialorder %v522, inf
    %v526 = vsel %vm525, %v522, %v524
    %vm527 = vcmp.eq.f32.partialorder %v522, 0.0
    %v528 = vand.u32 %v522, 2147483648
    %v529 = vsel %vm527, %v528, %v526
    %v530 = vadd.f32 %v529, 1e-06
    %v531 = vstv %s62
    %v532 = vrcp.pop %v530
    %v533 = vmul.f32 %v531, %v532
    %v534 = vmul.f32 %v494, %v533
    %vm535 = vcmp.ne.f32.partialorder %v534, %v534
    %v536 = vsel %vm535, 0.0, %v534
    %v537 = vmul.f32 %v536, %v483
    %v538 = vmul.f32 %v501, %v533
    %vm539 = vcmp.ne.f32.partialorder %v538, %v538
    %v540 = vsel %vm539, 0.0, %v538
    %v541 = vmul.f32 %v540, %v485
    %v542 = vadd.f32 %v537, %v541
    %vm543 = vcmp.ge.f32.partialorder %v542, 0.0
    %v544 = vmul.f32 %v542, 1e-05
    %v545 = vsel %vm543, %v542, %v544
    %v546 = vand.u32 2147483647, %v545
    %v547 = vmul.f32 %v508, %v533
    %vm548 = vcmp.ne.f32.partialorder %v547, %v547
    %v549 = vsel %vm548, 0.0, %v547
    %v550 = vmul.f32 %v549, %v483
    %v551 = vmul.f32 %v515, %v533
    %vm552 = vcmp.ne.f32.partialorder %v551, %v551
    %v553 = vsel %vm552, 0.0, %v551
    %v554 = vmul.f32 %v553, %v485
    %v555 = vadd.f32 %v550, %v554
    %vm556 = vcmp.ge.f32.partialorder %v555, 0.0
    %v557 = vmul.f32 %v555, 1e-05
    %v558 = vsel %vm556, %v555, %v557
    %v559 = vand.u32 2147483647, %v558
    %v560 = vadd.f32 %v546, %v559
    %v561 = vrcp.pop %v560
    %v562 = vmul.f32 1.0, %v561
    %v563 = vmul.f32 %v546, %v562
    %s564 = scalar_lea.vmem [#allocation10], 112
    %565 = vst [vmem:[%s564] sm:$0xff] %v563
    %v566 = vmul.f32 %v559, %v562
    %s567 = scalar_lea.vmem [#allocation10], 120
    %568 = vst [vmem:[%s567] sm:$0xff] %v566
    %v569 = vmul.f32 %v483, %v483
    %v570 = vmul.f32 %v485, %v485
    %v571 = vadd.f32 %v569, %v570
    %v572 = vrsqrt.pop %v571
    %v573 = vmul.f32 %v483, %v572
    %v574 = vmul.f32 %v485, %v572
    %s575 = sld [smem:[#allocation3 + $0x38]]
    %v576 = vstv %s575
    %v577 = vmul.f32 %v576, %v573
    %s578 = sld [smem:[#allocation3 + $0x39]]
    %v579 = vstv %s578
    %v580 = vmul.f32 %v579, %v574
    %v581 = vadd.f32 %v577, %v580
    %s582 = sld [smem:[#allocation3 + $0x3c]]
    %v583 = vstv %s582
    %v584 = vmul.f32 %v583, %v573
    %s585 = sld [smem:[#allocation3 + $0x3d]]
    %v586 = vstv %s585
    %v587 = vmul.f32 %v586, %v574
    %v588 = vadd.f32 %v584, %v587
    %v589 = vmul.f32 %v581, %v581
    %v590 = vmul.f32 %v588, %v588
    %v591 = vadd.f32 %v589, %v590
    %v592 = vrsqrt.pop %v591
    %v593 = vmul.f32 %v591, %v592
    %vm594 = vcmp.eq.f32.partialorder %v591, inf
    %v595 = vsel %vm594, %v591, %v593
    %vm596 = vcmp.eq.f32.partialorder %v591, 0.0
    %v597 = vand.u32 %v591, 2147483648
    %v598 = vsel %vm596, %v597, %v595
    %v599 = vadd.f32 %v598, 1e-06
    %v600 = vrcp.pop %v599
    %v601 = vmul.f32 1.0, %v600
    %v602 = vmul.f32 %v581, %v601
    %v603 = vmul.f32 %v588, %v601
    %s604 = scalar_lea.vmem [#allocation13], 96
    %605 = vst [vmem:[%s604] sm:$0xff] %v602
    %s606 = scalar_lea.vmem [#allocation13], 104
    %607 = vst [vmem:[%s606] sm:$0xff] %v603
    %v608 = vld [vmem:[%s419] sm:$0xff]
    %v609 = vld [vmem:[%s421] sm:$0xff]
    %v610 = vld [vmem:[%s415] sm:$0xff]
    %v611 = vld [vmem:[%s417] sm:$0xff]
    %v612 = vmul.f32 %v610, %v602
    %v613 = vmul.f32 %v610, %v603
    %v614 = vmul.f32 %v611, %v602
    %v615 = vmul.f32 %v611, %v603
    %s616 = sld [smem:[#allocation7 + $0x60]]
    %v617 = vstv %s616
    %v618 = vmul.f32 %v617, %v612
    %s619 = sld [smem:[#allocation7 + $0x64]]
    %v620 = vstv %s619
    %v621 = vmul.f32 %v620, %v613
    %s622 = sld [smem:[#allocation7 + $0x68]]
    %v623 = vstv %s622
    %v624 = vmul.f32 %v623, %v614
    %s625 = sld [smem:[#allocation7 + $0x6c]]
    %v626 = vstv %s625
    %v627 = vmul.f32 %v626, %v615
    %v628 = vadd.f32 %v618, %v621
    %v629 = vadd.f32 %v628, %v624
    %v630 = vadd.f32 %v629, %v627
    %s631 = sld [smem:[#allocation7 + $0x61]]
    %v632 = vstv %s631
    %v633 = vmul.f32 %v632, %v612
    %s634 = sld [smem:[#allocation7 + $0x65]]
    %v635 = vstv %s634
    %v636 = vmul.f32 %v635, %v613
    %s637 = sld [smem:[#allocation7 + $0x69]]
    %v638 = vstv %s637
    %v639 = vmul.f32 %v638, %v614
    %s640 = sld [smem:[#allocation7 + $0x6d]]
    %v641 = vstv %s640
    %v642 = vmul.f32 %v641, %v615
    %v643 = vadd.f32 %v633, %v636
    %v644 = vadd.f32 %v643, %v639
    %v645 = vadd.f32 %v644, %v642
    %s646 = sld [smem:[#allocation7 + $0x62]]
    %v647 = vstv %s646
    %v648 = vmul.f32 %v647, %v612
    %s649 = sld [smem:[#allocation7 + $0x66]]
    %v650 = vstv %s649
    %v651 = vmul.f32 %v650, %v613
    %s652 = sld [smem:[#allocation7 + $0x6a]]
    %v653 = vstv %s652
    %v654 = vmul.f32 %v653, %v614
    %s655 = sld [smem:[#allocation7 + $0x6e]]
    %v656 = vstv %s655
    %v657 = vmul.f32 %v656, %v615
    %v658 = vadd.f32 %v648, %v651
    %v659 = vadd.f32 %v658, %v654
    %v660 = vadd.f32 %v659, %v657
    %s661 = sld [smem:[#allocation7 + $0x63]]
    %v662 = vstv %s661
    %v663 = vmul.f32 %v662, %v612
    %s664 = sld [smem:[#allocation7 + $0x67]]
    %v665 = vstv %s664
    %v666 = vmul.f32 %v665, %v613
    %s667 = sld [smem:[#allocation7 + $0x6b]]
    %v668 = vstv %s667
    %v669 = vmul.f32 %v668, %v614
    %s670 = sld [smem:[#allocation7 + $0x6f]]
    %v671 = vstv %s670
    %v672 = vmul.f32 %v671, %v615
    %v673 = vadd.f32 %v663, %v666
    %v674 = vadd.f32 %v673, %v669
    %v675 = vadd.f32 %v674, %v672
    %v676 = vmul.f32 %v630, %v630
    %v677 = vmul.f32 %v645, %v645
    %v678 = vmul.f32 %v660, %v660
    %v679 = vmul.f32 %v675, %v675
    %v680 = vadd.f32 %v676, %v677
    %v681 = vadd.f32 %v680, %v678
    %v682 = vadd.f32 %v681, %v679
    %v683 = vrsqrt.pop %v682
    %v684 = vmul.f32 %v682, %v683
    %vm685 = vcmp.eq.f32.partialorder %v682, inf
    %v686 = vsel %vm685, %v682, %v684
    %vm687 = vcmp.eq.f32.partialorder %v682, 0.0
    %v688 = vand.u32 %v682, 2147483648
    %v689 = vsel %vm687, %v688, %v686
    %v690 = vadd.f32 %v689, 1e-06
    %v691 = vrcp.pop %v690
    %v692 = vmul.f32 %v531, %v691
    %v693 = vmul.f32 %v630, %v692
    %vm694 = vcmp.ne.f32.partialorder %v693, %v693
    %v695 = vsel %vm694, 0.0, %v693
    %v696 = vmul.f32 %v695, %v608
    %v697 = vmul.f32 %v645, %v692
    %vm698 = vcmp.ne.f32.partialorder %v697, %v697
    %v699 = vsel %vm698, 0.0, %v697
    %v700 = vmul.f32 %v699, %v609
    %v701 = vadd.f32 %v696, %v700
    %vm702 = vcmp.ge.f32.partialorder %v701, 0.0
    %v703 = vmul.f32 %v701, 1e-05
    %v704 = vsel %vm702, %v701, %v703
    %v705 = vand.u32 2147483647, %v704
    %v706 = vmul.f32 %v660, %v692
    %vm707 = vcmp.ne.f32.partialorder %v706, %v706
    %v708 = vsel %vm707, 0.0, %v706
    %v709 = vmul.f32 %v708, %v608
    %v710 = vmul.f32 %v675, %v692
    %vm711 = vcmp.ne.f32.partialorder %v710, %v710
    %v712 = vsel %vm711, 0.0, %v710
    %v713 = vmul.f32 %v712, %v609
    %v714 = vadd.f32 %v709, %v713
    %vm715 = vcmp.ge.f32.partialorder %v714, 0.0
    %v716 = vmul.f32 %v714, 1e-05
    %v717 = vsel %vm715, %v714, %v716
    %v718 = vand.u32 2147483647, %v717
    %v719 = vadd.f32 %v705, %v718
    %v720 = vrcp.pop %v719
    %v721 = vmul.f32 1.0, %v720
    %v722 = vmul.f32 %v705, %v721
    %s723 = scalar_lea.vmem [#allocation10], 96
    %724 = vst [vmem:[%s723] sm:$0xff] %v722
    %v725 = vmul.f32 %v718, %v721
    %s726 = scalar_lea.vmem [#allocation10], 104
    %727 = vst [vmem:[%s726] sm:$0xff] %v725
    %v728 = vmul.f32 %v608, %v608
    %v729 = vmul.f32 %v609, %v609
    %v730 = vadd.f32 %v728, %v729
    %v731 = vrsqrt.pop %v730
    %v732 = vmul.f32 %v608, %v731
    %v733 = vmul.f32 %v609, %v731
    %s734 = sld [smem:[#allocation3 + $0x30]]
    %v735 = vstv %s734
    %v736 = vmul.f32 %v735, %v732
    %s737 = sld [smem:[#allocation3 + $0x31]]
    %v738 = vstv %s737
    %v739 = vmul.f32 %v738, %v733
    %v740 = vadd.f32 %v736, %v739
    %s741 = sld [smem:[#allocation3 + $0x32]]
    %v742 = vstv %s741
    %v743 = vmul.f32 %v742, %v732
    %s744 = sld [smem:[#allocation3 + $0x33]]
    %v745 = vstv %s744
    %v746 = vmul.f32 %v745, %v733
    %v747 = vadd.f32 %v743, %v746
    %s748 = sld [smem:[#allocation3 + $0x34]]
    %v749 = vstv %s748
    %v750 = vmul.f32 %v749, %v732
    %s751 = sld [smem:[#allocation3 + $0x35]]
    %v752 = vstv %s751
    %v753 = vmul.f32 %v752, %v733
    %v754 = vadd.f32 %v750, %v753
    %s755 = sld [smem:[#allocation3 + $0x36]]
    %v756 = vstv %s755
    %v757 = vmul.f32 %v756, %v732
    %s758 = sld [smem:[#allocation3 + $0x37]]
    %v759 = vstv %s758
    %v760 = vmul.f32 %v759, %v733
    %v761 = vadd.f32 %v757, %v760
    %v762 = vmul.f32 %v740, %v581
    %v763 = vmul.f32 %v747, %v588
    %v764 = vadd.f32 %v762, %v763
    %v765 = vmul.f32 %v754, %v581
    %v766 = vmul.f32 %v761, %v588
    %v767 = vadd.f32 %v765, %v766
    %v768 = vmul.f32 %v764, %v764
    %v769 = vmul.f32 %v767, %v767
    %v770 = vadd.f32 %v768, %v769
    %v771 = vrsqrt.pop %v770
    %v772 = vmul.f32 %v770, %v771
    %vm773 = vcmp.eq.f32.partialorder %v770, inf
    %v774 = vsel %vm773, %v770, %v772
    %vm775 = vcmp.eq.f32.partialorder %v770, 0.0
    %v776 = vand.u32 %v770, 2147483648
    %v777 = vsel %vm775, %v776, %v774
    %v778 = vadd.f32 %v777, 1e-06
    %v779 = vrcp.pop %v778
    %v780 = vmul.f32 1.0, %v779
    %v781 = vmul.f32 %v764, %v780
    %v782 = vmul.f32 %v767, %v780
    %s783 = scalar_lea.vmem [#allocation13], 80
    %784 = vst [vmem:[%s783] sm:$0xff] %v781
    %s785 = scalar_lea.vmem [#allocation13], 88
    %786 = vst [vmem:[%s785] sm:$0xff] %v782
    %v787 = vld [vmem:[%s356] sm:$0xff]
    %v788 = vld [vmem:[%s358] sm:$0xff]
    %v789 = vld [vmem:[%s352] sm:$0xff]
    %v790 = vld [vmem:[%s354] sm:$0xff]
    %v791 = vmul.f32 %v789, %v781
    %v792 = vmul.f32 %v789, %v782
    %v793 = vmul.f32 %v790, %v781
    %v794 = vmul.f32 %v790, %v782
    %s795 = sld [smem:[#allocation7 + $0x50]]
    %v796 = vstv %s795
    %v797 = vmul.f32 %v796, %v791
    %s798 = sld [smem:[#allocation7 + $0x54]]
    %v799 = vstv %s798
    %v800 = vmul.f32 %v799, %v792
    %s801 = sld [smem:[#allocation7 + $0x58]]
    %v802 = vstv %s801
    %v803 = vmul.f32 %v802, %v793
    %s804 = sld [smem:[#allocation7 + $0x5c]]
    %v805 = vstv %s804
    %v806 = vmul.f32 %v805, %v794
    %v807 = vadd.f32 %v797, %v800
    %v808 = vadd.f32 %v807, %v803
    %v809 = vadd.f32 %v808, %v806
    %s810 = sld [smem:[#allocation7 + $0x51]]
    %v811 = vstv %s810
    %v812 = vmul.f32 %v811, %v791
    %s813 = sld [smem:[#allocation7 + $0x55]]
    %v814 = vstv %s813
    %v815 = vmul.f32 %v814, %v792
    %s816 = sld [smem:[#allocation7 + $0x59]]
    %v817 = vstv %s816
    %v818 = vmul.f32 %v817, %v793
    %s819 = sld [smem:[#allocation7 + $0x5d]]
    %v820 = vstv %s819
    %v821 = vmul.f32 %v820, %v794
    %v822 = vadd.f32 %v812, %v815
    %v823 = vadd.f32 %v822, %v818
    %v824 = vadd.f32 %v823, %v821
    %s825 = sld [smem:[#allocation7 + $0x52]]
    %v826 = vstv %s825
    %v827 = vmul.f32 %v826, %v791
    %s828 = sld [smem:[#allocation7 + $0x56]]
    %v829 = vstv %s828
    %v830 = vmul.f32 %v829, %v792
    %s831 = sld [smem:[#allocation7 + $0x5a]]
    %v832 = vstv %s831
    %v833 = vmul.f32 %v832, %v793
    %s834 = sld [smem:[#allocation7 + $0x5e]]
    %v835 = vstv %s834
    %v836 = vmul.f32 %v835, %v794
    %v837 = vadd.f32 %v827, %v830
    %v838 = vadd.f32 %v837, %v833
    %v839 = vadd.f32 %v838, %v836
    %s840 = sld [smem:[#allocation7 + $0x53]]
    %v841 = vstv %s840
    %v842 = vmul.f32 %v841, %v791
    %s843 = sld [smem:[#allocation7 + $0x57]]
    %v844 = vstv %s843
    %v845 = vmul.f32 %v844, %v792
    %s846 = sld [smem:[#allocation7 + $0x5b]]
    %v847 = vstv %s846
    %v848 = vmul.f32 %v847, %v793
    %s849 = sld [smem:[#allocation7 + $0x5f]]
    %v850 = vstv %s849
    %v851 = vmul.f32 %v850, %v794
    %v852 = vadd.f32 %v842, %v845
    %v853 = vadd.f32 %v852, %v848
    %v854 = vadd.f32 %v853, %v851
    %v855 = vmul.f32 %v809, %v809
    %v856 = vmul.f32 %v824, %v824
    %v857 = vmul.f32 %v839, %v839
    %v858 = vmul.f32 %v854, %v854
    %v859 = vadd.f32 %v855, %v856
    %v860 = vadd.f32 %v859, %v857
    %v861 = vadd.f32 %v860, %v858
    %v862 = vrsqrt.pop %v861
    %v863 = vmul.f32 %v861, %v862
    %vm864 = vcmp.eq.f32.partialorder %v861, inf
    %v865 = vsel %vm864, %v861, %v863
    %vm866 = vcmp.eq.f32.partialorder %v861, 0.0
    %v867 = vand.u32 %v861, 2147483648
    %v868 = vsel %vm866, %v867, %v865
    %v869 = vadd.f32 %v868, 1e-06
    %v870 = vrcp.pop %v869
    %v871 = vmul.f32 %v531, %v870
    %v872 = vmul.f32 %v809, %v871
    %vm873 = vcmp.ne.f32.partialorder %v872, %v872
    %v874 = vsel %vm873, 0.0, %v872
    %v875 = vmul.f32 %v874, %v787
    %v876 = vmul.f32 %v824, %v871
    %vm877 = vcmp.ne.f32.partialorder %v876, %v876
    %v878 = vsel %vm877, 0.0, %v876
    %v879 = vmul.f32 %v878, %v788
    %v880 = vadd.f32 %v875, %v879
    %vm881 = vcmp.ge.f32.partialorder %v880, 0.0
    %v882 = vmul.f32 %v880, 1e-05
    %v883 = vsel %vm881, %v880, %v882
    %v884 = vand.u32 2147483647, %v883
    %v885 = vmul.f32 %v839, %v871
    %vm886 = vcmp.ne.f32.partialorder %v885, %v885
    %v887 = vsel %vm886, 0.0, %v885
    %v888 = vmul.f32 %v887, %v787
    %v889 = vmul.f32 %v854, %v871
    %vm890 = vcmp.ne.f32.partialorder %v889, %v889
    %v891 = vsel %vm890, 0.0, %v889
    %v892 = vmul.f32 %v891, %v788
    %v893 = vadd.f32 %v888, %v892
    %vm894 = vcmp.ge.f32.partialorder %v893, 0.0
    %v895 = vmul.f32 %v893, 1e-05
    %v896 = vsel %vm894, %v893, %v895
    %v897 = vand.u32 2147483647, %v896
    %v898 = vadd.f32 %v884, %v897
    %v899 = vrcp.pop %v898
    %v900 = vmul.f32 1.0, %v899
    %v901 = vmul.f32 %v884, %v900
    %s902 = scalar_lea.vmem [#allocation10], 80
    %903 = vst [vmem:[%s902] sm:$0xff] %v901
    %v904 = vmul.f32 %v897, %v900
    %s905 = scalar_lea.vmem [#allocation10], 88
    %906 = vst [vmem:[%s905] sm:$0xff] %v904
    %v907 = vmul.f32 %v787, %v787
    %v908 = vmul.f32 %v788, %v788
    %v909 = vadd.f32 %v907, %v908
    %v910 = vrsqrt.pop %v909
    %v911 = vmul.f32 %v787, %v910
    %v912 = vmul.f32 %v788, %v910
    %s913 = sld [smem:[#allocation3 + $0x28]]
    %v914 = vstv %s913
    %v915 = vmul.f32 %v914, %v911
    %s916 = sld [smem:[#allocation3 + $0x29]]
    %v917 = vstv %s916
    %v918 = vmul.f32 %v917, %v912
    %v919 = vadd.f32 %v915, %v918
    %s920 = sld [smem:[#allocation3 + $0x2a]]
    %v921 = vstv %s920
    %v922 = vmul.f32 %v921, %v911
    %s923 = sld [smem:[#allocation3 + $0x2b]]
    %v924 = vstv %s923
    %v925 = vmul.f32 %v924, %v912
    %v926 = vadd.f32 %v922, %v925
    %s927 = sld [smem:[#allocation3 + $0x2c]]
    %v928 = vstv %s927
    %v929 = vmul.f32 %v928, %v911
    %s930 = sld [smem:[#allocation3 + $0x2d]]
    %v931 = vstv %s930
    %v932 = vmul.f32 %v931, %v912
    %v933 = vadd.f32 %v929, %v932
    %s934 = sld [smem:[#allocation3 + $0x2e]]
    %v935 = vstv %s934
    %v936 = vmul.f32 %v935, %v911
    %s937 = sld [smem:[#allocation3 + $0x2f]]
    %v938 = vstv %s937
    %v939 = vmul.f32 %v938, %v912
    %v940 = vadd.f32 %v936, %v939
    %v941 = vmul.f32 %v919, %v764
    %v942 = vmul.f32 %v926, %v767
    %v943 = vadd.f32 %v941, %v942
    %v944 = vmul.f32 %v933, %v764
    %v945 = vmul.f32 %v940, %v767
    %v946 = vadd.f32 %v944, %v945
    %v947 = vmul.f32 %v943, %v943
    %v948 = vmul.f32 %v946, %v946
    %v949 = vadd.f32 %v947, %v948
    %v950 = vrsqrt.pop %v949
    %v951 = vmul.f32 %v949, %v950
    %vm952 = vcmp.eq.f32.partialorder %v949, inf
    %v953 = vsel %vm952, %v949, %v951
    %vm954 = vcmp.eq.f32.partialorder %v949, 0.0
    %v955 = vand.u32 %v949, 2147483648
    %v956 = vsel %vm954, %v955, %v953
    %v957 = vadd.f32 %v956, 1e-06
    %v958 = vrcp.pop %v957
    %v959 = vmul.f32 1.0, %v958
    %v960 = vmul.f32 %v943, %v959
    %v961 = vmul.f32 %v946, %v959
    %s962 = scalar_lea.vmem [#allocation13], 64
    %963 = vst [vmem:[%s962] sm:$0xff] %v960
    %s964 = scalar_lea.vmem [#allocation13], 72
    %965 = vst [vmem:[%s964] sm:$0xff] %v961
    %v966 = vld [vmem:[%s293] sm:$0xff]
    %v967 = vld [vmem:[%s295] sm:$0xff]
    %v968 = vld [vmem:[%s289] sm:$0xff]
    %v969 = vld [vmem:[%s291] sm:$0xff]
    %v970 = vmul.f32 %v968, %v960
    %v971 = vmul.f32 %v968, %v961
    %v972 = vmul.f32 %v969, %v960
    %v973 = vmul.f32 %v969, %v961
    %s974 = sld [smem:[#allocation7 + $0x40]]
    %v975 = vstv %s974
    %v976 = vmul.f32 %v975, %v970
    %s977 = sld [smem:[#allocation7 + $0x44]]
    %v978 = vstv %s977
    %v979 = vmul.f32 %v978, %v971
    %s980 = sld [smem:[#allocation7 + $0x48]]
    %v981 = vstv %s980
    %v982 = vmul.f32 %v981, %v972
    %s983 = sld [smem:[#allocation7 + $0x4c]]
    %v984 = vstv %s983
    %v985 = vmul.f32 %v984, %v973
    %v986 = vadd.f32 %v976, %v979
    %v987 = vadd.f32 %v986, %v982
    %v988 = vadd.f32 %v987, %v985
    %s989 = sld [smem:[#allocation7 + $0x41]]
    %v990 = vstv %s989
    %v991 = vmul.f32 %v990, %v970
    %s992 = sld [smem:[#allocation7 + $0x45]]
    %v993 = vstv %s992
    %v994 = vmul.f32 %v993, %v971
    %s995 = sld [smem:[#allocation7 + $0x49]]
    %v996 = vstv %s995
    %v997 = vmul.f32 %v996, %v972
    %s998 = sld [smem:[#allocation7 + $0x4d]]
    %v999 = vstv %s998
    %v1000 = vmul.f32 %v999, %v973
    %v1001 = vadd.f32 %v991, %v994
    %v1002 = vadd.f32 %v1001, %v997
    %v1003 = vadd.f32 %v1002, %v1000
    %s1004 = sld [smem:[#allocation7 + $0x42]]
    %v1005 = vstv %s1004
    %v1006 = vmul.f32 %v1005, %v970
    %s1007 = sld [smem:[#allocation7 + $0x46]]
    %v1008 = vstv %s1007
    %v1009 = vmul.f32 %v1008, %v971
    %s1010 = sld [smem:[#allocation7 + $0x4a]]
    %v1011 = vstv %s1010
    %v1012 = vmul.f32 %v1011, %v972
    %s1013 = sld [smem:[#allocation7 + $0x4e]]
    %v1014 = vstv %s1013
    %v1015 = vmul.f32 %v1014, %v973
    %v1016 = vadd.f32 %v1006, %v1009
    %v1017 = vadd.f32 %v1016, %v1012
    %v1018 = vadd.f32 %v1017, %v1015
    %s1019 = sld [smem:[#allocation7 + $0x43]]
    %v1020 = vstv %s1019
    %v1021 = vmul.f32 %v1020, %v970
    %s1022 = sld [smem:[#allocation7 + $0x47]]
    %v1023 = vstv %s1022
    %v1024 = vmul.f32 %v1023, %v971
    %s1025 = sld [smem:[#allocation7 + $0x4b]]
    %v1026 = vstv %s1025
    %v1027 = vmul.f32 %v1026, %v972
    %s1028 = sld [smem:[#allocation7 + $0x4f]]
    %v1029 = vstv %s1028
    %v1030 = vmul.f32 %v1029, %v973
    %v1031 = vadd.f32 %v1021, %v1024
    %v1032 = vadd.f32 %v1031, %v1027
    %v1033 = vadd.f32 %v1032, %v1030
    %v1034 = vmul.f32 %v988, %v988
    %v1035 = vmul.f32 %v1003, %v1003
    %v1036 = vmul.f32 %v1018, %v1018
    %v1037 = vmul.f32 %v1033, %v1033
    %v1038 = vadd.f32 %v1034, %v1035
    %v1039 = vadd.f32 %v1038, %v1036
    %v1040 = vadd.f32 %v1039, %v1037
    %v1041 = vrsqrt.pop %v1040
    %v1042 = vmul.f32 %v1040, %v1041
    %vm1043 = vcmp.eq.f32.partialorder %v1040, inf
    %v1044 = vsel %vm1043, %v1040, %v1042
    %vm1045 = vcmp.eq.f32.partialorder %v1040, 0.0
    %v1046 = vand.u32 %v1040, 2147483648
    %v1047 = vsel %vm1045, %v1046, %v1044
    %v1048 = vadd.f32 %v1047, 1e-06
    %v1049 = vrcp.pop %v1048
    %v1050 = vmul.f32 %v531, %v1049
    %v1051 = vmul.f32 %v988, %v1050
    %vm1052 = vcmp.ne.f32.partialorder %v1051, %v1051
    %v1053 = vsel %vm1052, 0.0, %v1051
    %v1054 = vmul.f32 %v1053, %v966
    %v1055 = vmul.f32 %v1003, %v1050
    %vm1056 = vcmp.ne.f32.partialorder %v1055, %v1055
    %v1057 = vsel %vm1056, 0.0, %v1055
    %v1058 = vmul.f32 %v1057, %v967
    %v1059 = vadd.f32 %v1054, %v1058
    %vm1060 = vcmp.ge.f32.partialorder %v1059, 0.0
    %v1061 = vmul.f32 %v1059, 1e-05
    %v1062 = vsel %vm1060, %v1059, %v1061
    %v1063 = vand.u32 2147483647, %v1062
    %v1064 = vmul.f32 %v1018, %v1050
    %vm1065 = vcmp.ne.f32.partialorder %v1064, %v1064
    %v1066 = vsel %vm1065, 0.0, %v1064
    %v1067 = vmul.f32 %v1066, %v966
    %v1068 = vmul.f32 %v1033, %v1050
    %vm1069 = vcmp.ne.f32.partialorder %v1068, %v1068
    %v1070 = vsel %vm1069, 0.0, %v1068
    %v1071 = vmul.f32 %v1070, %v967
    %v1072 = vadd.f32 %v1067, %v1071
    %vm1073 = vcmp.ge.f32.partialorder %v1072, 0.0
    %v1074 = vmul.f32 %v1072, 1e-05
    %v1075 = vsel %vm1073, %v1072, %v1074
    %v1076 = vand.u32 2147483647, %v1075
    %v1077 = vadd.f32 %v1063, %v1076
    %v1078 = vrcp.pop %v1077
    %v1079 = vmul.f32 1.0, %v1078
    %v1080 = vmul.f32 %v1063, %v1079
    %s1081 = scalar_lea.vmem [#allocation10], 64
    %1082 = vst [vmem:[%s1081] sm:$0xff] %v1080
    %v1083 = vmul.f32 %v1076, %v1079
    %s1084 = scalar_lea.vmem [#allocation10], 72
    %1085 = vst [vmem:[%s1084] sm:$0xff] %v1083
    %v1086 = vmul.f32 %v966, %v966
    %v1087 = vmul.f32 %v967, %v967
    %v1088 = vadd.f32 %v1086, %v1087
    %v1089 = vrsqrt.pop %v1088
    %v1090 = vmul.f32 %v966, %v1089
    %v1091 = vmul.f32 %v967, %v1089
    %s1092 = sld [smem:[#allocation3 + $0x20]]
    %v1093 = vstv %s1092
    %v1094 = vmul.f32 %v1093, %v1090
    %s1095 = sld [smem:[#allocation3 + $0x21]]
    %v1096 = vstv %s1095
    %v1097 = vmul.f32 %v1096, %v1091
    %v1098 = vadd.f32 %v1094, %v1097
    %s1099 = sld [smem:[#allocation3 + $0x22]]
    %v1100 = vstv %s1099
    %v1101 = vmul.f32 %v1100, %v1090
    %s1102 = sld [smem:[#allocation3 + $0x23]]
    %v1103 = vstv %s1102
    %v1104 = vmul.f32 %v1103, %v1091
    %v1105 = vadd.f32 %v1101, %v1104
    %s1106 = sld [smem:[#allocation3 + $0x24]]
    %v1107 = vstv %s1106
    %v1108 = vmul.f32 %v1107, %v1090
    %s1109 = sld [smem:[#allocation3 + $0x25]]
    %v1110 = vstv %s1109
    %v1111 = vmul.f32 %v1110, %v1091
    %v1112 = vadd.f32 %v1108, %v1111
    %s1113 = sld [smem:[#allocation3 + $0x26]]
    %v1114 = vstv %s1113
    %v1115 = vmul.f32 %v1114, %v1090
    %s1116 = sld [smem:[#allocation3 + $0x27]]
    %v1117 = vstv %s1116
    %v1118 = vmul.f32 %v1117, %v1091
    %v1119 = vadd.f32 %v1115, %v1118
    %v1120 = vmul.f32 %v1098, %v943
    %v1121 = vmul.f32 %v1105, %v946
    %v1122 = vadd.f32 %v1120, %v1121
    %v1123 = vmul.f32 %v1112, %v943
    %v1124 = vmul.f32 %v1119, %v946
    %v1125 = vadd.f32 %v1123, %v1124
    %v1126 = vmul.f32 %v1122, %v1122
    %v1127 = vmul.f32 %v1125, %v1125
    %v1128 = vadd.f32 %v1126, %v1127
    %v1129 = vrsqrt.pop %v1128
    %v1130 = vmul.f32 %v1128, %v1129
    %vm1131 = vcmp.eq.f32.partialorder %v1128, inf
    %v1132 = vsel %vm1131, %v1128, %v1130
    %vm1133 = vcmp.eq.f32.partialorder %v1128, 0.0
    %v1134 = vand.u32 %v1128, 2147483648
    %v1135 = vsel %vm1133, %v1134, %v1132
    %v1136 = vadd.f32 %v1135, 1e-06
    %v1137 = vrcp.pop %v1136
    %v1138 = vmul.f32 1.0, %v1137
    %v1139 = vmul.f32 %v1122, %v1138
    %v1140 = vmul.f32 %v1125, %v1138
    %s1141 = scalar_lea.vmem [#allocation13], 48
    %1142 = vst [vmem:[%s1141] sm:$0xff] %v1139
    %s1143 = scalar_lea.vmem [#allocation13], 56
    %1144 = vst [vmem:[%s1143] sm:$0xff] %v1140
    %v1145 = vld [vmem:[%s230] sm:$0xff]
    %v1146 = vld [vmem:[%s232] sm:$0xff]
    %v1147 = vld [vmem:[%s226] sm:$0xff]
    %v1148 = vld [vmem:[%s228] sm:$0xff]
    %v1149 = vmul.f32 %v1147, %v1139
    %v1150 = vmul.f32 %v1147, %v1140
    %v1151 = vmul.f32 %v1148, %v1139
    %v1152 = vmul.f32 %v1148, %v1140
    %s1153 = sld [smem:[#allocation7 + $0x30]]
    %v1154 = vstv %s1153
    %v1155 = vmul.f32 %v1154, %v1149
    %s1156 = sld [smem:[#allocation7 + $0x34]]
    %v1157 = vstv %s1156
    %v1158 = vmul.f32 %v1157, %v1150
    %s1159 = sld [smem:[#allocation7 + $0x38]]
    %v1160 = vstv %s1159
    %v1161 = vmul.f32 %v1160, %v1151
    %s1162 = sld [smem:[#allocation7 + $0x3c]]
    %v1163 = vstv %s1162
    %v1164 = vmul.f32 %v1163, %v1152
    %v1165 = vadd.f32 %v1155, %v1158
    %v1166 = vadd.f32 %v1165, %v1161
    %v1167 = vadd.f32 %v1166, %v1164
    %s1168 = sld [smem:[#allocation7 + $0x31]]
    %v1169 = vstv %s1168
    %v1170 = vmul.f32 %v1169, %v1149
    %s1171 = sld [smem:[#allocation7 + $0x35]]
    %v1172 = vstv %s1171
    %v1173 = vmul.f32 %v1172, %v1150
    %s1174 = sld [smem:[#allocation7 + $0x39]]
    %v1175 = vstv %s1174
    %v1176 = vmul.f32 %v1175, %v1151
    %s1177 = sld [smem:[#allocation7 + $0x3d]]
    %v1178 = vstv %s1177
    %v1179 = vmul.f32 %v1178, %v1152
    %v1180 = vadd.f32 %v1170, %v1173
    %v1181 = vadd.f32 %v1180, %v1176
    %v1182 = vadd.f32 %v1181, %v1179
    %s1183 = sld [smem:[#allocation7 + $0x32]]
    %v1184 = vstv %s1183
    %v1185 = vmul.f32 %v1184, %v1149
    %s1186 = sld [smem:[#allocation7 + $0x36]]
    %v1187 = vstv %s1186
    %v1188 = vmul.f32 %v1187, %v1150
    %s1189 = sld [smem:[#allocation7 + $0x3a]]
    %v1190 = vstv %s1189
    %v1191 = vmul.f32 %v1190, %v1151
    %s1192 = sld [smem:[#allocation7 + $0x3e]]
    %v1193 = vstv %s1192
    %v1194 = vmul.f32 %v1193, %v1152
    %v1195 = vadd.f32 %v1185, %v1188
    %v1196 = vadd.f32 %v1195, %v1191
    %v1197 = vadd.f32 %v1196, %v1194
    %s1198 = sld [smem:[#allocation7 + $0x33]]
    %v1199 = vstv %s1198
    %v1200 = vmul.f32 %v1199, %v1149
    %s1201 = sld [smem:[#allocation7 + $0x37]]
    %v1202 = vstv %s1201
    %v1203 = vmul.f32 %v1202, %v1150
    %s1204 = sld [smem:[#allocation7 + $0x3b]]
    %v1205 = vstv %s1204
    %v1206 = vmul.f32 %v1205, %v1151
    %s1207 = sld [smem:[#allocation7 + $0x3f]]
    %v1208 = vstv %s1207
    %v1209 = vmul.f32 %v1208, %v1152
    %v1210 = vadd.f32 %v1200, %v1203
    %v1211 = vadd.f32 %v1210, %v1206
    %v1212 = vadd.f32 %v1211, %v1209
    %v1213 = vmul.f32 %v1167, %v1167
    %v1214 = vmul.f32 %v1182, %v1182
    %v1215 = vmul.f32 %v1197, %v1197
    %v1216 = vmul.f32 %v1212, %v1212
    %v1217 = vadd.f32 %v1213, %v1214
    %v1218 = vadd.f32 %v1217, %v1215
    %v1219 = vadd.f32 %v1218, %v1216
    %v1220 = vrsqrt.pop %v1219
    %v1221 = vmul.f32 %v1219, %v1220
    %vm1222 = vcmp.eq.f32.partialorder %v1219, inf
    %v1223 = vsel %vm1222, %v1219, %v1221
    %vm1224 = vcmp.eq.f32.partialorder %v1219, 0.0
    %v1225 = vand.u32 %v1219, 2147483648
    %v1226 = vsel %vm1224, %v1225, %v1223
    %v1227 = vadd.f32 %v1226, 1e-06
    %v1228 = vrcp.pop %v1227
    %v1229 = vmul.f32 %v531, %v1228
    %v1230 = vmul.f32 %v1167, %v1229
    %vm1231 = vcmp.ne.f32.partialorder %v1230, %v1230
    %v1232 = vsel %vm1231, 0.0, %v1230
    %v1233 = vmul.f32 %v1232, %v1145
    %v1234 = vmul.f32 %v1182, %v1229
    %vm1235 = vcmp.ne.f32.partialorder %v1234, %v1234
    %v1236 = vsel %vm1235, 0.0, %v1234
    %v1237 = vmul.f32 %v1236, %v1146
    %v1238 = vadd.f32 %v1233, %v1237
    %vm1239 = vcmp.ge.f32.partialorder %v1238, 0.0
    %v1240 = vmul.f32 %v1238, 1e-05
    %v1241 = vsel %vm1239, %v1238, %v1240
    %v1242 = vand.u32 2147483647, %v1241
    %v1243 = vmul.f32 %v1197, %v1229
    %vm1244 = vcmp.ne.f32.partialorder %v1243, %v1243
    %v1245 = vsel %vm1244, 0.0, %v1243
    %v1246 = vmul.f32 %v1245, %v1145
    %v1247 = vmul.f32 %v1212, %v1229
    %vm1248 = vcmp.ne.f32.partialorder %v1247, %v1247
    %v1249 = vsel %vm1248, 0.0, %v1247
    %v1250 = vmul.f32 %v1249, %v1146
    %v1251 = vadd.f32 %v1246, %v1250
    %vm1252 = vcmp.ge.f32.partialorder %v1251, 0.0
    %v1253 = vmul.f32 %v1251, 1e-05
    %v1254 = vsel %vm1252, %v1251, %v1253
    %v1255 = vand.u32 2147483647, %v1254
    %v1256 = vadd.f32 %v1242, %v1255
    %v1257 = vrcp.pop %v1256
    %v1258 = vmul.f32 1.0, %v1257
    %v1259 = vmul.f32 %v1242, %v1258
    %s1260 = scalar_lea.vmem [#allocation10], 48
    %1261 = vst [vmem:[%s1260] sm:$0xff] %v1259
    %v1262 = vmul.f32 %v1255, %v1258
    %s1263 = scalar_lea.vmem [#allocation10], 56
    %1264 = vst [vmem:[%s1263] sm:$0xff] %v1262
    %v1265 = vmul.f32 %v1145, %v1145
    %v1266 = vmul.f32 %v1146, %v1146
    %v1267 = vadd.f32 %v1265, %v1266
    %v1268 = vrsqrt.pop %v1267
    %v1269 = vmul.f32 %v1145, %v1268
    %v1270 = vmul.f32 %v1146, %v1268
    %s1271 = sld [smem:[#allocation3 + $0x18]]
    %v1272 = vstv %s1271
    %v1273 = vmul.f32 %v1272, %v1269
    %s1274 = sld [smem:[#allocation3 + $0x19]]
    %v1275 = vstv %s1274
    %v1276 = vmul.f32 %v1275, %v1270
    %v1277 = vadd.f32 %v1273, %v1276
    %s1278 = sld [smem:[#allocation3 + $0x1a]]
    %v1279 = vstv %s1278
    %v1280 = vmul.f32 %v1279, %v1269
    %s1281 = sld [smem:[#allocation3 + $0x1b]]
    %v1282 = vstv %s1281
    %v1283 = vmul.f32 %v1282, %v1270
    %v1284 = vadd.f32 %v1280, %v1283
    %s1285 = sld [smem:[#allocation3 + $0x1c]]
    %v1286 = vstv %s1285
    %v1287 = vmul.f32 %v1286, %v1269
    %s1288 = sld [smem:[#allocation3 + $0x1d]]
    %v1289 = vstv %s1288
    %v1290 = vmul.f32 %v1289, %v1270
    %v1291 = vadd.f32 %v1287, %v1290
    %s1292 = sld [smem:[#allocation3 + $0x1e]]
    %v1293 = vstv %s1292
    %v1294 = vmul.f32 %v1293, %v1269
    %s1295 = sld [smem:[#allocation3 + $0x1f]]
    %v1296 = vstv %s1295
    %v1297 = vmul.f32 %v1296, %v1270
    %v1298 = vadd.f32 %v1294, %v1297
    %v1299 = vmul.f32 %v1277, %v1122
    %v1300 = vmul.f32 %v1284, %v1125
    %v1301 = vadd.f32 %v1299, %v1300
    %v1302 = vmul.f32 %v1291, %v1122
    %v1303 = vmul.f32 %v1298, %v1125
    %v1304 = vadd.f32 %v1302, %v1303
    %v1305 = vmul.f32 %v1301, %v1301
    %v1306 = vmul.f32 %v1304, %v1304
    %v1307 = vadd.f32 %v1305, %v1306
    %v1308 = vrsqrt.pop %v1307
    %v1309 = vmul.f32 %v1307, %v1308
    %vm1310 = vcmp.eq.f32.partialorder %v1307, inf
    %v1311 = vsel %vm1310, %v1307, %v1309
    %vm1312 = vcmp.eq.f32.partialorder %v1307, 0.0
    %v1313 = vand.u32 %v1307, 2147483648
    %v1314 = vsel %vm1312, %v1313, %v1311
    %v1315 = vadd.f32 %v1314, 1e-06
    %v1316 = vrcp.pop %v1315
    %v1317 = vmul.f32 1.0, %v1316
    %v1318 = vmul.f32 %v1301, %v1317
    %v1319 = vmul.f32 %v1304, %v1317
    %s1320 = scalar_lea.vmem [#allocation13], 32
    %1321 = vst [vmem:[%s1320] sm:$0xff] %v1318
    %s1322 = scalar_lea.vmem [#allocation13], 40
    %1323 = vst [vmem:[%s1322] sm:$0xff] %v1319
    %v1324 = vld [vmem:[%s167] sm:$0xff]
    %v1325 = vld [vmem:[%s169] sm:$0xff]
    %v1326 = vld [vmem:[%s163] sm:$0xff]
    %v1327 = vld [vmem:[%s165] sm:$0xff]
    %v1328 = vmul.f32 %v1326, %v1318
    %v1329 = vmul.f32 %v1326, %v1319
    %v1330 = vmul.f32 %v1327, %v1318
    %v1331 = vmul.f32 %v1327, %v1319
    %s1332 = sld [smem:[#allocation7 + $0x20]]
    %v1333 = vstv %s1332
    %v1334 = vmul.f32 %v1333, %v1328
    %s1335 = sld [smem:[#allocation7 + $0x24]]
    %v1336 = vstv %s1335
    %v1337 = vmul.f32 %v1336, %v1329
    %s1338 = sld [smem:[#allocation7 + $0x28]]
    %v1339 = vstv %s1338
    %v1340 = vmul.f32 %v1339, %v1330
    %s1341 = sld [smem:[#allocation7 + $0x2c]]
    %v1342 = vstv %s1341
    %v1343 = vmul.f32 %v1342, %v1331
    %v1344 = vadd.f32 %v1334, %v1337
    %v1345 = vadd.f32 %v1344, %v1340
    %v1346 = vadd.f32 %v1345, %v1343
    %s1347 = sld [smem:[#allocation7 + $0x21]]
    %v1348 = vstv %s1347
    %v1349 = vmul.f32 %v1348, %v1328
    %s1350 = sld [smem:[#allocation7 + $0x25]]
    %v1351 = vstv %s1350
    %v1352 = vmul.f32 %v1351, %v1329
    %s1353 = sld [smem:[#allocation7 + $0x29]]
    %v1354 = vstv %s1353
    %v1355 = vmul.f32 %v1354, %v1330
    %s1356 = sld [smem:[#allocation7 + $0x2d]]
    %v1357 = vstv %s1356
    %v1358 = vmul.f32 %v1357, %v1331
    %v1359 = vadd.f32 %v1349, %v1352
    %v1360 = vadd.f32 %v1359, %v1355
    %v1361 = vadd.f32 %v1360, %v1358
    %s1362 = sld [smem:[#allocation7 + $0x22]]
    %v1363 = vstv %s1362
    %v1364 = vmul.f32 %v1363, %v1328
    %s1365 = sld [smem:[#allocation7 + $0x26]]
    %v1366 = vstv %s1365
    %v1367 = vmul.f32 %v1366, %v1329
    %s1368 = sld [smem:[#allocation7 + $0x2a]]
    %v1369 = vstv %s1368
    %v1370 = vmul.f32 %v1369, %v1330
    %s1371 = sld [smem:[#allocation7 + $0x2e]]
    %v1372 = vstv %s1371
    %v1373 = vmul.f32 %v1372, %v1331
    %v1374 = vadd.f32 %v1364, %v1367
    %v1375 = vadd.f32 %v1374, %v1370
    %v1376 = vadd.f32 %v1375, %v1373
    %s1377 = sld [smem:[#allocation7 + $0x23]]
    %v1378 = vstv %s1377
    %v1379 = vmul.f32 %v1378, %v1328
    %s1380 = sld [smem:[#allocation7 + $0x27]]
    %v1381 = vstv %s1380
    %v1382 = vmul.f32 %v1381, %v1329
    %s1383 = sld [smem:[#allocation7 + $0x2b]]
    %v1384 = vstv %s1383
    %v1385 = vmul.f32 %v1384, %v1330
    %s1386 = sld [smem:[#allocation7 + $0x2f]]
    %v1387 = vstv %s1386
    %v1388 = vmul.f32 %v1387, %v1331
    %v1389 = vadd.f32 %v1379, %v1382
    %v1390 = vadd.f32 %v1389, %v1385
    %v1391 = vadd.f32 %v1390, %v1388
    %v1392 = vmul.f32 %v1346, %v1346
    %v1393 = vmul.f32 %v1361, %v1361
    %v1394 = vmul.f32 %v1376, %v1376
    %v1395 = vmul.f32 %v1391, %v1391
    %v1396 = vadd.f32 %v1392, %v1393
    %v1397 = vadd.f32 %v1396, %v1394
    %v1398 = vadd.f32 %v1397, %v1395
    %v1399 = vrsqrt.pop %v1398
    %v1400 = vmul.f32 %v1398, %v1399
    %vm1401 = vcmp.eq.f32.partialorder %v1398, inf
    %v1402 = vsel %vm1401, %v1398, %v1400
    %vm1403 = vcmp.eq.f32.partialorder %v1398, 0.0
    %v1404 = vand.u32 %v1398, 2147483648
    %v1405 = vsel %vm1403, %v1404, %v1402
    %v1406 = vadd.f32 %v1405, 1e-06
    %v1407 = vrcp.pop %v1406
    %v1408 = vmul.f32 %v531, %v1407
    %v1409 = vmul.f32 %v1346, %v1408
    %vm1410 = vcmp.ne.f32.partialorder %v1409, %v1409
    %v1411 = vsel %vm1410, 0.0, %v1409
    %v1412 = vmul.f32 %v1411, %v1324
    %v1413 = vmul.f32 %v1361, %v1408
    %vm1414 = vcmp.ne.f32.partialorder %v1413, %v1413
    %v1415 = vsel %vm1414, 0.0, %v1413
    %v1416 = vmul.f32 %v1415, %v1325
    %v1417 = vadd.f32 %v1412, %v1416
    %vm1418 = vcmp.ge.f32.partialorder %v1417, 0.0
    %v1419 = vmul.f32 %v1417, 1e-05
    %v1420 = vsel %vm1418, %v1417, %v1419
    %v1421 = vand.u32 2147483647, %v1420
    %v1422 = vmul.f32 %v1376, %v1408
    %vm1423 = vcmp.ne.f32.partialorder %v1422, %v1422
    %v1424 = vsel %vm1423, 0.0, %v1422
    %v1425 = vmul.f32 %v1424, %v1324
    %v1426 = vmul.f32 %v1391, %v1408
    %vm1427 = vcmp.ne.f32.partialorder %v1426, %v1426
    %v1428 = vsel %vm1427, 0.0, %v1426
    %v1429 = vmul.f32 %v1428, %v1325
    %v1430 = vadd.f32 %v1425, %v1429
    %vm1431 = vcmp.ge.f32.partialorder %v1430, 0.0
    %v1432 = vmul.f32 %v1430, 1e-05
    %v1433 = vsel %vm1431, %v1430, %v1432
    %v1434 = vand.u32 2147483647, %v1433
    %v1435 = vadd.f32 %v1421, %v1434
    %v1436 = vrcp.pop %v1435
    %v1437 = vmul.f32 1.0, %v1436
    %v1438 = vmul.f32 %v1421, %v1437
    %s1439 = scalar_lea.vmem [#allocation10], 32
    %1440 = vst [vmem:[%s1439] sm:$0xff] %v1438
    %v1441 = vmul.f32 %v1434, %v1437
    %s1442 = scalar_lea.vmem [#allocation10], 40
    %1443 = vst [vmem:[%s1442] sm:$0xff] %v1441
    %v1444 = vmul.f32 %v1324, %v1324
    %v1445 = vmul.f32 %v1325, %v1325
    %v1446 = vadd.f32 %v1444, %v1445
    %v1447 = vrsqrt.pop %v1446
    %v1448 = vmul.f32 %v1324, %v1447
    %v1449 = vmul.f32 %v1325, %v1447
    %s1450 = sld [smem:[#allocation3 + $0x10]]
    %v1451 = vstv %s1450
    %v1452 = vmul.f32 %v1451, %v1448
    %s1453 = sld [smem:[#allocation3 + $0x11]]
    %v1454 = vstv %s1453
    %v1455 = vmul.f32 %v1454, %v1449
    %v1456 = vadd.f32 %v1452, %v1455
    %s1457 = sld [smem:[#allocation3 + $0x12]]
    %v1458 = vstv %s1457
    %v1459 = vmul.f32 %v1458, %v1448
    %s1460 = sld [smem:[#allocation3 + $0x13]]
    %v1461 = vstv %s1460
    %v1462 = vmul.f32 %v1461, %v1449
    %v1463 = vadd.f32 %v1459, %v1462
    %s1464 = sld [smem:[#allocation3 + $0x14]]
    %v1465 = vstv %s1464
    %v1466 = vmul.f32 %v1465, %v1448
    %s1467 = sld [smem:[#allocation3 + $0x15]]
    %v1468 = vstv %s1467
    %v1469 = vmul.f32 %v1468, %v1449
    %v1470 = vadd.f32 %v1466, %v1469
    %s1471 = sld [smem:[#allocation3 + $0x16]]
    %v1472 = vstv %s1471
    %v1473 = vmul.f32 %v1472, %v1448
    %s1474 = sld [smem:[#allocation3 + $0x17]]
    %v1475 = vstv %s1474
    %v1476 = vmul.f32 %v1475, %v1449
    %v1477 = vadd.f32 %v1473, %v1476
    %v1478 = vmul.f32 %v1456, %v1301
    %v1479 = vmul.f32 %v1463, %v1304
    %v1480 = vadd.f32 %v1478, %v1479
    %v1481 = vmul.f32 %v1470, %v1301
    %v1482 = vmul.f32 %v1477, %v1304
    %v1483 = vadd.f32 %v1481, %v1482
    %v1484 = vmul.f32 %v1480, %v1480
    %v1485 = vmul.f32 %v1483, %v1483
    %v1486 = vadd.f32 %v1484, %v1485
    %v1487 = vrsqrt.pop %v1486
    %v1488 = vmul.f32 %v1486, %v1487
    %vm1489 = vcmp.eq.f32.partialorder %v1486, inf
    %v1490 = vsel %vm1489, %v1486, %v1488
    %vm1491 = vcmp.eq.f32.partialorder %v1486, 0.0
    %v1492 = vand.u32 %v1486, 2147483648
    %v1493 = vsel %vm1491, %v1492, %v1490
    %v1494 = vadd.f32 %v1493, 1e-06
    %v1495 = vrcp.pop %v1494
    %v1496 = vmul.f32 1.0, %v1495
    %v1497 = vmul.f32 %v1480, %v1496
    %v1498 = vmul.f32 %v1483, %v1496
    %s1499 = scalar_lea.vmem [#allocation13], 16
    %1500 = vst [vmem:[%s1499] sm:$0xff] %v1497
    %s1501 = scalar_lea.vmem [#allocation13], 24
    %1502 = vst [vmem:[%s1501] sm:$0xff] %v1498
    %v1503 = vld [vmem:[%s104] sm:$0xff]
    %v1504 = vld [vmem:[%s106] sm:$0xff]
    %v1505 = vld [vmem:[#allocation11] sm:$0xff]
    %v1506 = vld [vmem:[%s102] sm:$0xff]
    %v1507 = vmul.f32 %v1505, %v1497
    %v1508 = vmul.f32 %v1505, %v1498
    %v1509 = vmul.f32 %v1506, %v1497
    %v1510 = vmul.f32 %v1506, %v1498
    %s1511 = sld [smem:[#allocation7 + $0x10]]
    %v1512 = vstv %s1511
    %v1513 = vmul.f32 %v1512, %v1507
    %s1514 = sld [smem:[#allocation7 + $0x14]]
    %v1515 = vstv %s1514
    %v1516 = vmul.f32 %v1515, %v1508
    %s1517 = sld [smem:[#allocation7 + $0x18]]
    %v1518 = vstv %s1517
    %v1519 = vmul.f32 %v1518, %v1509
    %s1520 = sld [smem:[#allocation7 + $0x1c]]
    %v1521 = vstv %s1520
    %v1522 = vmul.f32 %v1521, %v1510
    %v1523 = vadd.f32 %v1513, %v1516
    %v1524 = vadd.f32 %v1523, %v1519
    %v1525 = vadd.f32 %v1524, %v1522
    %s1526 = sld [smem:[#allocation7 + $0x11]]
    %v1527 = vstv %s1526
    %v1528 = vmul.f32 %v1527, %v1507
    %s1529 = sld [smem:[#allocation7 + $0x15]]
    %v1530 = vstv %s1529
    %v1531 = vmul.f32 %v1530, %v1508
    %s1532 = sld [smem:[#allocation7 + $0x19]]
    %v1533 = vstv %s1532
    %v1534 = vmul.f32 %v1533, %v1509
    %s1535 = sld [smem:[#allocation7 + $0x1d]]
    %v1536 = vstv %s1535
    %v1537 = vmul.f32 %v1536, %v1510
    %v1538 = vadd.f32 %v1528, %v1531
    %v1539 = vadd.f32 %v1538, %v1534
    %v1540 = vadd.f32 %v1539, %v1537
    %s1541 = sld [smem:[#allocation7 + $0x12]]
    %v1542 = vstv %s1541
    %v1543 = vmul.f32 %v1542, %v1507
    %s1544 = sld [smem:[#allocation7 + $0x16]]
    %v1545 = vstv %s1544
    %v1546 = vmul.f32 %v1545, %v1508
    %s1547 = sld [smem:[#allocation7 + $0x1a]]
    %v1548 = vstv %s1547
    %v1549 = vmul.f32 %v1548, %v1509
    %s1550 = sld [smem:[#allocation7 + $0x1e]]
    %v1551 = vstv %s1550
    %v1552 = vmul.f32 %v1551, %v1510
    %v1553 = vadd.f32 %v1543, %v1546
    %v1554 = vadd.f32 %v1553, %v1549
    %v1555 = vadd.f32 %v1554, %v1552
    %s1556 = sld [smem:[#allocation7 + $0x13]]
    %v1557 = vstv %s1556
    %v1558 = vmul.f32 %v1557, %v1507
    %s1559 = sld [smem:[#allocation7 + $0x17]]
    %v1560 = vstv %s1559
    %v1561 = vmul.f32 %v1560, %v1508
    %s1562 = sld [smem:[#allocation7 + $0x1b]]
    %v1563 = vstv %s1562
    %v1564 = vmul.f32 %v1563, %v1509
    %s1565 = sld [smem:[#allocation7 + $0x1f]]
    %v1566 = vstv %s1565
    %v1567 = vmul.f32 %v1566, %v1510
    %v1568 = vadd.f32 %v1558, %v1561
    %v1569 = vadd.f32 %v1568, %v1564
    %v1570 = vadd.f32 %v1569, %v1567
    %v1571 = vmul.f32 %v1525, %v1525
    %v1572 = vmul.f32 %v1540, %v1540
    %v1573 = vmul.f32 %v1555, %v1555
    %v1574 = vmul.f32 %v1570, %v1570
    %v1575 = vadd.f32 %v1571, %v1572
    %v1576 = vadd.f32 %v1575, %v1573
    %v1577 = vadd.f32 %v1576, %v1574
    %v1578 = vrsqrt.pop %v1577
    %v1579 = vmul.f32 %v1577, %v1578
    %vm1580 = vcmp.eq.f32.partialorder %v1577, inf
    %v1581 = vsel %vm1580, %v1577, %v1579
    %vm1582 = vcmp.eq.f32.partialorder %v1577, 0.0
    %v1583 = vand.u32 %v1577, 2147483648
    %v1584 = vsel %vm1582, %v1583, %v1581
    %v1585 = vadd.f32 %v1584, 1e-06
    %v1586 = vrcp.pop %v1585
    %v1587 = vmul.f32 %v531, %v1586
    %v1588 = vmul.f32 %v1525, %v1587
    %vm1589 = vcmp.ne.f32.partialorder %v1588, %v1588
    %v1590 = vsel %vm1589, 0.0, %v1588
    %v1591 = vmul.f32 %v1590, %v1503
    %v1592 = vmul.f32 %v1540, %v1587
    %vm1593 = vcmp.ne.f32.partialorder %v1592, %v1592
    %v1594 = vsel %vm1593, 0.0, %v1592
    %v1595 = vmul.f32 %v1594, %v1504
    %v1596 = vadd.f32 %v1591, %v1595
    %vm1597 = vcmp.ge.f32.partialorder %v1596, 0.0
    %v1598 = vmul.f32 %v1596, 1e-05
    %v1599 = vsel %vm1597, %v1596, %v1598
    %v1600 = vand.u32 2147483647, %v1599
    %v1601 = vmul.f32 %v1555, %v1587
    %vm1602 = vcmp.ne.f32.partialorder %v1601, %v1601
    %v1603 = vsel %vm1602, 0.0, %v1601
    %v1604 = vmul.f32 %v1603, %v1503
    %v1605 = vmul.f32 %v1570, %v1587
    %vm1606 = vcmp.ne.f32.partialorder %v1605, %v1605
    %v1607 = vsel %vm1606, 0.0, %v1605
    %v1608 = vmul.f32 %v1607, %v1504
    %v1609 = vadd.f32 %v1604, %v1608
    %vm1610 = vcmp.ge.f32.partialorder %v1609, 0.0
    %v1611 = vmul.f32 %v1609, 1e-05
    %v1612 = vsel %vm1610, %v1609, %v1611
    %v1613 = vand.u32 2147483647, %v1612
    %v1614 = vadd.f32 %v1600, %v1613
    %v1615 = vrcp.pop %v1614
    %v1616 = vmul.f32 1.0, %v1615
    %v1617 = vmul.f32 %v1600, %v1616
    %s1618 = scalar_lea.vmem [#allocation10], 16
    %1619 = vst [vmem:[%s1618] sm:$0xff] %v1617
    %v1620 = vmul.f32 %v1613, %v1616
    %s1621 = scalar_lea.vmem [#allocation10], 24
    %1622 = vst [vmem:[%s1621] sm:$0xff] %v1620
    %v1623 = vmul.f32 %v1503, %v1503
    %v1624 = vmul.f32 %v1504, %v1504
    %v1625 = vadd.f32 %v1623, %v1624
    %v1626 = vrsqrt.pop %v1625
    %v1627 = vmul.f32 %v1503, %v1626
    %v1628 = vmul.f32 %v1504, %v1626
    %s1629 = sld [smem:[#allocation3 + $0x8]]
    %v1630 = vstv %s1629
    %v1631 = vmul.f32 %v1630, %v1627
    %s1632 = sld [smem:[#allocation3 + $0x9]]
    %v1633 = vstv %s1632
    %v1634 = vmul.f32 %v1633, %v1628
    %v1635 = vadd.f32 %v1631, %v1634
    %s1636 = sld [smem:[#allocation3 + $0xa]]
    %v1637 = vstv %s1636
    %v1638 = vmul.f32 %v1637, %v1627
    %s1639 = sld [smem:[#allocation3 + $0xb]]
    %v1640 = vstv %s1639
    %v1641 = vmul.f32 %v1640, %v1628
    %v1642 = vadd.f32 %v1638, %v1641
    %s1643 = sld [smem:[#allocation3 + $0xc]]
    %v1644 = vstv %s1643
    %v1645 = vmul.f32 %v1644, %v1627
    %s1646 = sld [smem:[#allocation3 + $0xd]]
    %v1647 = vstv %s1646
    %v1648 = vmul.f32 %v1647, %v1628
    %v1649 = vadd.f32 %v1645, %v1648
    %s1650 = sld [smem:[#allocation3 + $0xe]]
    %v1651 = vstv %s1650
    %v1652 = vmul.f32 %v1651, %v1627
    %s1653 = sld [smem:[#allocation3 + $0xf]]
    %v1654 = vstv %s1653
    %v1655 = vmul.f32 %v1654, %v1628
    %v1656 = vadd.f32 %v1652, %v1655
    %v1657 = vmul.f32 %v1635, %v1480
    %v1658 = vmul.f32 %v1642, %v1483
    %v1659 = vadd.f32 %v1657, %v1658
    %v1660 = vmul.f32 %v1649, %v1480
    %v1661 = vmul.f32 %v1656, %v1483
    %v1662 = vadd.f32 %v1660, %v1661
    %v1663 = vmul.f32 %v1659, %v1659
    %v1664 = vmul.f32 %v1662, %v1662
    %v1665 = vadd.f32 %v1663, %v1664
    %v1666 = vrsqrt.pop %v1665
    %v1667 = vmul.f32 %v1665, %v1666
    %vm1668 = vcmp.eq.f32.partialorder %v1665, inf
    %v1669 = vsel %vm1668, %v1665, %v1667
    %vm1670 = vcmp.eq.f32.partialorder %v1665, 0.0
    %v1671 = vand.u32 %v1665, 2147483648
    %v1672 = vsel %vm1670, %v1671, %v1669
    %v1673 = vadd.f32 %v1672, 1e-06
    %v1674 = vrcp.pop %v1673
    %v1675 = vmul.f32 1.0, %v1674
    %v1676 = vmul.f32 %v1659, %v1675
    %v1677 = vmul.f32 %v1662, %v1675
    %1678 = vst [vmem:[#allocation13] sm:$0xff] %v1676
    %s1679 = scalar_lea.vmem [#allocation13], 8
    %1680 = vst [vmem:[%s1679] sm:$0xff] %v1677
    %v1681 = vld [vmem:[#allocation9] sm:$0xff]
    %v1682 = vld [vmem:[%s64] sm:$0xff]
    %s1683 = sld [smem:[#allocation7]]
    %v1684 = vstv %s1683
    %v1685 = vmul.f32 %v1684, %v1676
    %s1686 = sld [smem:[#allocation7 + $0x4]]
    %v1687 = vstv %s1686
    %v1688 = vmul.f32 %v1687, %v1677
    %v1689 = vadd.f32 %v1685, %v1688
    %s1690 = sld [smem:[#allocation7 + $0x1]]
    %v1691 = vstv %s1690
    %v1692 = vmul.f32 %v1691, %v1676
    %s1693 = sld [smem:[#allocation7 + $0x5]]
    %v1694 = vstv %s1693
    %v1695 = vmul.f32 %v1694, %v1677
    %v1696 = vadd.f32 %v1692, %v1695
    %s1697 = sld [smem:[#allocation7 + $0x2]]
    %v1698 = vstv %s1697
    %v1699 = vmul.f32 %v1698, %v1676
    %s1700 = sld [smem:[#allocation7 + $0x6]]
    %v1701 = vstv %s1700
    %v1702 = vmul.f32 %v1701, %v1677
    %v1703 = vadd.f32 %v1699, %v1702
    %s1704 = sld [smem:[#allocation7 + $0x3]]
    %v1705 = vstv %s1704
    %v1706 = vmul.f32 %v1705, %v1676
    %s1707 = sld [smem:[#allocation7 + $0x7]]
    %v1708 = vstv %s1707
    %v1709 = vmul.f32 %v1708, %v1677
    %v1710 = vadd.f32 %v1706, %v1709
    %v1711 = vmul.f32 %v1689, %v1689
    %v1712 = vmul.f32 %v1696, %v1696
    %v1713 = vmul.f32 %v1703, %v1703
    %v1714 = vmul.f32 %v1710, %v1710
    %v1715 = vadd.f32 %v1711, %v1712
    %v1716 = vadd.f32 %v1715, %v1713
    %v1717 = vadd.f32 %v1716, %v1714
    %v1718 = vrsqrt.pop %v1717
    %v1719 = vmul.f32 %v1717, %v1718
    %vm1720 = vcmp.eq.f32.partialorder %v1717, inf
    %v1721 = vsel %vm1720, %v1717, %v1719
    %vm1722 = vcmp.eq.f32.partialorder %v1717, 0.0
    %v1723 = vand.u32 %v1717, 2147483648
    %v1724 = vsel %vm1722, %v1723, %v1721
    %v1725 = vadd.f32 %v1724, 1e-06
    %v1726 = vrcp.pop %v1725
    %v1727 = vmul.f32 %v531, %v1726
    %v1728 = vmul.f32 %v1689, %v1727
    %vm1729 = vcmp.ne.f32.partialorder %v1728, %v1728
    %v1730 = vsel %vm1729, 0.0, %v1728
    %v1731 = vmul.f32 %v1730, %v1681
    %v1732 = vmul.f32 %v1696, %v1727
    %vm1733 = vcmp.ne.f32.partialorder %v1732, %v1732
    %v1734 = vsel %vm1733, 0.0, %v1732
    %v1735 = vmul.f32 %v1734, %v1682
    %v1736 = vadd.f32 %v1731, %v1735
    %vm1737 = vcmp.ge.f32.partialorder %v1736, 0.0
    %v1738 = vmul.f32 %v1736, 1e-05
    %v1739 = vsel %vm1737, %v1736, %v1738
    %v1740 = vand.u32 2147483647, %v1739
    %v1741 = vmul.f32 %v1703, %v1727
    %vm1742 = vcmp.ne.f32.partialorder %v1741, %v1741
    %v1743 = vsel %vm1742, 0.0, %v1741
    %v1744 = vmul.f32 %v1743, %v1681
    %v1745 = vmul.f32 %v1710, %v1727
    %vm1746 = vcmp.ne.f32.partialorder %v1745, %v1745
    %v1747 = vsel %vm1746, 0.0, %v1745
    %v1748 = vmul.f32 %v1747, %v1682
    %v1749 = vadd.f32 %v1744, %v1748
    %vm1750 = vcmp.ge.f32.partialorder %v1749, 0.0
    %v1751 = vmul.f32 %v1749, 1e-05
    %v1752 = vsel %vm1750, %v1749, %v1751
    %v1753 = vand.u32 2147483647, %v1752
    %v1754 = vadd.f32 %v1740, %v1753
    %v1755 = vrcp.pop %v1754
    %v1756 = vmul.f32 1.0, %v1755
    %v1757 = vmul.f32 %v1740, %v1756
    %1758 = vst [vmem:[#allocation10] sm:$0xff] %v1757
    %v1759 = vmul.f32 %v1753, %v1756
    %s1760 = scalar_lea.vmem [#allocation10], 8
    %1761 = vst [vmem:[%s1760] sm:$0xff] %v1759
    // Predicated region
    $region30: #{tpu_custom_call.1} parent=1 // pred_check
      _
    $region31: #{tpu_custom_call.1} parent=1 // pred_check_branch
      %1763 = sbr.rel (0) target = $region33
    $region32: #{tpu_custom_call.1} parent=1 // pred_region
      %s1765 = ssub.s32 2048, 2048
      %1766 = vsyncadd [#allocation5], %s1765
      %s1767 = sshll.u32 [#allocation10], 4
      %s1768 = int_to_ptr.vmem [resolvable:$true] %s1767
      %1773 = dma.vmem_to_hbm [thread:$0]  %s1768, 2048, %s4, [#allocation5], 128, 128, 8
    $region33: #{tpu_custom_call.1} parent=1 // pred_fallthru
      _
    // Predicated region
    $region34: #{tpu_custom_call.1} parent=1 // pred_check
      _
    $region35: #{tpu_custom_call.1} parent=1 // pred_check_branch
      %1775 = sbr.rel (0) target = $region37
    $region36: #{tpu_custom_call.1} parent=1 // pred_region
      %s1777 = ssub.s32 1792, 1792
      %1778 = vsyncadd [#allocation12], %s1777
      %s1779 = sshll.u32 [#allocation11], 4
      %s1780 = int_to_ptr.vmem [resolvable:$true] %s1779
      %1785 = dma.vmem_to_hbm [thread:$0]  %s1780, 1792, %s5, [#allocation12], 128, 128, 8
    $region37: #{tpu_custom_call.1} parent=1 // pred_fallthru
      _
    // Predicated region
    $region38: #{tpu_custom_call.1} parent=1 // pred_check
      _
    $region39: #{tpu_custom_call.1} parent=1 // pred_check_branch
      %1787 = sbr.rel (0) target = $region41
    $region40: #{tpu_custom_call.1} parent=1 // pred_region
      %s1789 = ssub.s32 1792, 1792
      %1790 = vsyncadd [#allocation12], %s1789
      %s1791 = sshll.u32 [#allocation13], 4
      %s1792 = int_to_ptr.vmem [resolvable:$true] %s1791
      %1797 = dma.vmem_to_hbm [thread:$0]  %s1792, 1792, %s6, [#allocation12], 128, 128, 8
    $region41: #{tpu_custom_call.1} parent=1 // pred_fallthru
      _
    // Predicated region
    $region42: #{tpu_custom_call.1} parent=1 // pred_check
      _
    $region43: #{tpu_custom_call.1} parent=1 // pred_check_branch
      %1799 = sbr.rel (0) target = $region45
    $region44: #{tpu_custom_call.1} parent=1 // pred_region
      %1800 = dma.done [#allocation5], 2048
    $region45: #{tpu_custom_call.1} parent=1 // pred_fallthru
      _
    // Predicated region
    $region46: #{tpu_custom_call.1} parent=1 // pred_check
      _
    $region47: #{tpu_custom_call.1} parent=1 // pred_check_branch
      %1802 = sbr.rel (0) target = $region49
    $region48: #{tpu_custom_call.1} parent=1 // pred_region
      %1803 = dma.done [#allocation12], 1792
    $region49: #{tpu_custom_call.1} parent=1 // pred_fallthru
      _
    // Predicated region
    $region50: #{tpu_custom_call.1} parent=1 // pred_check
      _
    $region51: #{tpu_custom_call.1} parent=1 // pred_check_branch
      %1805 = sbr.rel (0) target = $region53
    $region52: #{tpu_custom_call.1} parent=1 // pred_region
      %1806 = dma.done [#allocation12], 1792
    $region53: #{tpu_custom_call.1} parent=1 // pred_fallthru
      _
    %1807 = vsyncpa [#allocation4], 1
    %1808 = vsyncpa [#allocation5], 1
    %1809 = vsyncpa [#allocation12], 1
    %1810 = vsyncpa [#allocation6], 1
    %1811 = vsyncpa [#allocation8], 1

</llo_original>
